<compile_context>
chip_gen: v7x
topology: tpu7x:2x2x1
jax: 0.10.0
libtpu: 0.0.40
codegen_flags: <defaults>
</compile_context>

<pallas_src>
import functools

import jax
import jax.numpy as jnp
from jax import lax
from jax.experimental import pallas as pl
from jax.experimental.pallas import tpu as pltpu

EPS = 1e-3
_LANE = 128
_SUBLANE = 8


def _pad_to(n, m):
    return ((n + m - 1) // m) * m


def _chnorm(f, axis=-1, eps=EPS):
    # matches torch chnorm: center over feature dim, scale by rsqrt(sum sq + eps)
    f = f - jnp.mean(f, axis=axis, keepdims=True)
    return f * lax.rsqrt(jnp.sum(f * f, axis=axis, keepdims=True) + eps)


def _relu(x):
    return jnp.maximum(x, 0.0)


def hnet_recurrent_kernel(fhid_ref, kxa_ref, kq_ref, zout_ref, x_ref, z_ref,
                          *, rows, pack, n_hid_lyr, nfeat_hid, h, unroll):
    """Serial x/z recurrence over rows*pack sequence steps per grid iteration.

    fhid_ref : (rows, Nb_shard, pack*L*NfeatHid)  precomputed relu(chnorm(Fi_j @ Wopen.T)),
               lane-packed [step p][layer j][NfeatHid]
    kxa_ref  : (L, NfeatIn, NfeatHid)   K[:, :, j].T, pre-centered over NfeatHid
    kq_ref   : (L, NfeatHid, NfeatIn)   K[:, :, j],   pre-centered over NfeatIn
    zout_ref : (rows, Nb_shard, pack*NfeatHid)  lane-dense packed hidden states
    x_ref    : (Nb_shard, NfeatIn)   VMEM scratch, carried across the sequence axis
    z_ref    : (Nb_shard, NfeatHid)  VMEM scratch, carried across the sequence axis
    """
    # Init at the start of the SEQUENCE axis (axis 1); works with batch shards.
    @pl.when(pl.program_id(1) == 0)
    def _():
        x_ref[...] = jnp.zeros_like(x_ref)
        z_ref[...] = jnp.zeros_like(z_ref)

    def rnorm(f):
        # chnorm with mean-centering folded into the pre-centered weights:
        # only the rsqrt scaling remains (XLU reduce + EUP rsqrt).
        return f * lax.rsqrt(jnp.sum(f * f, axis=-1, keepdims=True) + EPS)

    def row_body(r, carry):
        x, z = carry
        fh_row = fhid_ref[r]                     # one wide lane-dense load per row
        z_parts = []
        for p in range(pack):                    # unrolled: pack steps per output row
            for j in range(n_hid_lyr):           # unrolled hidden-layer loop (L small)
                off = (p * n_hid_lyr + j) * nfeat_hid
                f_hid = fh_row[:, off:off + nfeat_hid]
                aj = _relu(rnorm(jnp.dot(x, kxa_ref[j],
                                         preferred_element_type=jnp.float32)))
                z = z + h * (aj + f_hid)
                qi = _relu(rnorm(jnp.dot(z, kq_ref[j],
                                         preferred_element_type=jnp.float32)))
                x = x - h * qi
            z_parts.append(z)
        # single lane-dense store of `pack` steps (avoids masked vst.msk stores)
        zout_ref[r] = z_parts[0] if pack == 1 else jnp.concatenate(z_parts, axis=-1)
        return x, z

    x, z = lax.fori_loop(0, rows, row_body, (x_ref[...], z_ref[...]),
                         unroll=unroll)
    x_ref[...] = x
    z_ref[...] = z


def _num_batch_shards(nb_pad):
    # Shard the (independent) batch dim across TensorCores only on generations
    # with 2 TCs behind one device (v4/v5p megacore, v7x). On single-TC chips a
    # parallel axis would just serialize the latency-bound recurrence twice.
    try:
        kind = jax.devices()[0].device_kind.lower()
    except Exception:
        return 1
    two_core = ("v4" in kind) or ("v5p" in kind) or ("v7" in kind)
    return 2 if (two_core and nb_pad % (2 * _SUBLANE) == 0) else 1


def hnet_forward(frc, K, wopen, wclose, h, *, max_chunk=512,
                 vmem_budget_bytes=None, num_batch_shards=None):
    frc = frc.astype(jnp.float32)
    K = K.astype(jnp.float32)
    wopen = wopen.astype(jnp.float32)
    wclose = wclose.astype(jnp.float32)

    nbatch, nfeat_frc, nseq = frc.shape
    nfeat_hid, nfeat_in, n_hid_lyr = K.shape
    hi = lax.Precision.HIGHEST

    # ---- per-generation VMEM budget / limit ----
    try:
        vmem_cap = int(pltpu.get_tpu_info().vmem_capacity_bytes)
    except Exception:
        vmem_cap = 64 << 20                       # conservative (v7x per-TC VMEM)
    if vmem_budget_bytes is None:
        vmem_budget_bytes = max(4 << 20, vmem_cap // 8)
    vmem_limit_bytes = int(min(vmem_cap // 2, 64 << 20))

    # ---- batch padding (real sublane/MXU M dim) and optional 2-TC sharding ----
    nb_pad = _pad_to(nbatch, _SUBLANE)
    if num_batch_shards is None:
        num_batch_shards = _num_batch_shards(nb_pad)
    if num_batch_shards < 1 or nb_pad % (num_batch_shards * _SUBLANE) != 0:
        num_batch_shards = 1
    nb_shard = nb_pad // num_batch_shards

    # ---- hoisted, non-recurrent forcing path (all (seq, layer) pairs at once) ----
    frc_t = jnp.transpose(frc, (2, 0, 1))                     # (S, Nb, NfFrc)
    frc_next = jnp.concatenate(
        [frc_t[1:], jnp.zeros((1, nbatch, nfeat_frc), jnp.float32)], axis=0)

    # Fi_j = alpha_j * Frc[:, :, i] + beta_j * Fip   (Fip = 0 on the last step)
    alphas, betas = [], []
    a, b = 1.0, 0.0
    for j in range(n_hid_lyr):
        a = (n_hid_lyr - j) / n_hid_lyr * a
        b = (n_hid_lyr - j) / n_hid_lyr * b + j / n_hid_lyr
        alphas.append(a)
        betas.append(b)
    alpha = jnp.asarray(alphas, jnp.float32)[None, :, None, None]
    beta = jnp.asarray(betas, jnp.float32)[None, :, None, None]

    fi_all = alpha * frc_t[:, None] + beta * frc_next[:, None]    # (S, L, Nb, Nf)
    fhid = _relu(_chnorm(jnp.einsum('sjbf,hf->sjbh', fi_all, wopen, precision=hi),
                         axis=-1))                                # (S, L, Nb, Nh)

    # ---- lane packing & padding-aware VMEM sizing ----
    pack = max(1, _LANE // nfeat_hid)             # sequence steps per 128-lane row

    fhid_row_bytes = 4 * _pad_to(nb_shard, _SUBLANE) * _pad_to(
        pack * n_hid_lyr * nfeat_hid, _LANE)
    zout_row_bytes = 4 * _pad_to(nb_shard, _SUBLANE) * _pad_to(pack * nfeat_hid, _LANE)
    k_bytes = 4 * n_hid_lyr * (
        _pad_to(nfeat_in, _SUBLANE) * _pad_to(nfeat_hid, _LANE)
        + _pad_to(nfeat_hid, _SUBLANE) * _pad_to(nfeat_in, _LANE))
    state_bytes = 4 * _pad_to(nb_shard, _SUBLANE) * (
        _pad_to(nfeat_in, _LANE) + _pad_to(nfeat_hid, _LANE))
    fixed_bytes = 2 * k_bytes + state_bytes            # double-buffered K + x/z scratch
    per_row_bytes = 2 * (fhid_row_bytes + zout_row_bytes)  # double-buffered streams

    rows_budget = max(1, (vmem_budget_bytes - fixed_bytes) // per_row_bytes)
    chunk = int(min(max_chunk, rows_budget * pack, _pad_to(nseq, pack)))
    chunk = max(pack, (chunk // pack) * pack)           # multiple of pack
    rows_per_chunk = chunk // pack
    num_chunks = pl.cdiv(nseq, chunk)
    nseq_pad = num_chunks * chunk
    rows_total = nseq_pad // pack

    # pad batch (zero rows stay exactly zero through the recurrence) + sequence tail
    if nb_pad != nbatch:
        fhid = jnp.concatenate(
            [fhid, jnp.zeros((nseq, n_hid_lyr, nb_pad - nbatch, nfeat_hid),
                             jnp.float32)], axis=2)
    if nseq_pad != nseq:
        fhid = jnp.concatenate(
            [fhid, jnp.zeros((nseq_pad - nseq, n_hid_lyr, nb_pad, nfeat_hid),
                             jnp.float32)], axis=0)

    # (S, L, Nbp, Nh) -> (rows, Nbp, pack*L*Nh): one lane-dense load per row in-kernel
    fhid_packed = jnp.transpose(fhid, (0, 2, 1, 3)).reshape(
        nseq_pad, nb_pad, n_hid_lyr * nfeat_hid)
    fhid_packed = jnp.transpose(
        fhid_packed.reshape(rows_total, pack, nb_pad, n_hid_lyr * nfeat_hid),
        (0, 2, 1, 3)).reshape(rows_total, nb_pad, pack * n_hid_lyr * nfeat_hid)

    # K in both layouts, pre-centered over the matmul OUTPUT axis so the in-kernel
    # chnorm needs no mean subtraction (mean(x@W, -1) == x @ mean(W, -1)).
    kxa = jnp.transpose(K, (2, 1, 0))                   # (L, NfeatIn, NfeatHid)
    kxa = kxa - jnp.mean(kxa, axis=-1, keepdims=True)
    kq = jnp.transpose(K, (2, 0, 1))                    # (L, NfeatHid, NfeatIn)
    kq = kq - jnp.mean(kq, axis=-1, keepdims=True)

    unroll = 2 if pack >= 2 else 4
    unroll = max(1, min(unroll, rows_per_chunk))

    kernel = functools.partial(
        hnet_recurrent_kernel, rows=rows_per_chunk, pack=pack,
        n_hid_lyr=n_hid_lyr, nfeat_hid=nfeat_hid, h=float(h), unroll=unroll)

    z_rows = pl.pallas_call(
        kernel,
        out_shape=jax.ShapeDtypeStruct((rows_total, nb_pad, pack * nfeat_hid),
                                       jnp.float32),
        grid_spec=pltpu.PrefetchScalarGridSpec(
            num_scalar_prefetch=0,
            grid=(num_batch_shards, num_chunks),
            in_specs=[
                pl.BlockSpec((rows_per_chunk, nb_shard,
                              pack * n_hid_lyr * nfeat_hid),
                             lambda b, c: (c, b, 0)),
                pl.BlockSpec((n_hid_lyr, nfeat_in, nfeat_hid),
                             lambda b, c: (0, 0, 0)),
                pl.BlockSpec((n_hid_lyr, nfeat_hid, nfeat_in),
                             lambda b, c: (0, 0, 0)),
            ],
            out_specs=pl.BlockSpec((rows_per_chunk, nb_shard, pack * nfeat_hid),
                                   lambda b, c: (c, b, 0)),
            scratch_shapes=[
                pltpu.VMEM((nb_shard, nfeat_in), jnp.float32),    # x state
                pltpu.VMEM((nb_shard, nfeat_hid), jnp.float32),   # z state
            ],
        ),
        compiler_params=pltpu.CompilerParams(
            dimension_semantics=("parallel", "arbitrary"),  # batch shards / sequence
            vmem_limit_bytes=vmem_limit_bytes,
        ),
    )(fhid_packed, kxa, kq)

    # unpack (rows, Nbp, pack*Nh) -> (Nseq, Nb, Nh), then deferred lane-dense GEMM
    z_seq = jnp.transpose(z_rows.reshape(rows_total, nb_pad, pack, nfeat_hid),
                          (0, 2, 1, 3)).reshape(nseq_pad, nb_pad, nfeat_hid)
    z_seq = z_seq[:nseq, :nbatch]
    y = jnp.einsum('sbh,oh->bos', z_seq, wclose, precision=hi)
    return y                                            # (Nbatch, Nout, Nseq)


def hnet_reference(frc, K, wopen, wclose, h):
    """Pure-JAX transcription of the PyTorch forward, for verification."""
    nbatch, nfeat_frc, nseq = frc.shape
    nfeat_hid, nfeat_in, n_hid_lyr = K.shape
    hi = lax.Precision.HIGHEST
    x = jnp.zeros((nbatch, nfeat_in), jnp.float32)
    z = jnp.zeros((nbatch, nfeat_hid), jnp.float32)
    ys = []
    for i in range(nseq):
        fi = frc[:, :, i]
        fip = frc[:, :, i + 1] if (i + 1 < nseq) else 0.0
        for j in range(n_hid_lyr):
            fi = ((n_hid_lyr - j) * fi + j * fip) / n_hid_lyr
            f_hid = _relu(_chnorm(jnp.dot(fi, wopen.T, precision=hi)))
            aj = _relu(_chnorm(jnp.dot(x, K[:, :, j].T, precision=hi)))
            z = z + h * (aj + f_hid)
            qi = _relu(_chnorm(jnp.dot(z, K[:, :, j], precision=hi)))
            x = x - h * qi
        ys.append(jnp.dot(z, wclose.T, precision=hi))
    return jnp.stack(ys, axis=2)


if __name__ == "__main__":
    # Small shapes consistent with the module's forward pass.
    Nbatch, NfeatFrc, Nseq = 2, 8, 8
    NfeatHid, NfeatIn, NHidLyr = 32, 16, 3
    Nout = 4
    h = 0.1

    key = jax.random.PRNGKey(0)
    k1, k2, k3, k4 = jax.random.split(key, 4)
    Frc = jax.random.normal(k1, (Nbatch, NfeatFrc, Nseq), jnp.float32)
    K = 0.3 * jax.random.normal(k2, (NfeatHid, NfeatIn, NHidLyr), jnp.float32)
    Wopen = 0.3 * jax.random.normal(k3, (NfeatHid, NfeatFrc), jnp.float32)
    Wclose = 0.3 * jax.random.normal(k4, (Nout, NfeatHid), jnp.float32)

    y = jax.block_until_ready(hnet_forward(Frc, K, Wopen, Wclose, h))
    y_ref = jax.block_until_ready(hnet_reference(Frc, K, Wopen, Wclose, h))

    assert y.shape == (Nbatch, Nout, Nseq), y.shape
    max_err = float(jnp.max(jnp.abs(y - y_ref)))
    assert jnp.allclose(y, y_ref, rtol=1e-4, atol=1e-4), max_err

    print("KERNEL_OK")
</pallas_src>

<mosaic_0001>
module attributes {stable_mosaic.version = 11 : i64} {
  func.func @hnet_recurrent_kernel(%arg0: i32, %arg1: i32, %arg2: memref<2x8x384xf32, #tpu.memory_space<vmem>>, %arg3: memref<3x16x32xf32, #tpu.memory_space<vmem>>, %arg4: memref<3x32x16xf32, #tpu.memory_space<vmem>>, %arg5: memref<2x8x128xf32, #tpu.memory_space<vmem>>, %arg6: memref<8x16xf32, #tpu.memory_space<vmem>>, %arg7: memref<8x32xf32, #tpu.memory_space<vmem>>) attributes {dimension_semantics = [#tpu.dimension_semantics<parallel>, #tpu.dimension_semantics<arbitrary>], iteration_bounds = array<i64: 1, 1>, scalar_prefetch = 0 : i64, scratch_operands = 2 : i64, tpu.core_type = #tpu.core_type<tc>, window_params = [{transform_indices = @transform_0, window_bounds = array<i64: 2, 8, 384>}, {pipeline_mode = #tpu.pipeline_mode<synchronous>, transform_indices = @transform_1, window_bounds = array<i64: 3, 16, 32>}, {pipeline_mode = #tpu.pipeline_mode<synchronous>, transform_indices = @transform_2, window_bounds = array<i64: 3, 32, 16>}, {transform_indices = @transform_3, window_bounds = array<i64: 2, 8, 128>}]} {
    %c0_i32 = arith.constant 0 : i32
    %0 = arith.cmpi eq, %arg1, %c0_i32 : i32
    %1 = arith.extui %0 : i1 to i32
    %c0_i32_0 = arith.constant 0 : i32
    %2 = arith.cmpi ne, %1, %c0_i32_0 : i32
    scf.if %2 {
      %cst_398 = arith.constant 0.000000e+00 : f32
      %839 = vector.broadcast %cst_398 : f32 to vector<8x16xf32>
      %c0_399 = arith.constant 0 : index
      %c0_400 = arith.constant 0 : index
      %840 = vector.load %arg6[%c0_399, %c0_400] : memref<8x16xf32, #tpu.memory_space<vmem>>, vector<8x16xf32>
      tpu.vector_store %arg6[%c0_399, %c0_400], %839 {strides = array<i32>} : memref<8x16xf32, #tpu.memory_space<vmem>>, vector<8x16xf32>,
      %cst_401 = arith.constant 0.000000e+00 : f32
      %841 = vector.broadcast %cst_401 : f32 to vector<8x32xf32>
      %c0_402 = arith.constant 0 : index
      %c0_403 = arith.constant 0 : index
      %842 = vector.load %arg7[%c0_402, %c0_403] : memref<8x32xf32, #tpu.memory_space<vmem>>, vector<8x32xf32>
      tpu.vector_store %arg7[%c0_402, %c0_403], %841 {strides = array<i32>} : memref<8x32xf32, #tpu.memory_space<vmem>>, vector<8x32xf32>,
    } else {
    }
    %c0 = arith.constant 0 : index
    %c0_1 = arith.constant 0 : index
    %3 = vector.load %arg6[%c0, %c0_1] : memref<8x16xf32, #tpu.memory_space<vmem>>, vector<8x16xf32>
    %c0_2 = arith.constant 0 : index
    %c0_3 = arith.constant 0 : index
    %4 = vector.load %arg7[%c0_2, %c0_3] : memref<8x32xf32, #tpu.memory_space<vmem>>, vector<8x32xf32>
    %c0_i32_4 = arith.constant 0 : i32
    %5 = arith.index_cast %c0_i32_4 : i32 to index
    %c0_5 = arith.constant 0 : index
    %c0_6 = arith.constant 0 : index
    %6 = vector.load %arg2[%5, %c0_5, %c0_6] : memref<2x8x384xf32, #tpu.memory_space<vmem>>, vector<1x8x384xf32>
    %7 = vector.shape_cast %6 : vector<1x8x384xf32> to vector<8x384xf32>
    %8 = vector.extract_strided_slice %7 {offsets = [0, 0], sizes = [8, 32], strides = [1, 1]} : vector<8x384xf32> to vector<8x32xf32>
    %c0_7 = arith.constant 0 : index
    %c0_8 = arith.constant 0 : index
    %c0_9 = arith.constant 0 : index
    %9 = vector.load %arg3[%c0_7, %c0_8, %c0_9] : memref<3x16x32xf32, #tpu.memory_space<vmem>>, vector<1x16x32xf32>
    %10 = vector.shape_cast %9 : vector<1x16x32xf32> to vector<16x32xf32>
    %cst = arith.constant dense<0.000000e+00> : vector<8x32xf32>
    %11 = tpu.matmul %3, %10, %cst {dimension_numbers = #tpu.dot_dimension_numbers<[1], [0], [0], [1], [0, 0, 1, 1], [], []>} : vector<8x16xf32>, vector<16x32xf32>, vector<8x32xf32> -> vector<8x32xf32>
    %12 = arith.mulf %11, %11 : vector<8x32xf32>
    %cst_10 = arith.constant dense<0.000000e+00> : vector<8xf32>
    %13 = vector.multi_reduction <add>, %12, %cst_10 [1] : vector<8x32xf32> to vector<8xf32>
    %14 = vector.shape_cast %13 : vector<8xf32> to vector<8x1xf32>
    %cst_11 = arith.constant 1.000000e-03 : f32
    %15 = vector.broadcast %cst_11 : f32 to vector<8x1xf32>
    %16 = arith.addf %14, %15 : vector<8x1xf32>
    %17 = math.rsqrt %16 : vector<8x1xf32>
    %18 = vector.broadcast %17 : vector<8x1xf32> to vector<8x32xf32>
    %19 = arith.mulf %11, %18 : vector<8x32xf32>
    %cst_12 = arith.constant 0.000000e+00 : f32
    %20 = vector.broadcast %cst_12 : f32 to vector<8x32xf32>
    %21 = arith.maximumf %19, %20 : vector<8x32xf32>
    %22 = arith.addf %21, %8 : vector<8x32xf32>
    %cst_13 = arith.constant 1.000000e-01 : f32
    %23 = vector.broadcast %cst_13 : f32 to vector<8x32xf32>
    %24 = arith.mulf %23, %22 : vector<8x32xf32>
    %25 = arith.addf %4, %24 : vector<8x32xf32>
    %c0_14 = arith.constant 0 : index
    %c0_15 = arith.constant 0 : index
    %c0_16 = arith.constant 0 : index
    %26 = vector.load %arg4[%c0_14, %c0_15, %c0_16] : memref<3x32x16xf32, #tpu.memory_space<vmem>>, vector<1x32x16xf32>
    %27 = vector.shape_cast %26 : vector<1x32x16xf32> to vector<32x16xf32>
    %cst_17 = arith.constant dense<0.000000e+00> : vector<8x16xf32>
    %28 = tpu.matmul %25, %27, %cst_17 {dimension_numbers = #tpu.dot_dimension_numbers<[1], [0], [0], [1], [0, 0, 1, 1], [], []>} : vector<8x32xf32>, vector<32x16xf32>, vector<8x16xf32> -> vector<8x16xf32>
    %29 = arith.mulf %28, %28 : vector<8x16xf32>
    %cst_18 = arith.constant dense<0.000000e+00> : vector<8xf32>
    %30 = vector.multi_reduction <add>, %29, %cst_18 [1] : vector<8x16xf32> to vector<8xf32>
    %31 = vector.shape_cast %30 : vector<8xf32> to vector<8x1xf32>
    %cst_19 = arith.constant 1.000000e-03 : f32
    %32 = vector.broadcast %cst_19 : f32 to vector<8x1xf32>
    %33 = arith.addf %31, %32 : vector<8x1xf32>
    %34 = math.rsqrt %33 : vector<8x1xf32>
    %35 = vector.broadcast %34 : vector<8x1xf32> to vector<8x16xf32>
    %36 = arith.mulf %28, %35 : vector<8x16xf32>
    %cst_20 = arith.constant 0.000000e+00 : f32
    %37 = vector.broadcast %cst_20 : f32 to vector<8x16xf32>
    %38 = arith.maximumf %36, %37 : vector<8x16xf32>
    %cst_21 = arith.constant 1.000000e-01 : f32
    %39 = vector.broadcast %cst_21 : f32 to vector<8x16xf32>
    %40 = arith.mulf %39, %38 : vector<8x16xf32>
    %41 = arith.subf %3, %40 : vector<8x16xf32>
    %42 = vector.extract_strided_slice %7 {offsets = [0, 32], sizes = [8, 32], strides = [1, 1]} : vector<8x384xf32> to vector<8x32xf32>
    %c1 = arith.constant 1 : index
    %c0_22 = arith.constant 0 : index
    %c0_23 = arith.constant 0 : index
    %43 = vector.load %arg3[%c1, %c0_22, %c0_23] : memref<3x16x32xf32, #tpu.memory_space<vmem>>, vector<1x16x32xf32>
    %44 = vector.shape_cast %43 : vector<1x16x32xf32> to vector<16x32xf32>
    %cst_24 = arith.constant dense<0.000000e+00> : vector<8x32xf32>
    %45 = tpu.matmul %41, %44, %cst_24 {dimension_numbers = #tpu.dot_dimension_numbers<[1], [0], [0], [1], [0, 0, 1, 1], [], []>} : vector<8x16xf32>, vector<16x32xf32>, vector<8x32xf32> -> vector<8x32xf32>
    %46 = arith.mulf %45, %45 : vector<8x32xf32>
    %cst_25 = arith.constant dense<0.000000e+00> : vector<8xf32>
    %47 = vector.multi_reduction <add>, %46, %cst_25 [1] : vector<8x32xf32> to vector<8xf32>
    %48 = vector.shape_cast %47 : vector<8xf32> to vector<8x1xf32>
    %cst_26 = arith.constant 1.000000e-03 : f32
    %49 = vector.broadcast %cst_26 : f32 to vector<8x1xf32>
    %50 = arith.addf %48, %49 : vector<8x1xf32>
    %51 = math.rsqrt %50 : vector<8x1xf32>
    %52 = vector.broadcast %51 : vector<8x1xf32> to vector<8x32xf32>
    %53 = arith.mulf %45, %52 : vector<8x32xf32>
    %cst_27 = arith.constant 0.000000e+00 : f32
    %54 = vector.broadcast %cst_27 : f32 to vector<8x32xf32>
    %55 = arith.maximumf %53, %54 : vector<8x32xf32>
    %56 = arith.addf %55, %42 : vector<8x32xf32>
    %cst_28 = arith.constant 1.000000e-01 : f32
    %57 = vector.broadcast %cst_28 : f32 to vector<8x32xf32>
    %58 = arith.mulf %57, %56 : vector<8x32xf32>
    %59 = arith.addf %25, %58 : vector<8x32xf32>
    %c1_29 = arith.constant 1 : index
    %c0_30 = arith.constant 0 : index
    %c0_31 = arith.constant 0 : index
    %60 = vector.load %arg4[%c1_29, %c0_30, %c0_31] : memref<3x32x16xf32, #tpu.memory_space<vmem>>, vector<1x32x16xf32>
    %61 = vector.shape_cast %60 : vector<1x32x16xf32> to vector<32x16xf32>
    %cst_32 = arith.constant dense<0.000000e+00> : vector<8x16xf32>
    %62 = tpu.matmul %59, %61, %cst_32 {dimension_numbers = #tpu.dot_dimension_numbers<[1], [0], [0], [1], [0, 0, 1, 1], [], []>} : vector<8x32xf32>, vector<32x16xf32>, vector<8x16xf32> -> vector<8x16xf32>
    %63 = arith.mulf %62, %62 : vector<8x16xf32>
    %cst_33 = arith.constant dense<0.000000e+00> : vector<8xf32>
    %64 = vector.multi_reduction <add>, %63, %cst_33 [1] : vector<8x16xf32> to vector<8xf32>
    %65 = vector.shape_cast %64 : vector<8xf32> to vector<8x1xf32>
    %cst_34 = arith.constant 1.000000e-03 : f32
    %66 = vector.broadcast %cst_34 : f32 to vector<8x1xf32>
    %67 = arith.addf %65, %66 : vector<8x1xf32>
    %68 = math.rsqrt %67 : vector<8x1xf32>
    %69 = vector.broadcast %68 : vector<8x1xf32> to vector<8x16xf32>
    %70 = arith.mulf %62, %69 : vector<8x16xf32>
    %cst_35 = arith.constant 0.000000e+00 : f32
    %71 = vector.broadcast %cst_35 : f32 to vector<8x16xf32>
    %72 = arith.maximumf %70, %71 : vector<8x16xf32>
    %cst_36 = arith.constant 1.000000e-01 : f32
    %73 = vector.broadcast %cst_36 : f32 to vector<8x16xf32>
    %74 = arith.mulf %73, %72 : vector<8x16xf32>
    %75 = arith.subf %41, %74 : vector<8x16xf32>
    %76 = vector.extract_strided_slice %7 {offsets = [0, 64], sizes = [8, 32], strides = [1, 1]} : vector<8x384xf32> to vector<8x32xf32>
    %c2 = arith.constant 2 : index
    %c0_37 = arith.constant 0 : index
    %c0_38 = arith.constant 0 : index
    %77 = vector.load %arg3[%c2, %c0_37, %c0_38] : memref<3x16x32xf32, #tpu.memory_space<vmem>>, vector<1x16x32xf32>
    %78 = vector.shape_cast %77 : vector<1x16x32xf32> to vector<16x32xf32>
    %cst_39 = arith.constant dense<0.000000e+00> : vector<8x32xf32>
    %79 = tpu.matmul %75, %78, %cst_39 {dimension_numbers = #tpu.dot_dimension_numbers<[1], [0], [0], [1], [0, 0, 1, 1], [], []>} : vector<8x16xf32>, vector<16x32xf32>, vector<8x32xf32> -> vector<8x32xf32>
    %80 = arith.mulf %79, %79 : vector<8x32xf32>
    %cst_40 = arith.constant dense<0.000000e+00> : vector<8xf32>
    %81 = vector.multi_reduction <add>, %80, %cst_40 [1] : vector<8x32xf32> to vector<8xf32>
    %82 = vector.shape_cast %81 : vector<8xf32> to vector<8x1xf32>
    %cst_41 = arith.constant 1.000000e-03 : f32
    %83 = vector.broadcast %cst_41 : f32 to vector<8x1xf32>
    %84 = arith.addf %82, %83 : vector<8x1xf32>
    %85 = math.rsqrt %84 : vector<8x1xf32>
    %86 = vector.broadcast %85 : vector<8x1xf32> to vector<8x32xf32>
    %87 = arith.mulf %79, %86 : vector<8x32xf32>
    %cst_42 = arith.constant 0.000000e+00 : f32
    %88 = vector.broadcast %cst_42 : f32 to vector<8x32xf32>
    %89 = arith.maximumf %87, %88 : vector<8x32xf32>
    %90 = arith.addf %89, %76 : vector<8x32xf32>
    %cst_43 = arith.constant 1.000000e-01 : f32
    %91 = vector.broadcast %cst_43 : f32 to vector<8x32xf32>
    %92 = arith.mulf %91, %90 : vector<8x32xf32>
    %93 = arith.addf %59, %92 : vector<8x32xf32>
    %c2_44 = arith.constant 2 : index
    %c0_45 = arith.constant 0 : index
    %c0_46 = arith.constant 0 : index
    %94 = vector.load %arg4[%c2_44, %c0_45, %c0_46] : memref<3x32x16xf32, #tpu.memory_space<vmem>>, vector<1x32x16xf32>
    %95 = vector.shape_cast %94 : vector<1x32x16xf32> to vector<32x16xf32>
    %cst_47 = arith.constant dense<0.000000e+00> : vector<8x16xf32>
    %96 = tpu.matmul %93, %95, %cst_47 {dimension_numbers = #tpu.dot_dimension_numbers<[1], [0], [0], [1], [0, 0, 1, 1], [], []>} : vector<8x32xf32>, vector<32x16xf32>, vector<8x16xf32> -> vector<8x16xf32>
    %97 = arith.mulf %96, %96 : vector<8x16xf32>
    %cst_48 = arith.constant dense<0.000000e+00> : vector<8xf32>
    %98 = vector.multi_reduction <add>, %97, %cst_48 [1] : vector<8x16xf32> to vector<8xf32>
    %99 = vector.shape_cast %98 : vector<8xf32> to vector<8x1xf32>
    %cst_49 = arith.constant 1.000000e-03 : f32
    %100 = vector.broadcast %cst_49 : f32 to vector<8x1xf32>
    %101 = arith.addf %99, %100 : vector<8x1xf32>
    %102 = math.rsqrt %101 : vector<8x1xf32>
    %103 = vector.broadcast %102 : vector<8x1xf32> to vector<8x16xf32>
    %104 = arith.mulf %96, %103 : vector<8x16xf32>
    %cst_50 = arith.constant 0.000000e+00 : f32
    %105 = vector.broadcast %cst_50 : f32 to vector<8x16xf32>
    %106 = arith.maximumf %104, %105 : vector<8x16xf32>
    %cst_51 = arith.constant 1.000000e-01 : f32
    %107 = vector.broadcast %cst_51 : f32 to vector<8x16xf32>
    %108 = arith.mulf %107, %106 : vector<8x16xf32>
    %109 = arith.subf %75, %108 : vector<8x16xf32>
    %110 = vector.extract_strided_slice %7 {offsets = [0, 96], sizes = [8, 32], strides = [1, 1]} : vector<8x384xf32> to vector<8x32xf32>
    %c0_52 = arith.constant 0 : index
    %c0_53 = arith.constant 0 : index
    %c0_54 = arith.constant 0 : index
    %111 = vector.load %arg3[%c0_52, %c0_53, %c0_54] : memref<3x16x32xf32, #tpu.memory_space<vmem>>, vector<1x16x32xf32>
    %112 = vector.shape_cast %111 : vector<1x16x32xf32> to vector<16x32xf32>
    %cst_55 = arith.constant dense<0.000000e+00> : vector<8x32xf32>
    %113 = tpu.matmul %109, %112, %cst_55 {dimension_numbers = #tpu.dot_dimension_numbers<[1], [0], [0], [1], [0, 0, 1, 1], [], []>} : vector<8x16xf32>, vector<16x32xf32>, vector<8x32xf32> -> vector<8x32xf32>
    %114 = arith.mulf %113, %113 : vector<8x32xf32>
    %cst_56 = arith.constant dense<0.000000e+00> : vector<8xf32>
    %115 = vector.multi_reduction <add>, %114, %cst_56 [1] : vector<8x32xf32> to vector<8xf32>
    %116 = vector.shape_cast %115 : vector<8xf32> to vector<8x1xf32>
    %cst_57 = arith.constant 1.000000e-03 : f32
    %117 = vector.broadcast %cst_57 : f32 to vector<8x1xf32>
    %118 = arith.addf %116, %117 : vector<8x1xf32>
    %119 = math.rsqrt %118 : vector<8x1xf32>
    %120 = vector.broadcast %119 : vector<8x1xf32> to vector<8x32xf32>
    %121 = arith.mulf %113, %120 : vector<8x32xf32>
    %cst_58 = arith.constant 0.000000e+00 : f32
    %122 = vector.broadcast %cst_58 : f32 to vector<8x32xf32>
    %123 = arith.maximumf %121, %122 : vector<8x32xf32>
    %124 = arith.addf %123, %110 : vector<8x32xf32>
    %cst_59 = arith.constant 1.000000e-01 : f32
    %125 = vector.broadcast %cst_59 : f32 to vector<8x32xf32>
    %126 = arith.mulf %125, %124 : vector<8x32xf32>
    %127 = arith.addf %93, %126 : vector<8x32xf32>
    %c0_60 = arith.constant 0 : index
    %c0_61 = arith.constant 0 : index
    %c0_62 = arith.constant 0 : index
    %128 = vector.load %arg4[%c0_60, %c0_61, %c0_62] : memref<3x32x16xf32, #tpu.memory_space<vmem>>, vector<1x32x16xf32>
    %129 = vector.shape_cast %128 : vector<1x32x16xf32> to vector<32x16xf32>
    %cst_63 = arith.constant dense<0.000000e+00> : vector<8x16xf32>
    %130 = tpu.matmul %127, %129, %cst_63 {dimension_numbers = #tpu.dot_dimension_numbers<[1], [0], [0], [1], [0, 0, 1, 1], [], []>} : vector<8x32xf32>, vector<32x16xf32>, vector<8x16xf32> -> vector<8x16xf32>
    %131 = arith.mulf %130, %130 : vector<8x16xf32>
    %cst_64 = arith.constant dense<0.000000e+00> : vector<8xf32>
    %132 = vector.multi_reduction <add>, %131, %cst_64 [1] : vector<8x16xf32> to vector<8xf32>
    %133 = vector.shape_cast %132 : vector<8xf32> to vector<8x1xf32>
    %cst_65 = arith.constant 1.000000e-03 : f32
    %134 = vector.broadcast %cst_65 : f32 to vector<8x1xf32>
    %135 = arith.addf %133, %134 : vector<8x1xf32>
    %136 = math.rsqrt %135 : vector<8x1xf32>
    %137 = vector.broadcast %136 : vector<8x1xf32> to vector<8x16xf32>
    %138 = arith.mulf %130, %137 : vector<8x16xf32>
    %cst_66 = arith.constant 0.000000e+00 : f32
    %139 = vector.broadcast %cst_66 : f32 to vector<8x16xf32>
    %140 = arith.maximumf %138, %139 : vector<8x16xf32>
    %cst_67 = arith.constant 1.000000e-01 : f32
    %141 = vector.broadcast %cst_67 : f32 to vector<8x16xf32>
    %142 = arith.mulf %141, %140 : vector<8x16xf32>
    %143 = arith.subf %109, %142 : vector<8x16xf32>
    %144 = vector.extract_strided_slice %7 {offsets = [0, 128], sizes = [8, 32], strides = [1, 1]} : vector<8x384xf32> to vector<8x32xf32>
    %c1_68 = arith.constant 1 : index
    %c0_69 = arith.constant 0 : index
    %c0_70 = arith.constant 0 : index
    %145 = vector.load %arg3[%c1_68, %c0_69, %c0_70] : memref<3x16x32xf32, #tpu.memory_space<vmem>>, vector<1x16x32xf32>
    %146 = vector.shape_cast %145 : vector<1x16x32xf32> to vector<16x32xf32>
    %cst_71 = arith.constant dense<0.000000e+00> : vector<8x32xf32>
    %147 = tpu.matmul %143, %146, %cst_71 {dimension_numbers = #tpu.dot_dimension_numbers<[1], [0], [0], [1], [0, 0, 1, 1], [], []>} : vector<8x16xf32>, vector<16x32xf32>, vector<8x32xf32> -> vector<8x32xf32>
    %148 = arith.mulf %147, %147 : vector<8x32xf32>
    %cst_72 = arith.constant dense<0.000000e+00> : vector<8xf32>
    %149 = vector.multi_reduction <add>, %148, %cst_72 [1] : vector<8x32xf32> to vector<8xf32>
    %150 = vector.shape_cast %149 : vector<8xf32> to vector<8x1xf32>
    %cst_73 = arith.constant 1.000000e-03 : f32
    %151 = vector.broadcast %cst_73 : f32 to vector<8x1xf32>
    %152 = arith.addf %150, %151 : vector<8x1xf32>
    %153 = math.rsqrt %152 : vector<8x1xf32>
    %154 = vector.broadcast %153 : vector<8x1xf32> to vector<8x32xf32>
    %155 = arith.mulf %147, %154 : vector<8x32xf32>
    %cst_74 = arith.constant 0.000000e+00 : f32
    %156 = vector.broadcast %cst_74 : f32 to vector<8x32xf32>
    %157 = arith.maximumf %155, %156 : vector<8x32xf32>
    %158 = arith.addf %157, %144 : vector<8x32xf32>
    %cst_75 = arith.constant 1.000000e-01 : f32
    %159 = vector.broadcast %cst_75 : f32 to vector<8x32xf32>
    %160 = arith.mulf %159, %158 : vector<8x32xf32>
    %161 = arith.addf %127, %160 : vector<8x32xf32>
    %c1_76 = arith.constant 1 : index
    %c0_77 = arith.constant 0 : index
    %c0_78 = arith.constant 0 : index
    %162 = vector.load %arg4[%c1_76, %c0_77, %c0_78] : memref<3x32x16xf32, #tpu.memory_space<vmem>>, vector<1x32x16xf32>
    %163 = vector.shape_cast %162 : vector<1x32x16xf32> to vector<32x16xf32>
    %cst_79 = arith.constant dense<0.000000e+00> : vector<8x16xf32>
    %164 = tpu.matmul %161, %163, %cst_79 {dimension_numbers = #tpu.dot_dimension_numbers<[1], [0], [0], [1], [0, 0, 1, 1], [], []>} : vector<8x32xf32>, vector<32x16xf32>, vector<8x16xf32> -> vector<8x16xf32>
    %165 = arith.mulf %164, %164 : vector<8x16xf32>
    %cst_80 = arith.constant dense<0.000000e+00> : vector<8xf32>
    %166 = vector.multi_reduction <add>, %165, %cst_80 [1] : vector<8x16xf32> to vector<8xf32>
    %167 = vector.shape_cast %166 : vector<8xf32> to vector<8x1xf32>
    %cst_81 = arith.constant 1.000000e-03 : f32
    %168 = vector.broadcast %cst_81 : f32 to vector<8x1xf32>
    %169 = arith.addf %167, %168 : vector<8x1xf32>
    %170 = math.rsqrt %169 : vector<8x1xf32>
    %171 = vector.broadcast %170 : vector<8x1xf32> to vector<8x16xf32>
    %172 = arith.mulf %164, %171 : vector<8x16xf32>
    %cst_82 = arith.constant 0.000000e+00 : f32
    %173 = vector.broadcast %cst_82 : f32 to vector<8x16xf32>
    %174 = arith.maximumf %172, %173 : vector<8x16xf32>
    %cst_83 = arith.constant 1.000000e-01 : f32
    %175 = vector.broadcast %cst_83 : f32 to vector<8x16xf32>
    %176 = arith.mulf %175, %174 : vector<8x16xf32>
    %177 = arith.subf %143, %176 : vector<8x16xf32>
    %178 = vector.extract_strided_slice %7 {offsets = [0, 160], sizes = [8, 32], strides = [1, 1]} : vector<8x384xf32> to vector<8x32xf32>
    %c2_84 = arith.constant 2 : index
    %c0_85 = arith.constant 0 : index
    %c0_86 = arith.constant 0 : index
    %179 = vector.load %arg3[%c2_84, %c0_85, %c0_86] : memref<3x16x32xf32, #tpu.memory_space<vmem>>, vector<1x16x32xf32>
    %180 = vector.shape_cast %179 : vector<1x16x32xf32> to vector<16x32xf32>
    %cst_87 = arith.constant dense<0.000000e+00> : vector<8x32xf32>
    %181 = tpu.matmul %177, %180, %cst_87 {dimension_numbers = #tpu.dot_dimension_numbers<[1], [0], [0], [1], [0, 0, 1, 1], [], []>} : vector<8x16xf32>, vector<16x32xf32>, vector<8x32xf32> -> vector<8x32xf32>
    %182 = arith.mulf %181, %181 : vector<8x32xf32>
    %cst_88 = arith.constant dense<0.000000e+00> : vector<8xf32>
    %183 = vector.multi_reduction <add>, %182, %cst_88 [1] : vector<8x32xf32> to vector<8xf32>
    %184 = vector.shape_cast %183 : vector<8xf32> to vector<8x1xf32>
    %cst_89 = arith.constant 1.000000e-03 : f32
    %185 = vector.broadcast %cst_89 : f32 to vector<8x1xf32>
    %186 = arith.addf %184, %185 : vector<8x1xf32>
    %187 = math.rsqrt %186 : vector<8x1xf32>
    %188 = vector.broadcast %187 : vector<8x1xf32> to vector<8x32xf32>
    %189 = arith.mulf %181, %188 : vector<8x32xf32>
    %cst_90 = arith.constant 0.000000e+00 : f32
    %190 = vector.broadcast %cst_90 : f32 to vector<8x32xf32>
    %191 = arith.maximumf %189, %190 : vector<8x32xf32>
    %192 = arith.addf %191, %178 : vector<8x32xf32>
    %cst_91 = arith.constant 1.000000e-01 : f32
    %193 = vector.broadcast %cst_91 : f32 to vector<8x32xf32>
    %194 = arith.mulf %193, %192 : vector<8x32xf32>
    %195 = arith.addf %161, %194 : vector<8x32xf32>
    %c2_92 = arith.constant 2 : index
    %c0_93 = arith.constant 0 : index
    %c0_94 = arith.constant 0 : index
    %196 = vector.load %arg4[%c2_92, %c0_93, %c0_94] : memref<3x32x16xf32, #tpu.memory_space<vmem>>, vector<1x32x16xf32>
    %197 = vector.shape_cast %196 : vector<1x32x16xf32> to vector<32x16xf32>
    %cst_95 = arith.constant dense<0.000000e+00> : vector<8x16xf32>
    %198 = tpu.matmul %195, %197, %cst_95 {dimension_numbers = #tpu.dot_dimension_numbers<[1], [0], [0], [1], [0, 0, 1, 1], [], []>} : vector<8x32xf32>, vector<32x16xf32>, vector<8x16xf32> -> vector<8x16xf32>
    %199 = arith.mulf %198, %198 : vector<8x16xf32>
    %cst_96 = arith.constant dense<0.000000e+00> : vector<8xf32>
    %200 = vector.multi_reduction <add>, %199, %cst_96 [1] : vector<8x16xf32> to vector<8xf32>
    %201 = vector.shape_cast %200 : vector<8xf32> to vector<8x1xf32>
    %cst_97 = arith.constant 1.000000e-03 : f32
    %202 = vector.broadcast %cst_97 : f32 to vector<8x1xf32>
    %203 = arith.addf %201, %202 : vector<8x1xf32>
    %204 = math.rsqrt %203 : vector<8x1xf32>
    %205 = vector.broadcast %204 : vector<8x1xf32> to vector<8x16xf32>
    %206 = arith.mulf %198, %205 : vector<8x16xf32>
    %cst_98 = arith.constant 0.000000e+00 : f32
    %207 = vector.broadcast %cst_98 : f32 to vector<8x16xf32>
    %208 = arith.maximumf %206, %207 : vector<8x16xf32>
    %cst_99 = arith.constant 1.000000e-01 : f32
    %209 = vector.broadcast %cst_99 : f32 to vector<8x16xf32>
    %210 = arith.mulf %209, %208 : vector<8x16xf32>
    %211 = arith.subf %177, %210 : vector<8x16xf32>
    %212 = vector.extract_strided_slice %7 {offsets = [0, 192], sizes = [8, 32], strides = [1, 1]} : vector<8x384xf32> to vector<8x32xf32>
    %c0_100 = arith.constant 0 : index
    %c0_101 = arith.constant 0 : index
    %c0_102 = arith.constant 0 : index
    %213 = vector.load %arg3[%c0_100, %c0_101, %c0_102] : memref<3x16x32xf32, #tpu.memory_space<vmem>>, vector<1x16x32xf32>
    %214 = vector.shape_cast %213 : vector<1x16x32xf32> to vector<16x32xf32>
    %cst_103 = arith.constant dense<0.000000e+00> : vector<8x32xf32>
    %215 = tpu.matmul %211, %214, %cst_103 {dimension_numbers = #tpu.dot_dimension_numbers<[1], [0], [0], [1], [0, 0, 1, 1], [], []>} : vector<8x16xf32>, vector<16x32xf32>, vector<8x32xf32> -> vector<8x32xf32>
    %216 = arith.mulf %215, %215 : vector<8x32xf32>
    %cst_104 = arith.constant dense<0.000000e+00> : vector<8xf32>
    %217 = vector.multi_reduction <add>, %216, %cst_104 [1] : vector<8x32xf32> to vector<8xf32>
    %218 = vector.shape_cast %217 : vector<8xf32> to vector<8x1xf32>
    %cst_105 = arith.constant 1.000000e-03 : f32
    %219 = vector.broadcast %cst_105 : f32 to vector<8x1xf32>
    %220 = arith.addf %218, %219 : vector<8x1xf32>
    %221 = math.rsqrt %220 : vector<8x1xf32>
    %222 = vector.broadcast %221 : vector<8x1xf32> to vector<8x32xf32>
    %223 = arith.mulf %215, %222 : vector<8x32xf32>
    %cst_106 = arith.constant 0.000000e+00 : f32
    %224 = vector.broadcast %cst_106 : f32 to vector<8x32xf32>
    %225 = arith.maximumf %223, %224 : vector<8x32xf32>
    %226 = arith.addf %225, %212 : vector<8x32xf32>
    %cst_107 = arith.constant 1.000000e-01 : f32
    %227 = vector.broadcast %cst_107 : f32 to vector<8x32xf32>
    %228 = arith.mulf %227, %226 : vector<8x32xf32>
    %229 = arith.addf %195, %228 : vector<8x32xf32>
    %c0_108 = arith.constant 0 : index
    %c0_109 = arith.constant 0 : index
    %c0_110 = arith.constant 0 : index
    %230 = vector.load %arg4[%c0_108, %c0_109, %c0_110] : memref<3x32x16xf32, #tpu.memory_space<vmem>>, vector<1x32x16xf32>
    %231 = vector.shape_cast %230 : vector<1x32x16xf32> to vector<32x16xf32>
    %cst_111 = arith.constant dense<0.000000e+00> : vector<8x16xf32>
    %232 = tpu.matmul %229, %231, %cst_111 {dimension_numbers = #tpu.dot_dimension_numbers<[1], [0], [0], [1], [0, 0, 1, 1], [], []>} : vector<8x32xf32>, vector<32x16xf32>, vector<8x16xf32> -> vector<8x16xf32>
    %233 = arith.mulf %232, %232 : vector<8x16xf32>
    %cst_112 = arith.constant dense<0.000000e+00> : vector<8xf32>
    %234 = vector.multi_reduction <add>, %233, %cst_112 [1] : vector<8x16xf32> to vector<8xf32>
    %235 = vector.shape_cast %234 : vector<8xf32> to vector<8x1xf32>
    %cst_113 = arith.constant 1.000000e-03 : f32
    %236 = vector.broadcast %cst_113 : f32 to vector<8x1xf32>
    %237 = arith.addf %235, %236 : vector<8x1xf32>
    %238 = math.rsqrt %237 : vector<8x1xf32>
    %239 = vector.broadcast %238 : vector<8x1xf32> to vector<8x16xf32>
    %240 = arith.mulf %232, %239 : vector<8x16xf32>
    %cst_114 = arith.constant 0.000000e+00 : f32
    %241 = vector.broadcast %cst_114 : f32 to vector<8x16xf32>
    %242 = arith.maximumf %240, %241 : vector<8x16xf32>
    %cst_115 = arith.constant 1.000000e-01 : f32
    %243 = vector.broadcast %cst_115 : f32 to vector<8x16xf32>
    %244 = arith.mulf %243, %242 : vector<8x16xf32>
    %245 = arith.subf %211, %244 : vector<8x16xf32>
    %246 = vector.extract_strided_slice %7 {offsets = [0, 224], sizes = [8, 32], strides = [1, 1]} : vector<8x384xf32> to vector<8x32xf32>
    %c1_116 = arith.constant 1 : index
    %c0_117 = arith.constant 0 : index
    %c0_118 = arith.constant 0 : index
    %247 = vector.load %arg3[%c1_116, %c0_117, %c0_118] : memref<3x16x32xf32, #tpu.memory_space<vmem>>, vector<1x16x32xf32>
    %248 = vector.shape_cast %247 : vector<1x16x32xf32> to vector<16x32xf32>
    %cst_119 = arith.constant dense<0.000000e+00> : vector<8x32xf32>
    %249 = tpu.matmul %245, %248, %cst_119 {dimension_numbers = #tpu.dot_dimension_numbers<[1], [0], [0], [1], [0, 0, 1, 1], [], []>} : vector<8x16xf32>, vector<16x32xf32>, vector<8x32xf32> -> vector<8x32xf32>
    %250 = arith.mulf %249, %249 : vector<8x32xf32>
    %cst_120 = arith.constant dense<0.000000e+00> : vector<8xf32>
    %251 = vector.multi_reduction <add>, %250, %cst_120 [1] : vector<8x32xf32> to vector<8xf32>
    %252 = vector.shape_cast %251 : vector<8xf32> to vector<8x1xf32>
    %cst_121 = arith.constant 1.000000e-03 : f32
    %253 = vector.broadcast %cst_121 : f32 to vector<8x1xf32>
    %254 = arith.addf %252, %253 : vector<8x1xf32>
    %255 = math.rsqrt %254 : vector<8x1xf32>
    %256 = vector.broadcast %255 : vector<8x1xf32> to vector<8x32xf32>
    %257 = arith.mulf %249, %256 : vector<8x32xf32>
    %cst_122 = arith.constant 0.000000e+00 : f32
    %258 = vector.broadcast %cst_122 : f32 to vector<8x32xf32>
    %259 = arith.maximumf %257, %258 : vector<8x32xf32>
    %260 = arith.addf %259, %246 : vector<8x32xf32>
    %cst_123 = arith.constant 1.000000e-01 : f32
    %261 = vector.broadcast %cst_123 : f32 to vector<8x32xf32>
    %262 = arith.mulf %261, %260 : vector<8x32xf32>
    %263 = arith.addf %229, %262 : vector<8x32xf32>
    %c1_124 = arith.constant 1 : index
    %c0_125 = arith.constant 0 : index
    %c0_126 = arith.constant 0 : index
    %264 = vector.load %arg4[%c1_124, %c0_125, %c0_126] : memref<3x32x16xf32, #tpu.memory_space<vmem>>, vector<1x32x16xf32>
    %265 = vector.shape_cast %264 : vector<1x32x16xf32> to vector<32x16xf32>
    %cst_127 = arith.constant dense<0.000000e+00> : vector<8x16xf32>
    %266 = tpu.matmul %263, %265, %cst_127 {dimension_numbers = #tpu.dot_dimension_numbers<[1], [0], [0], [1], [0, 0, 1, 1], [], []>} : vector<8x32xf32>, vector<32x16xf32>, vector<8x16xf32> -> vector<8x16xf32>
    %267 = arith.mulf %266, %266 : vector<8x16xf32>
    %cst_128 = arith.constant dense<0.000000e+00> : vector<8xf32>
    %268 = vector.multi_reduction <add>, %267, %cst_128 [1] : vector<8x16xf32> to vector<8xf32>
    %269 = vector.shape_cast %268 : vector<8xf32> to vector<8x1xf32>
    %cst_129 = arith.constant 1.000000e-03 : f32
    %270 = vector.broadcast %cst_129 : f32 to vector<8x1xf32>
    %271 = arith.addf %269, %270 : vector<8x1xf32>
    %272 = math.rsqrt %271 : vector<8x1xf32>
    %273 = vector.broadcast %272 : vector<8x1xf32> to vector<8x16xf32>
    %274 = arith.mulf %266, %273 : vector<8x16xf32>
    %cst_130 = arith.constant 0.000000e+00 : f32
    %275 = vector.broadcast %cst_130 : f32 to vector<8x16xf32>
    %276 = arith.maximumf %274, %275 : vector<8x16xf32>
    %cst_131 = arith.constant 1.000000e-01 : f32
    %277 = vector.broadcast %cst_131 : f32 to vector<8x16xf32>
    %278 = arith.mulf %277, %276 : vector<8x16xf32>
    %279 = arith.subf %245, %278 : vector<8x16xf32>
    %280 = vector.extract_strided_slice %7 {offsets = [0, 256], sizes = [8, 32], strides = [1, 1]} : vector<8x384xf32> to vector<8x32xf32>
    %c2_132 = arith.constant 2 : index
    %c0_133 = arith.constant 0 : index
    %c0_134 = arith.constant 0 : index
    %281 = vector.load %arg3[%c2_132, %c0_133, %c0_134] : memref<3x16x32xf32, #tpu.memory_space<vmem>>, vector<1x16x32xf32>
    %282 = vector.shape_cast %281 : vector<1x16x32xf32> to vector<16x32xf32>
    %cst_135 = arith.constant dense<0.000000e+00> : vector<8x32xf32>
    %283 = tpu.matmul %279, %282, %cst_135 {dimension_numbers = #tpu.dot_dimension_numbers<[1], [0], [0], [1], [0, 0, 1, 1], [], []>} : vector<8x16xf32>, vector<16x32xf32>, vector<8x32xf32> -> vector<8x32xf32>
    %284 = arith.mulf %283, %283 : vector<8x32xf32>
    %cst_136 = arith.constant dense<0.000000e+00> : vector<8xf32>
    %285 = vector.multi_reduction <add>, %284, %cst_136 [1] : vector<8x32xf32> to vector<8xf32>
    %286 = vector.shape_cast %285 : vector<8xf32> to vector<8x1xf32>
    %cst_137 = arith.constant 1.000000e-03 : f32
    %287 = vector.broadcast %cst_137 : f32 to vector<8x1xf32>
    %288 = arith.addf %286, %287 : vector<8x1xf32>
    %289 = math.rsqrt %288 : vector<8x1xf32>
    %290 = vector.broadcast %289 : vector<8x1xf32> to vector<8x32xf32>
    %291 = arith.mulf %283, %290 : vector<8x32xf32>
    %cst_138 = arith.constant 0.000000e+00 : f32
    %292 = vector.broadcast %cst_138 : f32 to vector<8x32xf32>
    %293 = arith.maximumf %291, %292 : vector<8x32xf32>
    %294 = arith.addf %293, %280 : vector<8x32xf32>
    %cst_139 = arith.constant 1.000000e-01 : f32
    %295 = vector.broadcast %cst_139 : f32 to vector<8x32xf32>
    %296 = arith.mulf %295, %294 : vector<8x32xf32>
    %297 = arith.addf %263, %296 : vector<8x32xf32>
    %c2_140 = arith.constant 2 : index
    %c0_141 = arith.constant 0 : index
    %c0_142 = arith.constant 0 : index
    %298 = vector.load %arg4[%c2_140, %c0_141, %c0_142] : memref<3x32x16xf32, #tpu.memory_space<vmem>>, vector<1x32x16xf32>
    %299 = vector.shape_cast %298 : vector<1x32x16xf32> to vector<32x16xf32>
    %cst_143 = arith.constant dense<0.000000e+00> : vector<8x16xf32>
    %300 = tpu.matmul %297, %299, %cst_143 {dimension_numbers = #tpu.dot_dimension_numbers<[1], [0], [0], [1], [0, 0, 1, 1], [], []>} : vector<8x32xf32>, vector<32x16xf32>, vector<8x16xf32> -> vector<8x16xf32>
    %301 = arith.mulf %300, %300 : vector<8x16xf32>
    %cst_144 = arith.constant dense<0.000000e+00> : vector<8xf32>
    %302 = vector.multi_reduction <add>, %301, %cst_144 [1] : vector<8x16xf32> to vector<8xf32>
    %303 = vector.shape_cast %302 : vector<8xf32> to vector<8x1xf32>
    %cst_145 = arith.constant 1.000000e-03 : f32
    %304 = vector.broadcast %cst_145 : f32 to vector<8x1xf32>
    %305 = arith.addf %303, %304 : vector<8x1xf32>
    %306 = math.rsqrt %305 : vector<8x1xf32>
    %307 = vector.broadcast %306 : vector<8x1xf32> to vector<8x16xf32>
    %308 = arith.mulf %300, %307 : vector<8x16xf32>
    %cst_146 = arith.constant 0.000000e+00 : f32
    %309 = vector.broadcast %cst_146 : f32 to vector<8x16xf32>
    %310 = arith.maximumf %308, %309 : vector<8x16xf32>
    %cst_147 = arith.constant 1.000000e-01 : f32
    %311 = vector.broadcast %cst_147 : f32 to vector<8x16xf32>
    %312 = arith.mulf %311, %310 : vector<8x16xf32>
    %313 = arith.subf %279, %312 : vector<8x16xf32>
    %314 = vector.extract_strided_slice %7 {offsets = [0, 288], sizes = [8, 32], strides = [1, 1]} : vector<8x384xf32> to vector<8x32xf32>
    %c0_148 = arith.constant 0 : index
    %c0_149 = arith.constant 0 : index
    %c0_150 = arith.constant 0 : index
    %315 = vector.load %arg3[%c0_148, %c0_149, %c0_150] : memref<3x16x32xf32, #tpu.memory_space<vmem>>, vector<1x16x32xf32>
    %316 = vector.shape_cast %315 : vector<1x16x32xf32> to vector<16x32xf32>
    %cst_151 = arith.constant dense<0.000000e+00> : vector<8x32xf32>
    %317 = tpu.matmul %313, %316, %cst_151 {dimension_numbers = #tpu.dot_dimension_numbers<[1], [0], [0], [1], [0, 0, 1, 1], [], []>} : vector<8x16xf32>, vector<16x32xf32>, vector<8x32xf32> -> vector<8x32xf32>
    %318 = arith.mulf %317, %317 : vector<8x32xf32>
    %cst_152 = arith.constant dense<0.000000e+00> : vector<8xf32>
    %319 = vector.multi_reduction <add>, %318, %cst_152 [1] : vector<8x32xf32> to vector<8xf32>
    %320 = vector.shape_cast %319 : vector<8xf32> to vector<8x1xf32>
    %cst_153 = arith.constant 1.000000e-03 : f32
    %321 = vector.broadcast %cst_153 : f32 to vector<8x1xf32>
    %322 = arith.addf %320, %321 : vector<8x1xf32>
    %323 = math.rsqrt %322 : vector<8x1xf32>
    %324 = vector.broadcast %323 : vector<8x1xf32> to vector<8x32xf32>
    %325 = arith.mulf %317, %324 : vector<8x32xf32>
    %cst_154 = arith.constant 0.000000e+00 : f32
    %326 = vector.broadcast %cst_154 : f32 to vector<8x32xf32>
    %327 = arith.maximumf %325, %326 : vector<8x32xf32>
    %328 = arith.addf %327, %314 : vector<8x32xf32>
    %cst_155 = arith.constant 1.000000e-01 : f32
    %329 = vector.broadcast %cst_155 : f32 to vector<8x32xf32>
    %330 = arith.mulf %329, %328 : vector<8x32xf32>
    %331 = arith.addf %297, %330 : vector<8x32xf32>
    %c0_156 = arith.constant 0 : index
    %c0_157 = arith.constant 0 : index
    %c0_158 = arith.constant 0 : index
    %332 = vector.load %arg4[%c0_156, %c0_157, %c0_158] : memref<3x32x16xf32, #tpu.memory_space<vmem>>, vector<1x32x16xf32>
    %333 = vector.shape_cast %332 : vector<1x32x16xf32> to vector<32x16xf32>
    %cst_159 = arith.constant dense<0.000000e+00> : vector<8x16xf32>
    %334 = tpu.matmul %331, %333, %cst_159 {dimension_numbers = #tpu.dot_dimension_numbers<[1], [0], [0], [1], [0, 0, 1, 1], [], []>} : vector<8x32xf32>, vector<32x16xf32>, vector<8x16xf32> -> vector<8x16xf32>
    %335 = arith.mulf %334, %334 : vector<8x16xf32>
    %cst_160 = arith.constant dense<0.000000e+00> : vector<8xf32>
    %336 = vector.multi_reduction <add>, %335, %cst_160 [1] : vector<8x16xf32> to vector<8xf32>
    %337 = vector.shape_cast %336 : vector<8xf32> to vector<8x1xf32>
    %cst_161 = arith.constant 1.000000e-03 : f32
    %338 = vector.broadcast %cst_161 : f32 to vector<8x1xf32>
    %339 = arith.addf %337, %338 : vector<8x1xf32>
    %340 = math.rsqrt %339 : vector<8x1xf32>
    %341 = vector.broadcast %340 : vector<8x1xf32> to vector<8x16xf32>
    %342 = arith.mulf %334, %341 : vector<8x16xf32>
    %cst_162 = arith.constant 0.000000e+00 : f32
    %343 = vector.broadcast %cst_162 : f32 to vector<8x16xf32>
    %344 = arith.maximumf %342, %343 : vector<8x16xf32>
    %cst_163 = arith.constant 1.000000e-01 : f32
    %345 = vector.broadcast %cst_163 : f32 to vector<8x16xf32>
    %346 = arith.mulf %345, %344 : vector<8x16xf32>
    %347 = arith.subf %313, %346 : vector<8x16xf32>
    %348 = vector.extract_strided_slice %7 {offsets = [0, 320], sizes = [8, 32], strides = [1, 1]} : vector<8x384xf32> to vector<8x32xf32>
    %c1_164 = arith.constant 1 : index
    %c0_165 = arith.constant 0 : index
    %c0_166 = arith.constant 0 : index
    %349 = vector.load %arg3[%c1_164, %c0_165, %c0_166] : memref<3x16x32xf32, #tpu.memory_space<vmem>>, vector<1x16x32xf32>
    %350 = vector.shape_cast %349 : vector<1x16x32xf32> to vector<16x32xf32>
    %cst_167 = arith.constant dense<0.000000e+00> : vector<8x32xf32>
    %351 = tpu.matmul %347, %350, %cst_167 {dimension_numbers = #tpu.dot_dimension_numbers<[1], [0], [0], [1], [0, 0, 1, 1], [], []>} : vector<8x16xf32>, vector<16x32xf32>, vector<8x32xf32> -> vector<8x32xf32>
    %352 = arith.mulf %351, %351 : vector<8x32xf32>
    %cst_168 = arith.constant dense<0.000000e+00> : vector<8xf32>
    %353 = vector.multi_reduction <add>, %352, %cst_168 [1] : vector<8x32xf32> to vector<8xf32>
    %354 = vector.shape_cast %353 : vector<8xf32> to vector<8x1xf32>
    %cst_169 = arith.constant 1.000000e-03 : f32
    %355 = vector.broadcast %cst_169 : f32 to vector<8x1xf32>
    %356 = arith.addf %354, %355 : vector<8x1xf32>
    %357 = math.rsqrt %356 : vector<8x1xf32>
    %358 = vector.broadcast %357 : vector<8x1xf32> to vector<8x32xf32>
    %359 = arith.mulf %351, %358 : vector<8x32xf32>
    %cst_170 = arith.constant 0.000000e+00 : f32
    %360 = vector.broadcast %cst_170 : f32 to vector<8x32xf32>
    %361 = arith.maximumf %359, %360 : vector<8x32xf32>
    %362 = arith.addf %361, %348 : vector<8x32xf32>
    %cst_171 = arith.constant 1.000000e-01 : f32
    %363 = vector.broadcast %cst_171 : f32 to vector<8x32xf32>
    %364 = arith.mulf %363, %362 : vector<8x32xf32>
    %365 = arith.addf %331, %364 : vector<8x32xf32>
    %c1_172 = arith.constant 1 : index
    %c0_173 = arith.constant 0 : index
    %c0_174 = arith.constant 0 : index
    %366 = vector.load %arg4[%c1_172, %c0_173, %c0_174] : memref<3x32x16xf32, #tpu.memory_space<vmem>>, vector<1x32x16xf32>
    %367 = vector.shape_cast %366 : vector<1x32x16xf32> to vector<32x16xf32>
    %cst_175 = arith.constant dense<0.000000e+00> : vector<8x16xf32>
    %368 = tpu.matmul %365, %367, %cst_175 {dimension_numbers = #tpu.dot_dimension_numbers<[1], [0], [0], [1], [0, 0, 1, 1], [], []>} : vector<8x32xf32>, vector<32x16xf32>, vector<8x16xf32> -> vector<8x16xf32>
    %369 = arith.mulf %368, %368 : vector<8x16xf32>
    %cst_176 = arith.constant dense<0.000000e+00> : vector<8xf32>
    %370 = vector.multi_reduction <add>, %369, %cst_176 [1] : vector<8x16xf32> to vector<8xf32>
    %371 = vector.shape_cast %370 : vector<8xf32> to vector<8x1xf32>
    %cst_177 = arith.constant 1.000000e-03 : f32
    %372 = vector.broadcast %cst_177 : f32 to vector<8x1xf32>
    %373 = arith.addf %371, %372 : vector<8x1xf32>
    %374 = math.rsqrt %373 : vector<8x1xf32>
    %375 = vector.broadcast %374 : vector<8x1xf32> to vector<8x16xf32>
    %376 = arith.mulf %368, %375 : vector<8x16xf32>
    %cst_178 = arith.constant 0.000000e+00 : f32
    %377 = vector.broadcast %cst_178 : f32 to vector<8x16xf32>
    %378 = arith.maximumf %376, %377 : vector<8x16xf32>
    %cst_179 = arith.constant 1.000000e-01 : f32
    %379 = vector.broadcast %cst_179 : f32 to vector<8x16xf32>
    %380 = arith.mulf %379, %378 : vector<8x16xf32>
    %381 = arith.subf %347, %380 : vector<8x16xf32>
    %382 = vector.extract_strided_slice %7 {offsets = [0, 352], sizes = [8, 32], strides = [1, 1]} : vector<8x384xf32> to vector<8x32xf32>
    %c2_180 = arith.constant 2 : index
    %c0_181 = arith.constant 0 : index
    %c0_182 = arith.constant 0 : index
    %383 = vector.load %arg3[%c2_180, %c0_181, %c0_182] : memref<3x16x32xf32, #tpu.memory_space<vmem>>, vector<1x16x32xf32>
    %384 = vector.shape_cast %383 : vector<1x16x32xf32> to vector<16x32xf32>
    %cst_183 = arith.constant dense<0.000000e+00> : vector<8x32xf32>
    %385 = tpu.matmul %381, %384, %cst_183 {dimension_numbers = #tpu.dot_dimension_numbers<[1], [0], [0], [1], [0, 0, 1, 1], [], []>} : vector<8x16xf32>, vector<16x32xf32>, vector<8x32xf32> -> vector<8x32xf32>
    %386 = arith.mulf %385, %385 : vector<8x32xf32>
    %cst_184 = arith.constant dense<0.000000e+00> : vector<8xf32>
    %387 = vector.multi_reduction <add>, %386, %cst_184 [1] : vector<8x32xf32> to vector<8xf32>
    %388 = vector.shape_cast %387 : vector<8xf32> to vector<8x1xf32>
    %cst_185 = arith.constant 1.000000e-03 : f32
    %389 = vector.broadcast %cst_185 : f32 to vector<8x1xf32>
    %390 = arith.addf %388, %389 : vector<8x1xf32>
    %391 = math.rsqrt %390 : vector<8x1xf32>
    %392 = vector.broadcast %391 : vector<8x1xf32> to vector<8x32xf32>
    %393 = arith.mulf %385, %392 : vector<8x32xf32>
    %cst_186 = arith.constant 0.000000e+00 : f32
    %394 = vector.broadcast %cst_186 : f32 to vector<8x32xf32>
    %395 = arith.maximumf %393, %394 : vector<8x32xf32>
    %396 = arith.addf %395, %382 : vector<8x32xf32>
    %cst_187 = arith.constant 1.000000e-01 : f32
    %397 = vector.broadcast %cst_187 : f32 to vector<8x32xf32>
    %398 = arith.mulf %397, %396 : vector<8x32xf32>
    %399 = arith.addf %365, %398 : vector<8x32xf32>
    %c2_188 = arith.constant 2 : index
    %c0_189 = arith.constant 0 : index
    %c0_190 = arith.constant 0 : index
    %400 = vector.load %arg4[%c2_188, %c0_189, %c0_190] : memref<3x32x16xf32, #tpu.memory_space<vmem>>, vector<1x32x16xf32>
    %401 = vector.shape_cast %400 : vector<1x32x16xf32> to vector<32x16xf32>
    %cst_191 = arith.constant dense<0.000000e+00> : vector<8x16xf32>
    %402 = tpu.matmul %399, %401, %cst_191 {dimension_numbers = #tpu.dot_dimension_numbers<[1], [0], [0], [1], [0, 0, 1, 1], [], []>} : vector<8x32xf32>, vector<32x16xf32>, vector<8x16xf32> -> vector<8x16xf32>
    %403 = arith.mulf %402, %402 : vector<8x16xf32>
    %cst_192 = arith.constant dense<0.000000e+00> : vector<8xf32>
    %404 = vector.multi_reduction <add>, %403, %cst_192 [1] : vector<8x16xf32> to vector<8xf32>
    %405 = vector.shape_cast %404 : vector<8xf32> to vector<8x1xf32>
    %cst_193 = arith.constant 1.000000e-03 : f32
    %406 = vector.broadcast %cst_193 : f32 to vector<8x1xf32>
    %407 = arith.addf %405, %406 : vector<8x1xf32>
    %408 = math.rsqrt %407 : vector<8x1xf32>
    %409 = vector.broadcast %408 : vector<8x1xf32> to vector<8x16xf32>
    %410 = arith.mulf %402, %409 : vector<8x16xf32>
    %cst_194 = arith.constant 0.000000e+00 : f32
    %411 = vector.broadcast %cst_194 : f32 to vector<8x16xf32>
    %412 = arith.maximumf %410, %411 : vector<8x16xf32>
    %cst_195 = arith.constant 1.000000e-01 : f32
    %413 = vector.broadcast %cst_195 : f32 to vector<8x16xf32>
    %414 = arith.mulf %413, %412 : vector<8x16xf32>
    %415 = arith.subf %381, %414 : vector<8x16xf32>
    %416 = tpu.concatenate %93, %195, %297, %399 in 1 : vector<8x32xf32>, vector<8x32xf32>, vector<8x32xf32>, vector<8x32xf32> -> vector<8x128xf32>
    %417 = arith.index_cast %c0_i32_4 : i32 to index
    %c0_196 = arith.constant 0 : index
    %c0_197 = arith.constant 0 : index
    %418 = vector.load %arg5[%417, %c0_196, %c0_197] : memref<2x8x128xf32, #tpu.memory_space<vmem>>, vector<1x8x128xf32>
    %419 = vector.shape_cast %418 : vector<1x8x128xf32> to vector<8x128xf32>
    %420 = vector.shape_cast %416 : vector<8x128xf32> to vector<1x8x128xf32>
    tpu.vector_store %arg5[%417, %c0_196, %c0_197], %420 {strides = array<i32>} : memref<2x8x128xf32, #tpu.memory_space<vmem>>, vector<1x8x128xf32>,
    %c1_i32 = arith.constant 1 : i32
    %421 = arith.index_cast %c1_i32 : i32 to index
    %c0_198 = arith.constant 0 : index
    %c0_199 = arith.constant 0 : index
    %422 = vector.load %arg2[%421, %c0_198, %c0_199] : memref<2x8x384xf32, #tpu.memory_space<vmem>>, vector<1x8x384xf32>
    %423 = vector.shape_cast %422 : vector<1x8x384xf32> to vector<8x384xf32>
    %424 = vector.extract_strided_slice %423 {offsets = [0, 0], sizes = [8, 32], strides = [1, 1]} : vector<8x384xf32> to vector<8x32xf32>
    %c0_200 = arith.constant 0 : index
    %c0_201 = arith.constant 0 : index
    %c0_202 = arith.constant 0 : index
    %425 = vector.load %arg3[%c0_200, %c0_201, %c0_202] : memref<3x16x32xf32, #tpu.memory_space<vmem>>, vector<1x16x32xf32>
    %426 = vector.shape_cast %425 : vector<1x16x32xf32> to vector<16x32xf32>
    %cst_203 = arith.constant dense<0.000000e+00> : vector<8x32xf32>
    %427 = tpu.matmul %415, %426, %cst_203 {dimension_numbers = #tpu.dot_dimension_numbers<[1], [0], [0], [1], [0, 0, 1, 1], [], []>} : vector<8x16xf32>, vector<16x32xf32>, vector<8x32xf32> -> vector<8x32xf32>
    %428 = arith.mulf %427, %427 : vector<8x32xf32>
    %cst_204 = arith.constant dense<0.000000e+00> : vector<8xf32>
    %429 = vector.multi_reduction <add>, %428, %cst_204 [1] : vector<8x32xf32> to vector<8xf32>
    %430 = vector.shape_cast %429 : vector<8xf32> to vector<8x1xf32>
    %cst_205 = arith.constant 1.000000e-03 : f32
    %431 = vector.broadcast %cst_205 : f32 to vector<8x1xf32>
    %432 = arith.addf %430, %431 : vector<8x1xf32>
    %433 = math.rsqrt %432 : vector<8x1xf32>
    %434 = vector.broadcast %433 : vector<8x1xf32> to vector<8x32xf32>
    %435 = arith.mulf %427, %434 : vector<8x32xf32>
    %cst_206 = arith.constant 0.000000e+00 : f32
    %436 = vector.broadcast %cst_206 : f32 to vector<8x32xf32>
    %437 = arith.maximumf %435, %436 : vector<8x32xf32>
    %438 = arith.addf %437, %424 : vector<8x32xf32>
    %cst_207 = arith.constant 1.000000e-01 : f32
    %439 = vector.broadcast %cst_207 : f32 to vector<8x32xf32>
    %440 = arith.mulf %439, %438 : vector<8x32xf32>
    %441 = arith.addf %399, %440 : vector<8x32xf32>
    %c0_208 = arith.constant 0 : index
    %c0_209 = arith.constant 0 : index
    %c0_210 = arith.constant 0 : index
    %442 = vector.load %arg4[%c0_208, %c0_209, %c0_210] : memref<3x32x16xf32, #tpu.memory_space<vmem>>, vector<1x32x16xf32>
    %443 = vector.shape_cast %442 : vector<1x32x16xf32> to vector<32x16xf32>
    %cst_211 = arith.constant dense<0.000000e+00> : vector<8x16xf32>
    %444 = tpu.matmul %441, %443, %cst_211 {dimension_numbers = #tpu.dot_dimension_numbers<[1], [0], [0], [1], [0, 0, 1, 1], [], []>} : vector<8x32xf32>, vector<32x16xf32>, vector<8x16xf32> -> vector<8x16xf32>
    %445 = arith.mulf %444, %444 : vector<8x16xf32>
    %cst_212 = arith.constant dense<0.000000e+00> : vector<8xf32>
    %446 = vector.multi_reduction <add>, %445, %cst_212 [1] : vector<8x16xf32> to vector<8xf32>
    %447 = vector.shape_cast %446 : vector<8xf32> to vector<8x1xf32>
    %cst_213 = arith.constant 1.000000e-03 : f32
    %448 = vector.broadcast %cst_213 : f32 to vector<8x1xf32>
    %449 = arith.addf %447, %448 : vector<8x1xf32>
    %450 = math.rsqrt %449 : vector<8x1xf32>
    %451 = vector.broadcast %450 : vector<8x1xf32> to vector<8x16xf32>
    %452 = arith.mulf %444, %451 : vector<8x16xf32>
    %cst_214 = arith.constant 0.000000e+00 : f32
    %453 = vector.broadcast %cst_214 : f32 to vector<8x16xf32>
    %454 = arith.maximumf %452, %453 : vector<8x16xf32>
    %cst_215 = arith.constant 1.000000e-01 : f32
    %455 = vector.broadcast %cst_215 : f32 to vector<8x16xf32>
    %456 = arith.mulf %455, %454 : vector<8x16xf32>
    %457 = arith.subf %415, %456 : vector<8x16xf32>
    %458 = vector.extract_strided_slice %423 {offsets = [0, 32], sizes = [8, 32], strides = [1, 1]} : vector<8x384xf32> to vector<8x32xf32>
    %c1_216 = arith.constant 1 : index
    %c0_217 = arith.constant 0 : index
    %c0_218 = arith.constant 0 : index
    %459 = vector.load %arg3[%c1_216, %c0_217, %c0_218] : memref<3x16x32xf32, #tpu.memory_space<vmem>>, vector<1x16x32xf32>
    %460 = vector.shape_cast %459 : vector<1x16x32xf32> to vector<16x32xf32>
    %cst_219 = arith.constant dense<0.000000e+00> : vector<8x32xf32>
    %461 = tpu.matmul %457, %460, %cst_219 {dimension_numbers = #tpu.dot_dimension_numbers<[1], [0], [0], [1], [0, 0, 1, 1], [], []>} : vector<8x16xf32>, vector<16x32xf32>, vector<8x32xf32> -> vector<8x32xf32>
    %462 = arith.mulf %461, %461 : vector<8x32xf32>
    %cst_220 = arith.constant dense<0.000000e+00> : vector<8xf32>
    %463 = vector.multi_reduction <add>, %462, %cst_220 [1] : vector<8x32xf32> to vector<8xf32>
    %464 = vector.shape_cast %463 : vector<8xf32> to vector<8x1xf32>
    %cst_221 = arith.constant 1.000000e-03 : f32
    %465 = vector.broadcast %cst_221 : f32 to vector<8x1xf32>
    %466 = arith.addf %464, %465 : vector<8x1xf32>
    %467 = math.rsqrt %466 : vector<8x1xf32>
    %468 = vector.broadcast %467 : vector<8x1xf32> to vector<8x32xf32>
    %469 = arith.mulf %461, %468 : vector<8x32xf32>
    %cst_222 = arith.constant 0.000000e+00 : f32
    %470 = vector.broadcast %cst_222 : f32 to vector<8x32xf32>
    %471 = arith.maximumf %469, %470 : vector<8x32xf32>
    %472 = arith.addf %471, %458 : vector<8x32xf32>
    %cst_223 = arith.constant 1.000000e-01 : f32
    %473 = vector.broadcast %cst_223 : f32 to vector<8x32xf32>
    %474 = arith.mulf %473, %472 : vector<8x32xf32>
    %475 = arith.addf %441, %474 : vector<8x32xf32>
    %c1_224 = arith.constant 1 : index
    %c0_225 = arith.constant 0 : index
    %c0_226 = arith.constant 0 : index
    %476 = vector.load %arg4[%c1_224, %c0_225, %c0_226] : memref<3x32x16xf32, #tpu.memory_space<vmem>>, vector<1x32x16xf32>
    %477 = vector.shape_cast %476 : vector<1x32x16xf32> to vector<32x16xf32>
    %cst_227 = arith.constant dense<0.000000e+00> : vector<8x16xf32>
    %478 = tpu.matmul %475, %477, %cst_227 {dimension_numbers = #tpu.dot_dimension_numbers<[1], [0], [0], [1], [0, 0, 1, 1], [], []>} : vector<8x32xf32>, vector<32x16xf32>, vector<8x16xf32> -> vector<8x16xf32>
    %479 = arith.mulf %478, %478 : vector<8x16xf32>
    %cst_228 = arith.constant dense<0.000000e+00> : vector<8xf32>
    %480 = vector.multi_reduction <add>, %479, %cst_228 [1] : vector<8x16xf32> to vector<8xf32>
    %481 = vector.shape_cast %480 : vector<8xf32> to vector<8x1xf32>
    %cst_229 = arith.constant 1.000000e-03 : f32
    %482 = vector.broadcast %cst_229 : f32 to vector<8x1xf32>
    %483 = arith.addf %481, %482 : vector<8x1xf32>
    %484 = math.rsqrt %483 : vector<8x1xf32>
    %485 = vector.broadcast %484 : vector<8x1xf32> to vector<8x16xf32>
    %486 = arith.mulf %478, %485 : vector<8x16xf32>
    %cst_230 = arith.constant 0.000000e+00 : f32
    %487 = vector.broadcast %cst_230 : f32 to vector<8x16xf32>
    %488 = arith.maximumf %486, %487 : vector<8x16xf32>
    %cst_231 = arith.constant 1.000000e-01 : f32
    %489 = vector.broadcast %cst_231 : f32 to vector<8x16xf32>
    %490 = arith.mulf %489, %488 : vector<8x16xf32>
    %491 = arith.subf %457, %490 : vector<8x16xf32>
    %492 = vector.extract_strided_slice %423 {offsets = [0, 64], sizes = [8, 32], strides = [1, 1]} : vector<8x384xf32> to vector<8x32xf32>
    %c2_232 = arith.constant 2 : index
    %c0_233 = arith.constant 0 : index
    %c0_234 = arith.constant 0 : index
    %493 = vector.load %arg3[%c2_232, %c0_233, %c0_234] : memref<3x16x32xf32, #tpu.memory_space<vmem>>, vector<1x16x32xf32>
    %494 = vector.shape_cast %493 : vector<1x16x32xf32> to vector<16x32xf32>
    %cst_235 = arith.constant dense<0.000000e+00> : vector<8x32xf32>
    %495 = tpu.matmul %491, %494, %cst_235 {dimension_numbers = #tpu.dot_dimension_numbers<[1], [0], [0], [1], [0, 0, 1, 1], [], []>} : vector<8x16xf32>, vector<16x32xf32>, vector<8x32xf32> -> vector<8x32xf32>
    %496 = arith.mulf %495, %495 : vector<8x32xf32>
    %cst_236 = arith.constant dense<0.000000e+00> : vector<8xf32>
    %497 = vector.multi_reduction <add>, %496, %cst_236 [1] : vector<8x32xf32> to vector<8xf32>
    %498 = vector.shape_cast %497 : vector<8xf32> to vector<8x1xf32>
    %cst_237 = arith.constant 1.000000e-03 : f32
    %499 = vector.broadcast %cst_237 : f32 to vector<8x1xf32>
    %500 = arith.addf %498, %499 : vector<8x1xf32>
    %501 = math.rsqrt %500 : vector<8x1xf32>
    %502 = vector.broadcast %501 : vector<8x1xf32> to vector<8x32xf32>
    %503 = arith.mulf %495, %502 : vector<8x32xf32>
    %cst_238 = arith.constant 0.000000e+00 : f32
    %504 = vector.broadcast %cst_238 : f32 to vector<8x32xf32>
    %505 = arith.maximumf %503, %504 : vector<8x32xf32>
    %506 = arith.addf %505, %492 : vector<8x32xf32>
    %cst_239 = arith.constant 1.000000e-01 : f32
    %507 = vector.broadcast %cst_239 : f32 to vector<8x32xf32>
    %508 = arith.mulf %507, %506 : vector<8x32xf32>
    %509 = arith.addf %475, %508 : vector<8x32xf32>
    %c2_240 = arith.constant 2 : index
    %c0_241 = arith.constant 0 : index
    %c0_242 = arith.constant 0 : index
    %510 = vector.load %arg4[%c2_240, %c0_241, %c0_242] : memref<3x32x16xf32, #tpu.memory_space<vmem>>, vector<1x32x16xf32>
    %511 = vector.shape_cast %510 : vector<1x32x16xf32> to vector<32x16xf32>
    %cst_243 = arith.constant dense<0.000000e+00> : vector<8x16xf32>
    %512 = tpu.matmul %509, %511, %cst_243 {dimension_numbers = #tpu.dot_dimension_numbers<[1], [0], [0], [1], [0, 0, 1, 1], [], []>} : vector<8x32xf32>, vector<32x16xf32>, vector<8x16xf32> -> vector<8x16xf32>
    %513 = arith.mulf %512, %512 : vector<8x16xf32>
    %cst_244 = arith.constant dense<0.000000e+00> : vector<8xf32>
    %514 = vector.multi_reduction <add>, %513, %cst_244 [1] : vector<8x16xf32> to vector<8xf32>
    %515 = vector.shape_cast %514 : vector<8xf32> to vector<8x1xf32>
    %cst_245 = arith.constant 1.000000e-03 : f32
    %516 = vector.broadcast %cst_245 : f32 to vector<8x1xf32>
    %517 = arith.addf %515, %516 : vector<8x1xf32>
    %518 = math.rsqrt %517 : vector<8x1xf32>
    %519 = vector.broadcast %518 : vector<8x1xf32> to vector<8x16xf32>
    %520 = arith.mulf %512, %519 : vector<8x16xf32>
    %cst_246 = arith.constant 0.000000e+00 : f32
    %521 = vector.broadcast %cst_246 : f32 to vector<8x16xf32>
    %522 = arith.maximumf %520, %521 : vector<8x16xf32>
    %cst_247 = arith.constant 1.000000e-01 : f32
    %523 = vector.broadcast %cst_247 : f32 to vector<8x16xf32>
    %524 = arith.mulf %523, %522 : vector<8x16xf32>
    %525 = arith.subf %491, %524 : vector<8x16xf32>
    %526 = vector.extract_strided_slice %423 {offsets = [0, 96], sizes = [8, 32], strides = [1, 1]} : vector<8x384xf32> to vector<8x32xf32>
    %c0_248 = arith.constant 0 : index
    %c0_249 = arith.constant 0 : index
    %c0_250 = arith.constant 0 : index
    %527 = vector.load %arg3[%c0_248, %c0_249, %c0_250] : memref<3x16x32xf32, #tpu.memory_space<vmem>>, vector<1x16x32xf32>
    %528 = vector.shape_cast %527 : vector<1x16x32xf32> to vector<16x32xf32>
    %cst_251 = arith.constant dense<0.000000e+00> : vector<8x32xf32>
    %529 = tpu.matmul %525, %528, %cst_251 {dimension_numbers = #tpu.dot_dimension_numbers<[1], [0], [0], [1], [0, 0, 1, 1], [], []>} : vector<8x16xf32>, vector<16x32xf32>, vector<8x32xf32> -> vector<8x32xf32>
    %530 = arith.mulf %529, %529 : vector<8x32xf32>
    %cst_252 = arith.constant dense<0.000000e+00> : vector<8xf32>
    %531 = vector.multi_reduction <add>, %530, %cst_252 [1] : vector<8x32xf32> to vector<8xf32>
    %532 = vector.shape_cast %531 : vector<8xf32> to vector<8x1xf32>
    %cst_253 = arith.constant 1.000000e-03 : f32
    %533 = vector.broadcast %cst_253 : f32 to vector<8x1xf32>
    %534 = arith.addf %532, %533 : vector<8x1xf32>
    %535 = math.rsqrt %534 : vector<8x1xf32>
    %536 = vector.broadcast %535 : vector<8x1xf32> to vector<8x32xf32>
    %537 = arith.mulf %529, %536 : vector<8x32xf32>
    %cst_254 = arith.constant 0.000000e+00 : f32
    %538 = vector.broadcast %cst_254 : f32 to vector<8x32xf32>
    %539 = arith.maximumf %537, %538 : vector<8x32xf32>
    %540 = arith.addf %539, %526 : vector<8x32xf32>
    %cst_255 = arith.constant 1.000000e-01 : f32
    %541 = vector.broadcast %cst_255 : f32 to vector<8x32xf32>
    %542 = arith.mulf %541, %540 : vector<8x32xf32>
    %543 = arith.addf %509, %542 : vector<8x32xf32>
    %c0_256 = arith.constant 0 : index
    %c0_257 = arith.constant 0 : index
    %c0_258 = arith.constant 0 : index
    %544 = vector.load %arg4[%c0_256, %c0_257, %c0_258] : memref<3x32x16xf32, #tpu.memory_space<vmem>>, vector<1x32x16xf32>
    %545 = vector.shape_cast %544 : vector<1x32x16xf32> to vector<32x16xf32>
    %cst_259 = arith.constant dense<0.000000e+00> : vector<8x16xf32>
    %546 = tpu.matmul %543, %545, %cst_259 {dimension_numbers = #tpu.dot_dimension_numbers<[1], [0], [0], [1], [0, 0, 1, 1], [], []>} : vector<8x32xf32>, vector<32x16xf32>, vector<8x16xf32> -> vector<8x16xf32>
    %547 = arith.mulf %546, %546 : vector<8x16xf32>
    %cst_260 = arith.constant dense<0.000000e+00> : vector<8xf32>
    %548 = vector.multi_reduction <add>, %547, %cst_260 [1] : vector<8x16xf32> to vector<8xf32>
    %549 = vector.shape_cast %548 : vector<8xf32> to vector<8x1xf32>
    %cst_261 = arith.constant 1.000000e-03 : f32
    %550 = vector.broadcast %cst_261 : f32 to vector<8x1xf32>
    %551 = arith.addf %549, %550 : vector<8x1xf32>
    %552 = math.rsqrt %551 : vector<8x1xf32>
    %553 = vector.broadcast %552 : vector<8x1xf32> to vector<8x16xf32>
    %554 = arith.mulf %546, %553 : vector<8x16xf32>
    %cst_262 = arith.constant 0.000000e+00 : f32
    %555 = vector.broadcast %cst_262 : f32 to vector<8x16xf32>
    %556 = arith.maximumf %554, %555 : vector<8x16xf32>
    %cst_263 = arith.constant 1.000000e-01 : f32
    %557 = vector.broadcast %cst_263 : f32 to vector<8x16xf32>
    %558 = arith.mulf %557, %556 : vector<8x16xf32>
    %559 = arith.subf %525, %558 : vector<8x16xf32>
    %560 = vector.extract_strided_slice %423 {offsets = [0, 128], sizes = [8, 32], strides = [1, 1]} : vector<8x384xf32> to vector<8x32xf32>
    %c1_264 = arith.constant 1 : index
    %c0_265 = arith.constant 0 : index
    %c0_266 = arith.constant 0 : index
    %561 = vector.load %arg3[%c1_264, %c0_265, %c0_266] : memref<3x16x32xf32, #tpu.memory_space<vmem>>, vector<1x16x32xf32>
    %562 = vector.shape_cast %561 : vector<1x16x32xf32> to vector<16x32xf32>
    %cst_267 = arith.constant dense<0.000000e+00> : vector<8x32xf32>
    %563 = tpu.matmul %559, %562, %cst_267 {dimension_numbers = #tpu.dot_dimension_numbers<[1], [0], [0], [1], [0, 0, 1, 1], [], []>} : vector<8x16xf32>, vector<16x32xf32>, vector<8x32xf32> -> vector<8x32xf32>
    %564 = arith.mulf %563, %563 : vector<8x32xf32>
    %cst_268 = arith.constant dense<0.000000e+00> : vector<8xf32>
    %565 = vector.multi_reduction <add>, %564, %cst_268 [1] : vector<8x32xf32> to vector<8xf32>
    %566 = vector.shape_cast %565 : vector<8xf32> to vector<8x1xf32>
    %cst_269 = arith.constant 1.000000e-03 : f32
    %567 = vector.broadcast %cst_269 : f32 to vector<8x1xf32>
    %568 = arith.addf %566, %567 : vector<8x1xf32>
    %569 = math.rsqrt %568 : vector<8x1xf32>
    %570 = vector.broadcast %569 : vector<8x1xf32> to vector<8x32xf32>
    %571 = arith.mulf %563, %570 : vector<8x32xf32>
    %cst_270 = arith.constant 0.000000e+00 : f32
    %572 = vector.broadcast %cst_270 : f32 to vector<8x32xf32>
    %573 = arith.maximumf %571, %572 : vector<8x32xf32>
    %574 = arith.addf %573, %560 : vector<8x32xf32>
    %cst_271 = arith.constant 1.000000e-01 : f32
    %575 = vector.broadcast %cst_271 : f32 to vector<8x32xf32>
    %576 = arith.mulf %575, %574 : vector<8x32xf32>
    %577 = arith.addf %543, %576 : vector<8x32xf32>
    %c1_272 = arith.constant 1 : index
    %c0_273 = arith.constant 0 : index
    %c0_274 = arith.constant 0 : index
    %578 = vector.load %arg4[%c1_272, %c0_273, %c0_274] : memref<3x32x16xf32, #tpu.memory_space<vmem>>, vector<1x32x16xf32>
    %579 = vector.shape_cast %578 : vector<1x32x16xf32> to vector<32x16xf32>
    %cst_275 = arith.constant dense<0.000000e+00> : vector<8x16xf32>
    %580 = tpu.matmul %577, %579, %cst_275 {dimension_numbers = #tpu.dot_dimension_numbers<[1], [0], [0], [1], [0, 0, 1, 1], [], []>} : vector<8x32xf32>, vector<32x16xf32>, vector<8x16xf32> -> vector<8x16xf32>
    %581 = arith.mulf %580, %580 : vector<8x16xf32>
    %cst_276 = arith.constant dense<0.000000e+00> : vector<8xf32>
    %582 = vector.multi_reduction <add>, %581, %cst_276 [1] : vector<8x16xf32> to vector<8xf32>
    %583 = vector.shape_cast %582 : vector<8xf32> to vector<8x1xf32>
    %cst_277 = arith.constant 1.000000e-03 : f32
    %584 = vector.broadcast %cst_277 : f32 to vector<8x1xf32>
    %585 = arith.addf %583, %584 : vector<8x1xf32>
    %586 = math.rsqrt %585 : vector<8x1xf32>
    %587 = vector.broadcast %586 : vector<8x1xf32> to vector<8x16xf32>
    %588 = arith.mulf %580, %587 : vector<8x16xf32>
    %cst_278 = arith.constant 0.000000e+00 : f32
    %589 = vector.broadcast %cst_278 : f32 to vector<8x16xf32>
    %590 = arith.maximumf %588, %589 : vector<8x16xf32>
    %cst_279 = arith.constant 1.000000e-01 : f32
    %591 = vector.broadcast %cst_279 : f32 to vector<8x16xf32>
    %592 = arith.mulf %591, %590 : vector<8x16xf32>
    %593 = arith.subf %559, %592 : vector<8x16xf32>
    %594 = vector.extract_strided_slice %423 {offsets = [0, 160], sizes = [8, 32], strides = [1, 1]} : vector<8x384xf32> to vector<8x32xf32>
    %c2_280 = arith.constant 2 : index
    %c0_281 = arith.constant 0 : index
    %c0_282 = arith.constant 0 : index
    %595 = vector.load %arg3[%c2_280, %c0_281, %c0_282] : memref<3x16x32xf32, #tpu.memory_space<vmem>>, vector<1x16x32xf32>
    %596 = vector.shape_cast %595 : vector<1x16x32xf32> to vector<16x32xf32>
    %cst_283 = arith.constant dense<0.000000e+00> : vector<8x32xf32>
    %597 = tpu.matmul %593, %596, %cst_283 {dimension_numbers = #tpu.dot_dimension_numbers<[1], [0], [0], [1], [0, 0, 1, 1], [], []>} : vector<8x16xf32>, vector<16x32xf32>, vector<8x32xf32> -> vector<8x32xf32>
    %598 = arith.mulf %597, %597 : vector<8x32xf32>
    %cst_284 = arith.constant dense<0.000000e+00> : vector<8xf32>
    %599 = vector.multi_reduction <add>, %598, %cst_284 [1] : vector<8x32xf32> to vector<8xf32>
    %600 = vector.shape_cast %599 : vector<8xf32> to vector<8x1xf32>
    %cst_285 = arith.constant 1.000000e-03 : f32
    %601 = vector.broadcast %cst_285 : f32 to vector<8x1xf32>
    %602 = arith.addf %600, %601 : vector<8x1xf32>
    %603 = math.rsqrt %602 : vector<8x1xf32>
    %604 = vector.broadcast %603 : vector<8x1xf32> to vector<8x32xf32>
    %605 = arith.mulf %597, %604 : vector<8x32xf32>
    %cst_286 = arith.constant 0.000000e+00 : f32
    %606 = vector.broadcast %cst_286 : f32 to vector<8x32xf32>
    %607 = arith.maximumf %605, %606 : vector<8x32xf32>
    %608 = arith.addf %607, %594 : vector<8x32xf32>
    %cst_287 = arith.constant 1.000000e-01 : f32
    %609 = vector.broadcast %cst_287 : f32 to vector<8x32xf32>
    %610 = arith.mulf %609, %608 : vector<8x32xf32>
    %611 = arith.addf %577, %610 : vector<8x32xf32>
    %c2_288 = arith.constant 2 : index
    %c0_289 = arith.constant 0 : index
    %c0_290 = arith.constant 0 : index
    %612 = vector.load %arg4[%c2_288, %c0_289, %c0_290] : memref<3x32x16xf32, #tpu.memory_space<vmem>>, vector<1x32x16xf32>
    %613 = vector.shape_cast %612 : vector<1x32x16xf32> to vector<32x16xf32>
    %cst_291 = arith.constant dense<0.000000e+00> : vector<8x16xf32>
    %614 = tpu.matmul %611, %613, %cst_291 {dimension_numbers = #tpu.dot_dimension_numbers<[1], [0], [0], [1], [0, 0, 1, 1], [], []>} : vector<8x32xf32>, vector<32x16xf32>, vector<8x16xf32> -> vector<8x16xf32>
    %615 = arith.mulf %614, %614 : vector<8x16xf32>
    %cst_292 = arith.constant dense<0.000000e+00> : vector<8xf32>
    %616 = vector.multi_reduction <add>, %615, %cst_292 [1] : vector<8x16xf32> to vector<8xf32>
    %617 = vector.shape_cast %616 : vector<8xf32> to vector<8x1xf32>
    %cst_293 = arith.constant 1.000000e-03 : f32
    %618 = vector.broadcast %cst_293 : f32 to vector<8x1xf32>
    %619 = arith.addf %617, %618 : vector<8x1xf32>
    %620 = math.rsqrt %619 : vector<8x1xf32>
    %621 = vector.broadcast %620 : vector<8x1xf32> to vector<8x16xf32>
    %622 = arith.mulf %614, %621 : vector<8x16xf32>
    %cst_294 = arith.constant 0.000000e+00 : f32
    %623 = vector.broadcast %cst_294 : f32 to vector<8x16xf32>
    %624 = arith.maximumf %622, %623 : vector<8x16xf32>
    %cst_295 = arith.constant 1.000000e-01 : f32
    %625 = vector.broadcast %cst_295 : f32 to vector<8x16xf32>
    %626 = arith.mulf %625, %624 : vector<8x16xf32>
    %627 = arith.subf %593, %626 : vector<8x16xf32>
    %628 = vector.extract_strided_slice %423 {offsets = [0, 192], sizes = [8, 32], strides = [1, 1]} : vector<8x384xf32> to vector<8x32xf32>
    %c0_296 = arith.constant 0 : index
    %c0_297 = arith.constant 0 : index
    %c0_298 = arith.constant 0 : index
    %629 = vector.load %arg3[%c0_296, %c0_297, %c0_298] : memref<3x16x32xf32, #tpu.memory_space<vmem>>, vector<1x16x32xf32>
    %630 = vector.shape_cast %629 : vector<1x16x32xf32> to vector<16x32xf32>
    %cst_299 = arith.constant dense<0.000000e+00> : vector<8x32xf32>
    %631 = tpu.matmul %627, %630, %cst_299 {dimension_numbers = #tpu.dot_dimension_numbers<[1], [0], [0], [1], [0, 0, 1, 1], [], []>} : vector<8x16xf32>, vector<16x32xf32>, vector<8x32xf32> -> vector<8x32xf32>
    %632 = arith.mulf %631, %631 : vector<8x32xf32>
    %cst_300 = arith.constant dense<0.000000e+00> : vector<8xf32>
    %633 = vector.multi_reduction <add>, %632, %cst_300 [1] : vector<8x32xf32> to vector<8xf32>
    %634 = vector.shape_cast %633 : vector<8xf32> to vector<8x1xf32>
    %cst_301 = arith.constant 1.000000e-03 : f32
    %635 = vector.broadcast %cst_301 : f32 to vector<8x1xf32>
    %636 = arith.addf %634, %635 : vector<8x1xf32>
    %637 = math.rsqrt %636 : vector<8x1xf32>
    %638 = vector.broadcast %637 : vector<8x1xf32> to vector<8x32xf32>
    %639 = arith.mulf %631, %638 : vector<8x32xf32>
    %cst_302 = arith.constant 0.000000e+00 : f32
    %640 = vector.broadcast %cst_302 : f32 to vector<8x32xf32>
    %641 = arith.maximumf %639, %640 : vector<8x32xf32>
    %642 = arith.addf %641, %628 : vector<8x32xf32>
    %cst_303 = arith.constant 1.000000e-01 : f32
    %643 = vector.broadcast %cst_303 : f32 to vector<8x32xf32>
    %644 = arith.mulf %643, %642 : vector<8x32xf32>
    %645 = arith.addf %611, %644 : vector<8x32xf32>
    %c0_304 = arith.constant 0 : index
    %c0_305 = arith.constant 0 : index
    %c0_306 = arith.constant 0 : index
    %646 = vector.load %arg4[%c0_304, %c0_305, %c0_306] : memref<3x32x16xf32, #tpu.memory_space<vmem>>, vector<1x32x16xf32>
    %647 = vector.shape_cast %646 : vector<1x32x16xf32> to vector<32x16xf32>
    %cst_307 = arith.constant dense<0.000000e+00> : vector<8x16xf32>
    %648 = tpu.matmul %645, %647, %cst_307 {dimension_numbers = #tpu.dot_dimension_numbers<[1], [0], [0], [1], [0, 0, 1, 1], [], []>} : vector<8x32xf32>, vector<32x16xf32>, vector<8x16xf32> -> vector<8x16xf32>
    %649 = arith.mulf %648, %648 : vector<8x16xf32>
    %cst_308 = arith.constant dense<0.000000e+00> : vector<8xf32>
    %650 = vector.multi_reduction <add>, %649, %cst_308 [1] : vector<8x16xf32> to vector<8xf32>
    %651 = vector.shape_cast %650 : vector<8xf32> to vector<8x1xf32>
    %cst_309 = arith.constant 1.000000e-03 : f32
    %652 = vector.broadcast %cst_309 : f32 to vector<8x1xf32>
    %653 = arith.addf %651, %652 : vector<8x1xf32>
    %654 = math.rsqrt %653 : vector<8x1xf32>
    %655 = vector.broadcast %654 : vector<8x1xf32> to vector<8x16xf32>
    %656 = arith.mulf %648, %655 : vector<8x16xf32>
    %cst_310 = arith.constant 0.000000e+00 : f32
    %657 = vector.broadcast %cst_310 : f32 to vector<8x16xf32>
    %658 = arith.maximumf %656, %657 : vector<8x16xf32>
    %cst_311 = arith.constant 1.000000e-01 : f32
    %659 = vector.broadcast %cst_311 : f32 to vector<8x16xf32>
    %660 = arith.mulf %659, %658 : vector<8x16xf32>
    %661 = arith.subf %627, %660 : vector<8x16xf32>
    %662 = vector.extract_strided_slice %423 {offsets = [0, 224], sizes = [8, 32], strides = [1, 1]} : vector<8x384xf32> to vector<8x32xf32>
    %c1_312 = arith.constant 1 : index
    %c0_313 = arith.constant 0 : index
    %c0_314 = arith.constant 0 : index
    %663 = vector.load %arg3[%c1_312, %c0_313, %c0_314] : memref<3x16x32xf32, #tpu.memory_space<vmem>>, vector<1x16x32xf32>
    %664 = vector.shape_cast %663 : vector<1x16x32xf32> to vector<16x32xf32>
    %cst_315 = arith.constant dense<0.000000e+00> : vector<8x32xf32>
    %665 = tpu.matmul %661, %664, %cst_315 {dimension_numbers = #tpu.dot_dimension_numbers<[1], [0], [0], [1], [0, 0, 1, 1], [], []>} : vector<8x16xf32>, vector<16x32xf32>, vector<8x32xf32> -> vector<8x32xf32>
    %666 = arith.mulf %665, %665 : vector<8x32xf32>
    %cst_316 = arith.constant dense<0.000000e+00> : vector<8xf32>
    %667 = vector.multi_reduction <add>, %666, %cst_316 [1] : vector<8x32xf32> to vector<8xf32>
    %668 = vector.shape_cast %667 : vector<8xf32> to vector<8x1xf32>
    %cst_317 = arith.constant 1.000000e-03 : f32
    %669 = vector.broadcast %cst_317 : f32 to vector<8x1xf32>
    %670 = arith.addf %668, %669 : vector<8x1xf32>
    %671 = math.rsqrt %670 : vector<8x1xf32>
    %672 = vector.broadcast %671 : vector<8x1xf32> to vector<8x32xf32>
    %673 = arith.mulf %665, %672 : vector<8x32xf32>
    %cst_318 = arith.constant 0.000000e+00 : f32
    %674 = vector.broadcast %cst_318 : f32 to vector<8x32xf32>
    %675 = arith.maximumf %673, %674 : vector<8x32xf32>
    %676 = arith.addf %675, %662 : vector<8x32xf32>
    %cst_319 = arith.constant 1.000000e-01 : f32
    %677 = vector.broadcast %cst_319 : f32 to vector<8x32xf32>
    %678 = arith.mulf %677, %676 : vector<8x32xf32>
    %679 = arith.addf %645, %678 : vector<8x32xf32>
    %c1_320 = arith.constant 1 : index
    %c0_321 = arith.constant 0 : index
    %c0_322 = arith.constant 0 : index
    %680 = vector.load %arg4[%c1_320, %c0_321, %c0_322] : memref<3x32x16xf32, #tpu.memory_space<vmem>>, vector<1x32x16xf32>
    %681 = vector.shape_cast %680 : vector<1x32x16xf32> to vector<32x16xf32>
    %cst_323 = arith.constant dense<0.000000e+00> : vector<8x16xf32>
    %682 = tpu.matmul %679, %681, %cst_323 {dimension_numbers = #tpu.dot_dimension_numbers<[1], [0], [0], [1], [0, 0, 1, 1], [], []>} : vector<8x32xf32>, vector<32x16xf32>, vector<8x16xf32> -> vector<8x16xf32>
    %683 = arith.mulf %682, %682 : vector<8x16xf32>
    %cst_324 = arith.constant dense<0.000000e+00> : vector<8xf32>
    %684 = vector.multi_reduction <add>, %683, %cst_324 [1] : vector<8x16xf32> to vector<8xf32>
    %685 = vector.shape_cast %684 : vector<8xf32> to vector<8x1xf32>
    %cst_325 = arith.constant 1.000000e-03 : f32
    %686 = vector.broadcast %cst_325 : f32 to vector<8x1xf32>
    %687 = arith.addf %685, %686 : vector<8x1xf32>
    %688 = math.rsqrt %687 : vector<8x1xf32>
    %689 = vector.broadcast %688 : vector<8x1xf32> to vector<8x16xf32>
    %690 = arith.mulf %682, %689 : vector<8x16xf32>
    %cst_326 = arith.constant 0.000000e+00 : f32
    %691 = vector.broadcast %cst_326 : f32 to vector<8x16xf32>
    %692 = arith.maximumf %690, %691 : vector<8x16xf32>
    %cst_327 = arith.constant 1.000000e-01 : f32
    %693 = vector.broadcast %cst_327 : f32 to vector<8x16xf32>
    %694 = arith.mulf %693, %692 : vector<8x16xf32>
    %695 = arith.subf %661, %694 : vector<8x16xf32>
    %696 = vector.extract_strided_slice %423 {offsets = [0, 256], sizes = [8, 32], strides = [1, 1]} : vector<8x384xf32> to vector<8x32xf32>
    %c2_328 = arith.constant 2 : index
    %c0_329 = arith.constant 0 : index
    %c0_330 = arith.constant 0 : index
    %697 = vector.load %arg3[%c2_328, %c0_329, %c0_330] : memref<3x16x32xf32, #tpu.memory_space<vmem>>, vector<1x16x32xf32>
    %698 = vector.shape_cast %697 : vector<1x16x32xf32> to vector<16x32xf32>
    %cst_331 = arith.constant dense<0.000000e+00> : vector<8x32xf32>
    %699 = tpu.matmul %695, %698, %cst_331 {dimension_numbers = #tpu.dot_dimension_numbers<[1], [0], [0], [1], [0, 0, 1, 1], [], []>} : vector<8x16xf32>, vector<16x32xf32>, vector<8x32xf32> -> vector<8x32xf32>
    %700 = arith.mulf %699, %699 : vector<8x32xf32>
    %cst_332 = arith.constant dense<0.000000e+00> : vector<8xf32>
    %701 = vector.multi_reduction <add>, %700, %cst_332 [1] : vector<8x32xf32> to vector<8xf32>
    %702 = vector.shape_cast %701 : vector<8xf32> to vector<8x1xf32>
    %cst_333 = arith.constant 1.000000e-03 : f32
    %703 = vector.broadcast %cst_333 : f32 to vector<8x1xf32>
    %704 = arith.addf %702, %703 : vector<8x1xf32>
    %705 = math.rsqrt %704 : vector<8x1xf32>
    %706 = vector.broadcast %705 : vector<8x1xf32> to vector<8x32xf32>
    %707 = arith.mulf %699, %706 : vector<8x32xf32>
    %cst_334 = arith.constant 0.000000e+00 : f32
    %708 = vector.broadcast %cst_334 : f32 to vector<8x32xf32>
    %709 = arith.maximumf %707, %708 : vector<8x32xf32>
    %710 = arith.addf %709, %696 : vector<8x32xf32>
    %cst_335 = arith.constant 1.000000e-01 : f32
    %711 = vector.broadcast %cst_335 : f32 to vector<8x32xf32>
    %712 = arith.mulf %711, %710 : vector<8x32xf32>
    %713 = arith.addf %679, %712 : vector<8x32xf32>
    %c2_336 = arith.constant 2 : index
    %c0_337 = arith.constant 0 : index
    %c0_338 = arith.constant 0 : index
    %714 = vector.load %arg4[%c2_336, %c0_337, %c0_338] : memref<3x32x16xf32, #tpu.memory_space<vmem>>, vector<1x32x16xf32>
    %715 = vector.shape_cast %714 : vector<1x32x16xf32> to vector<32x16xf32>
    %cst_339 = arith.constant dense<0.000000e+00> : vector<8x16xf32>
    %716 = tpu.matmul %713, %715, %cst_339 {dimension_numbers = #tpu.dot_dimension_numbers<[1], [0], [0], [1], [0, 0, 1, 1], [], []>} : vector<8x32xf32>, vector<32x16xf32>, vector<8x16xf32> -> vector<8x16xf32>
    %717 = arith.mulf %716, %716 : vector<8x16xf32>
    %cst_340 = arith.constant dense<0.000000e+00> : vector<8xf32>
    %718 = vector.multi_reduction <add>, %717, %cst_340 [1] : vector<8x16xf32> to vector<8xf32>
    %719 = vector.shape_cast %718 : vector<8xf32> to vector<8x1xf32>
    %cst_341 = arith.constant 1.000000e-03 : f32
    %720 = vector.broadcast %cst_341 : f32 to vector<8x1xf32>
    %721 = arith.addf %719, %720 : vector<8x1xf32>
    %722 = math.rsqrt %721 : vector<8x1xf32>
    %723 = vector.broadcast %722 : vector<8x1xf32> to vector<8x16xf32>
    %724 = arith.mulf %716, %723 : vector<8x16xf32>
    %cst_342 = arith.constant 0.000000e+00 : f32
    %725 = vector.broadcast %cst_342 : f32 to vector<8x16xf32>
    %726 = arith.maximumf %724, %725 : vector<8x16xf32>
    %cst_343 = arith.constant 1.000000e-01 : f32
    %727 = vector.broadcast %cst_343 : f32 to vector<8x16xf32>
    %728 = arith.mulf %727, %726 : vector<8x16xf32>
    %729 = arith.subf %695, %728 : vector<8x16xf32>
    %730 = vector.extract_strided_slice %423 {offsets = [0, 288], sizes = [8, 32], strides = [1, 1]} : vector<8x384xf32> to vector<8x32xf32>
    %c0_344 = arith.constant 0 : index
    %c0_345 = arith.constant 0 : index
    %c0_346 = arith.constant 0 : index
    %731 = vector.load %arg3[%c0_344, %c0_345, %c0_346] : memref<3x16x32xf32, #tpu.memory_space<vmem>>, vector<1x16x32xf32>
    %732 = vector.shape_cast %731 : vector<1x16x32xf32> to vector<16x32xf32>
    %cst_347 = arith.constant dense<0.000000e+00> : vector<8x32xf32>
    %733 = tpu.matmul %729, %732, %cst_347 {dimension_numbers = #tpu.dot_dimension_numbers<[1], [0], [0], [1], [0, 0, 1, 1], [], []>} : vector<8x16xf32>, vector<16x32xf32>, vector<8x32xf32> -> vector<8x32xf32>
    %734 = arith.mulf %733, %733 : vector<8x32xf32>
    %cst_348 = arith.constant dense<0.000000e+00> : vector<8xf32>
    %735 = vector.multi_reduction <add>, %734, %cst_348 [1] : vector<8x32xf32> to vector<8xf32>
    %736 = vector.shape_cast %735 : vector<8xf32> to vector<8x1xf32>
    %cst_349 = arith.constant 1.000000e-03 : f32
    %737 = vector.broadcast %cst_349 : f32 to vector<8x1xf32>
    %738 = arith.addf %736, %737 : vector<8x1xf32>
    %739 = math.rsqrt %738 : vector<8x1xf32>
    %740 = vector.broadcast %739 : vector<8x1xf32> to vector<8x32xf32>
    %741 = arith.mulf %733, %740 : vector<8x32xf32>
    %cst_350 = arith.constant 0.000000e+00 : f32
    %742 = vector.broadcast %cst_350 : f32 to vector<8x32xf32>
    %743 = arith.maximumf %741, %742 : vector<8x32xf32>
    %744 = arith.addf %743, %730 : vector<8x32xf32>
    %cst_351 = arith.constant 1.000000e-01 : f32
    %745 = vector.broadcast %cst_351 : f32 to vector<8x32xf32>
    %746 = arith.mulf %745, %744 : vector<8x32xf32>
    %747 = arith.addf %713, %746 : vector<8x32xf32>
    %c0_352 = arith.constant 0 : index
    %c0_353 = arith.constant 0 : index
    %c0_354 = arith.constant 0 : index
    %748 = vector.load %arg4[%c0_352, %c0_353, %c0_354] : memref<3x32x16xf32, #tpu.memory_space<vmem>>, vector<1x32x16xf32>
    %749 = vector.shape_cast %748 : vector<1x32x16xf32> to vector<32x16xf32>
    %cst_355 = arith.constant dense<0.000000e+00> : vector<8x16xf32>
    %750 = tpu.matmul %747, %749, %cst_355 {dimension_numbers = #tpu.dot_dimension_numbers<[1], [0], [0], [1], [0, 0, 1, 1], [], []>} : vector<8x32xf32>, vector<32x16xf32>, vector<8x16xf32> -> vector<8x16xf32>
    %751 = arith.mulf %750, %750 : vector<8x16xf32>
    %cst_356 = arith.constant dense<0.000000e+00> : vector<8xf32>
    %752 = vector.multi_reduction <add>, %751, %cst_356 [1] : vector<8x16xf32> to vector<8xf32>
    %753 = vector.shape_cast %752 : vector<8xf32> to vector<8x1xf32>
    %cst_357 = arith.constant 1.000000e-03 : f32
    %754 = vector.broadcast %cst_357 : f32 to vector<8x1xf32>
    %755 = arith.addf %753, %754 : vector<8x1xf32>
    %756 = math.rsqrt %755 : vector<8x1xf32>
    %757 = vector.broadcast %756 : vector<8x1xf32> to vector<8x16xf32>
    %758 = arith.mulf %750, %757 : vector<8x16xf32>
    %cst_358 = arith.constant 0.000000e+00 : f32
    %759 = vector.broadcast %cst_358 : f32 to vector<8x16xf32>
    %760 = arith.maximumf %758, %759 : vector<8x16xf32>
    %cst_359 = arith.constant 1.000000e-01 : f32
    %761 = vector.broadcast %cst_359 : f32 to vector<8x16xf32>
    %762 = arith.mulf %761, %760 : vector<8x16xf32>
    %763 = arith.subf %729, %762 : vector<8x16xf32>
    %764 = vector.extract_strided_slice %423 {offsets = [0, 320], sizes = [8, 32], strides = [1, 1]} : vector<8x384xf32> to vector<8x32xf32>
    %c1_360 = arith.constant 1 : index
    %c0_361 = arith.constant 0 : index
    %c0_362 = arith.constant 0 : index
    %765 = vector.load %arg3[%c1_360, %c0_361, %c0_362] : memref<3x16x32xf32, #tpu.memory_space<vmem>>, vector<1x16x32xf32>
    %766 = vector.shape_cast %765 : vector<1x16x32xf32> to vector<16x32xf32>
    %cst_363 = arith.constant dense<0.000000e+00> : vector<8x32xf32>
    %767 = tpu.matmul %763, %766, %cst_363 {dimension_numbers = #tpu.dot_dimension_numbers<[1], [0], [0], [1], [0, 0, 1, 1], [], []>} : vector<8x16xf32>, vector<16x32xf32>, vector<8x32xf32> -> vector<8x32xf32>
    %768 = arith.mulf %767, %767 : vector<8x32xf32>
    %cst_364 = arith.constant dense<0.000000e+00> : vector<8xf32>
    %769 = vector.multi_reduction <add>, %768, %cst_364 [1] : vector<8x32xf32> to vector<8xf32>
    %770 = vector.shape_cast %769 : vector<8xf32> to vector<8x1xf32>
    %cst_365 = arith.constant 1.000000e-03 : f32
    %771 = vector.broadcast %cst_365 : f32 to vector<8x1xf32>
    %772 = arith.addf %770, %771 : vector<8x1xf32>
    %773 = math.rsqrt %772 : vector<8x1xf32>
    %774 = vector.broadcast %773 : vector<8x1xf32> to vector<8x32xf32>
    %775 = arith.mulf %767, %774 : vector<8x32xf32>
    %cst_366 = arith.constant 0.000000e+00 : f32
    %776 = vector.broadcast %cst_366 : f32 to vector<8x32xf32>
    %777 = arith.maximumf %775, %776 : vector<8x32xf32>
    %778 = arith.addf %777, %764 : vector<8x32xf32>
    %cst_367 = arith.constant 1.000000e-01 : f32
    %779 = vector.broadcast %cst_367 : f32 to vector<8x32xf32>
    %780 = arith.mulf %779, %778 : vector<8x32xf32>
    %781 = arith.addf %747, %780 : vector<8x32xf32>
    %c1_368 = arith.constant 1 : index
    %c0_369 = arith.constant 0 : index
    %c0_370 = arith.constant 0 : index
    %782 = vector.load %arg4[%c1_368, %c0_369, %c0_370] : memref<3x32x16xf32, #tpu.memory_space<vmem>>, vector<1x32x16xf32>
    %783 = vector.shape_cast %782 : vector<1x32x16xf32> to vector<32x16xf32>
    %cst_371 = arith.constant dense<0.000000e+00> : vector<8x16xf32>
    %784 = tpu.matmul %781, %783, %cst_371 {dimension_numbers = #tpu.dot_dimension_numbers<[1], [0], [0], [1], [0, 0, 1, 1], [], []>} : vector<8x32xf32>, vector<32x16xf32>, vector<8x16xf32> -> vector<8x16xf32>
    %785 = arith.mulf %784, %784 : vector<8x16xf32>
    %cst_372 = arith.constant dense<0.000000e+00> : vector<8xf32>
    %786 = vector.multi_reduction <add>, %785, %cst_372 [1] : vector<8x16xf32> to vector<8xf32>
    %787 = vector.shape_cast %786 : vector<8xf32> to vector<8x1xf32>
    %cst_373 = arith.constant 1.000000e-03 : f32
    %788 = vector.broadcast %cst_373 : f32 to vector<8x1xf32>
    %789 = arith.addf %787, %788 : vector<8x1xf32>
    %790 = math.rsqrt %789 : vector<8x1xf32>
    %791 = vector.broadcast %790 : vector<8x1xf32> to vector<8x16xf32>
    %792 = arith.mulf %784, %791 : vector<8x16xf32>
    %cst_374 = arith.constant 0.000000e+00 : f32
    %793 = vector.broadcast %cst_374 : f32 to vector<8x16xf32>
    %794 = arith.maximumf %792, %793 : vector<8x16xf32>
    %cst_375 = arith.constant 1.000000e-01 : f32
    %795 = vector.broadcast %cst_375 : f32 to vector<8x16xf32>
    %796 = arith.mulf %795, %794 : vector<8x16xf32>
    %797 = arith.subf %763, %796 : vector<8x16xf32>
    %798 = vector.extract_strided_slice %423 {offsets = [0, 352], sizes = [8, 32], strides = [1, 1]} : vector<8x384xf32> to vector<8x32xf32>
    %c2_376 = arith.constant 2 : index
    %c0_377 = arith.constant 0 : index
    %c0_378 = arith.constant 0 : index
    %799 = vector.load %arg3[%c2_376, %c0_377, %c0_378] : memref<3x16x32xf32, #tpu.memory_space<vmem>>, vector<1x16x32xf32>
    %800 = vector.shape_cast %799 : vector<1x16x32xf32> to vector<16x32xf32>
    %cst_379 = arith.constant dense<0.000000e+00> : vector<8x32xf32>
    %801 = tpu.matmul %797, %800, %cst_379 {dimension_numbers = #tpu.dot_dimension_numbers<[1], [0], [0], [1], [0, 0, 1, 1], [], []>} : vector<8x16xf32>, vector<16x32xf32>, vector<8x32xf32> -> vector<8x32xf32>
    %802 = arith.mulf %801, %801 : vector<8x32xf32>
    %cst_380 = arith.constant dense<0.000000e+00> : vector<8xf32>
    %803 = vector.multi_reduction <add>, %802, %cst_380 [1] : vector<8x32xf32> to vector<8xf32>
    %804 = vector.shape_cast %803 : vector<8xf32> to vector<8x1xf32>
    %cst_381 = arith.constant 1.000000e-03 : f32
    %805 = vector.broadcast %cst_381 : f32 to vector<8x1xf32>
    %806 = arith.addf %804, %805 : vector<8x1xf32>
    %807 = math.rsqrt %806 : vector<8x1xf32>
    %808 = vector.broadcast %807 : vector<8x1xf32> to vector<8x32xf32>
    %809 = arith.mulf %801, %808 : vector<8x32xf32>
    %cst_382 = arith.constant 0.000000e+00 : f32
    %810 = vector.broadcast %cst_382 : f32 to vector<8x32xf32>
    %811 = arith.maximumf %809, %810 : vector<8x32xf32>
    %812 = arith.addf %811, %798 : vector<8x32xf32>
    %cst_383 = arith.constant 1.000000e-01 : f32
    %813 = vector.broadcast %cst_383 : f32 to vector<8x32xf32>
    %814 = arith.mulf %813, %812 : vector<8x32xf32>
    %815 = arith.addf %781, %814 : vector<8x32xf32>
    %c2_384 = arith.constant 2 : index
    %c0_385 = arith.constant 0 : index
    %c0_386 = arith.constant 0 : index
    %816 = vector.load %arg4[%c2_384, %c0_385, %c0_386] : memref<3x32x16xf32, #tpu.memory_space<vmem>>, vector<1x32x16xf32>
    %817 = vector.shape_cast %816 : vector<1x32x16xf32> to vector<32x16xf32>
    %cst_387 = arith.constant dense<0.000000e+00> : vector<8x16xf32>
    %818 = tpu.matmul %815, %817, %cst_387 {dimension_numbers = #tpu.dot_dimension_numbers<[1], [0], [0], [1], [0, 0, 1, 1], [], []>} : vector<8x32xf32>, vector<32x16xf32>, vector<8x16xf32> -> vector<8x16xf32>
    %819 = arith.mulf %818, %818 : vector<8x16xf32>
    %cst_388 = arith.constant dense<0.000000e+00> : vector<8xf32>
    %820 = vector.multi_reduction <add>, %819, %cst_388 [1] : vector<8x16xf32> to vector<8xf32>
    %821 = vector.shape_cast %820 : vector<8xf32> to vector<8x1xf32>
    %cst_389 = arith.constant 1.000000e-03 : f32
    %822 = vector.broadcast %cst_389 : f32 to vector<8x1xf32>
    %823 = arith.addf %821, %822 : vector<8x1xf32>
    %824 = math.rsqrt %823 : vector<8x1xf32>
    %825 = vector.broadcast %824 : vector<8x1xf32> to vector<8x16xf32>
    %826 = arith.mulf %818, %825 : vector<8x16xf32>
    %cst_390 = arith.constant 0.000000e+00 : f32
    %827 = vector.broadcast %cst_390 : f32 to vector<8x16xf32>
    %828 = arith.maximumf %826, %827 : vector<8x16xf32>
    %cst_391 = arith.constant 1.000000e-01 : f32
    %829 = vector.broadcast %cst_391 : f32 to vector<8x16xf32>
    %830 = arith.mulf %829, %828 : vector<8x16xf32>
    %831 = arith.subf %797, %830 : vector<8x16xf32>
    %832 = tpu.concatenate %509, %611, %713, %815 in 1 : vector<8x32xf32>, vector<8x32xf32>, vector<8x32xf32>, vector<8x32xf32> -> vector<8x128xf32>
    %833 = arith.index_cast %c1_i32 : i32 to index
    %c0_392 = arith.constant 0 : index
    %c0_393 = arith.constant 0 : index
    %834 = vector.load %arg5[%833, %c0_392, %c0_393] : memref<2x8x128xf32, #tpu.memory_space<vmem>>, vector<1x8x128xf32>
    %835 = vector.shape_cast %834 : vector<1x8x128xf32> to vector<8x128xf32>
    %836 = vector.shape_cast %832 : vector<8x128xf32> to vector<1x8x128xf32>
    tpu.vector_store %arg5[%833, %c0_392, %c0_393], %836 {strides = array<i32>} : memref<2x8x128xf32, #tpu.memory_space<vmem>>, vector<1x8x128xf32>,
    %c2_i32 = arith.constant 2 : i32
    %c0_394 = arith.constant 0 : index
    %c0_395 = arith.constant 0 : index
    %837 = vector.load %arg6[%c0_394, %c0_395] : memref<8x16xf32, #tpu.memory_space<vmem>>, vector<8x16xf32>
    tpu.vector_store %arg6[%c0_394, %c0_395], %831 {strides = array<i32>} : memref<8x16xf32, #tpu.memory_space<vmem>>, vector<8x16xf32>,
    %c0_396 = arith.constant 0 : index
    %c0_397 = arith.constant 0 : index
    %838 = vector.load %arg7[%c0_396, %c0_397] : memref<8x32xf32, #tpu.memory_space<vmem>>, vector<8x32xf32>
    tpu.vector_store %arg7[%c0_396, %c0_397], %815 {strides = array<i32>} : memref<8x32xf32, #tpu.memory_space<vmem>>, vector<8x32xf32>,
    return
  }
  func.func @transform_0(%arg0: i32, %arg1: i32) -> (i32, i32, i32) {
    %c0_i32 = arith.constant 0 : i32
    %c0_i32_0 = arith.constant 0 : i32
    return %arg1, %arg0, %c0_i32 : i32, i32, i32
  }
  func.func @transform_1(%arg0: i32, %arg1: i32) -> (i32, i32, i32) {
    %c0_i32 = arith.constant 0 : i32
    %c0_i32_0 = arith.constant 0 : i32
    %c0_i32_1 = arith.constant 0 : i32
    %c0_i32_2 = arith.constant 0 : i32
    return %c0_i32, %c0_i32_0, %c0_i32_1 : i32, i32, i32
  }
  func.func @transform_2(%arg0: i32, %arg1: i32) -> (i32, i32, i32) {
    %c0_i32 = arith.constant 0 : i32
    %c0_i32_0 = arith.constant 0 : i32
    %c0_i32_1 = arith.constant 0 : i32
    %c0_i32_2 = arith.constant 0 : i32
    return %c0_i32, %c0_i32_0, %c0_i32_1 : i32, i32, i32
  }
  func.func @transform_3(%arg0: i32, %arg1: i32) -> (i32, i32, i32) {
    %c0_i32 = arith.constant 0 : i32
    %c0_i32_0 = arith.constant 0 : i32
    return %arg1, %arg0, %c0_i32 : i32, i32, i32
  }
}

</mosaic_0001>

<llo_original>
// kernel: tpu_custom_call.1
$region0: #{tpu_custom_call.1}
  #allocation0 [shape = 'u32[]', space=smem, size = 0x4, offset = 0x4, fixed_abs, tag = 'smem constant byte address 0x4 - core index']
  #allocation1 [shape = 'u32[144,128]{1,0:T(1,128)}', space=vmem, size = 0x12000, scoped, tag = 'internal scratch']
  #allocation2 [shape = 'f32[8,16]{1,0:T(8,128)}', space=vmem, size = 0x1000, scoped, tag = 'scratch operand']
  #allocation3 [shape = 'f32[8,32]{1,0:T(8,128)}', space=vmem, size = 0x1000, scoped, tag = 'scratch operand']
  %s0 = inlined_call_operand.vmem [shape: f32[2,8,384], index: 0, kind: input, shape index: {}]
  %s1 = inlined_call_operand.vmem [shape: f32[3,16,32], index: 1, kind: input, shape index: {}]
  %s2 = inlined_call_operand.vmem [shape: f32[3,32,16], index: 2, kind: input, shape index: {}]
  %s3 = inlined_call_operand.hbm [shape: f32[2,8,128], index: 3, kind: output, shape index: {}]
  %s4 = sld [smem:[#allocation0]]
  $region26: #{tpu_custom_call.1} parent=0
    _
  %s6 = ssub.s32 1, %s4
  %s7 = scalar_select 0, %s6, %s4
  $region1: #{tpu_custom_call.1} parent=0
    #allocation4 [shape = 'u8[8192]{0}', space=vmem, size = 0x2000, scoped, tag = 'output window, operand 0, single buffered']
    #allocation5 [shape = 's32[1]{0}', space=sflag, size = 0x4, scoped, tag = 'scoped memory for tpu_custom_call.1']
    %8 = vsyncpa [#allocation5], 0
    // Predicated region
    $region2: #{tpu_custom_call.1} parent=1 // pred_check
      _
    $region3: #{tpu_custom_call.1} parent=1 // pred_check_branch
      %10 = sbr.rel (0) target = $region5
    $region4: #{tpu_custom_call.1} parent=1 // pred_region
      _
    $region5: #{tpu_custom_call.1} parent=1 // pred_fallthru
      _
    // Predicated region
    $region6: #{tpu_custom_call.1} parent=1 // pred_check
      _
    $region7: #{tpu_custom_call.1} parent=1 // pred_check_branch
      %12 = sbr.rel (0) target = $region9
    $region8: #{tpu_custom_call.1} parent=1 // pred_region
      _
    $region9: #{tpu_custom_call.1} parent=1 // pred_fallthru
      _
    // Predicated region
    $region10: #{tpu_custom_call.1} parent=1 // pred_check
      _
    $region11: #{tpu_custom_call.1} parent=1 // pred_check_branch
      %14 = sbr.rel (0) target = $region13
    $region12: #{tpu_custom_call.1} parent=1 // pred_region
      _
    $region13: #{tpu_custom_call.1} parent=1 // pred_fallthru
      _
    %p15 = scmp.eq.s32.totalorder 0, 0
    // Predicated region
    $region14: #{tpu_custom_call.1} parent=1 // pred_check
      %p16 = pneg %p15
    $region15: #{tpu_custom_call.1} parent=1 // pred_check_branch
      %18 = sbr.rel (%p16) target = $region17
    $region16: #{tpu_custom_call.1} parent=1 // pred_region
      %vm19 = vcmask 130048
      %20 = vst.msk [vmem:[#allocation2] sm:$0xff] %vm19, 0.0
      %vm21 = vcmask 261120
      %22 = vst.msk [vmem:[#allocation3] sm:$0xff] %vm21, 0.0
    $region17: #{tpu_custom_call.1} parent=1 // pred_fallthru
      _
    %v23 = vld [vmem:[#allocation2] sm:$0xff]
    %v24 = vld [vmem:[#allocation3] sm:$0xff]
    %v25 = vld [vmem:[%s0] sm:$0xff]
    %v26 = vld [vmem:[%s0 + $0x8] sm:$0xff]
    %v27 = vld [vmem:[%s0 + $0x10] sm:$0xff]
    %v28 = vld [vmem:[%s1] sm:$0xff]
    %v29 = vld [vmem:[%s1 + $0x8] sm:$0xff]
    %vm30 = vcmask 130048
    %v32 = vsel %vm30, %v23, 0
    %34 = vmatprep.subr.mxu0 0.0
    %35 = vmatpush1.msra.mxu0 %v28
    %36 = vmatprep.subr.mxu0 0.0
    %37 = vmatpush1.msra.mxu0 %v29
    %38 = vmatprep.subr.mxu0 0.0
    %39 = vmatpush1.msra.mxu0 0.0
    %40 = vmatprep.subr.mxu0 0.0
    %41 = vmatpush1.msra.mxu0 0.0
    %42 = vmatprep.subr.mxu0 0.0
    %43 = vmatpush1.msra.mxu0 0.0
    %44 = vmatprep.subr.mxu0 0.0
    %45 = vmatpush1.msra.mxu0 0.0
    %46 = vmatprep.subr.mxu0 0.0
    %47 = vmatpush1.msra.mxu0 0.0
    %48 = vmatprep.subr.mxu0 0.0
    %49 = vmatpush1.msra.mxu0 0.0
    %50 = vmatprep.subr.mxu0 0.0
    %51 = vmatpush1.msra.mxu0 0.0
    %52 = vmatprep.subr.mxu0 0.0
    %53 = vmatpush1.msra.mxu0 0.0
    %54 = vmatprep.subr.mxu0 0.0
    %55 = vmatpush1.msra.mxu0 0.0
    %56 = vmatprep.subr.mxu0 0.0
    %57 = vmatpush1.msra.mxu0 0.0
    %58 = vmatprep.subr.mxu0 0.0
    %59 = vmatpush1.msra.mxu0 0.0
    %60 = vmatprep.subr.mxu0 0.0
    %61 = vmatpush1.msra.mxu0 0.0
    %62 = vmatprep.subr.mxu0 0.0
    %63 = vmatpush1.msra.mxu0 0.0
    %64 = vmatprep.subr.mxu0 0.0
    %65 = vmatpush1.msra.mxu0 0.0
    %66 = vmatprep.subr.mxu0 0.0
    %67 = vmatpush1.msra.mxu0 0.0
    %68 = vmatprep.subr.mxu0 0.0
    %69 = vmatpush1.msra.mxu0 0.0
    %70 = vmatprep.subr.mxu0 0.0
    %71 = vmatpush1.msra.mxu0 0.0
    %72 = vmatprep.subr.mxu0 0.0
    %73 = vmatpush1.msra.mxu0 0.0
    %74 = vmatprep.subr.mxu0 0.0
    %75 = vmatpush1.msra.mxu0 0.0
    %76 = vmatprep.subr.mxu0 0.0
    %77 = vmatpush1.msra.mxu0 0.0
    %78 = vmatprep.subr.mxu0 0.0
    %79 = vmatpush1.msra.mxu0 0.0
    %80 = vmatprep.subr.mxu0 0.0
    %81 = vmatpush1.msra.mxu0 0.0
    %82 = vmatprep.subr.mxu0 0.0
    %83 = vmatpush1.msra.mxu0 0.0
    %84 = vmatprep.subr.mxu0 0.0
    %85 = vmatpush1.msra.mxu0 0.0
    %86 = vmatprep.subr.mxu0 0.0
    %87 = vmatpush1.msra.mxu0 0.0
    %88 = vmatprep.subr.mxu0 0.0
    %89 = vmatpush1.msra.mxu0 0.0
    %90 = vmatprep.subr.mxu0 0.0
    %91 = vmatpush1.msra.mxu0 0.0
    %92 = vmatprep.subr.mxu0 0.0
    %93 = vmatpush1.msra.mxu0 0.0
    %94 = vmatprep.subr.mxu0 0.0
    %95 = vmatpush1.msra.mxu0 0.0
    %96 = vmatprep.subr.mxu0 0.0
    %97 = vmatpush1.msra.mxu0 0.0
    %98 = vmatprep.mubr.f32.mxu0 0.0
    %99 = vmatmul.mubr.f32.gmra.mrb[0].mxu0 %v32
    %v100 = vpop.f32.mrb[0].mxu0
    %v101 = vadd.f32 0.0, %v100
    %v102 = vpop.f32.mrb[0].mxu0
    %103 = vdwg.mxu0
    %v104 = vmul.f32 %v101, %v101
    %vm105 = vcmask 261120
    %v106 = vsel %vm105, %v104, 0.0
    %107 = vadd.xlane.f32.xlu0 %v106
    %v108 = vpop.xlane.xlu0 %107
    %v109 = vadd.f32 %v108, 0.001
    %v110 = vrsqrt.pop %v109
    %v111 = vmul.f32 %v101, %v110
    %v112 = vmax.f32 %v111, 0.0
    %v113 = vadd.f32 %v112, %v25
    %v114 = vmul.f32 %v113, 0.1
    %v115 = vadd.f32 %v24, %v114
    %v116 = vld [vmem:[%s2] sm:$0xff]
    %v117 = vld [vmem:[%s2 + $0x8] sm:$0xff]
    %v118 = vld [vmem:[%s2 + $0x10] sm:$0xff]
    %v119 = vld [vmem:[%s2 + $0x18] sm:$0xff]
    %v121 = vsel %vm105, %v115, 0
    %123 = vmatprep.subr.mxu0 0.0
    %124 = vmatpush1.msra.mxu0 %v116
    %125 = vmatprep.subr.mxu0 0.0
    %126 = vmatpush1.msra.mxu0 %v117
    %127 = vmatprep.subr.mxu0 0.0
    %128 = vmatpush1.msra.mxu0 %v118
    %129 = vmatprep.subr.mxu0 0.0
    %130 = vmatpush1.msra.mxu0 %v119
    %131 = vmatprep.subr.mxu0 0.0
    %132 = vmatpush1.msra.mxu0 0.0
    %133 = vmatprep.subr.mxu0 0.0
    %134 = vmatpush1.msra.mxu0 0.0
    %135 = vmatprep.subr.mxu0 0.0
    %136 = vmatpush1.msra.mxu0 0.0
    %137 = vmatprep.subr.mxu0 0.0
    %138 = vmatpush1.msra.mxu0 0.0
    %139 = vmatprep.subr.mxu0 0.0
    %140 = vmatpush1.msra.mxu0 0.0
    %141 = vmatprep.subr.mxu0 0.0
    %142 = vmatpush1.msra.mxu0 0.0
    %143 = vmatprep.subr.mxu0 0.0
    %144 = vmatpush1.msra.mxu0 0.0
    %145 = vmatprep.subr.mxu0 0.0
    %146 = vmatpush1.msra.mxu0 0.0
    %147 = vmatprep.subr.mxu0 0.0
    %148 = vmatpush1.msra.mxu0 0.0
    %149 = vmatprep.subr.mxu0 0.0
    %150 = vmatpush1.msra.mxu0 0.0
    %151 = vmatprep.subr.mxu0 0.0
    %152 = vmatpush1.msra.mxu0 0.0
    %153 = vmatprep.subr.mxu0 0.0
    %154 = vmatpush1.msra.mxu0 0.0
    %155 = vmatprep.subr.mxu0 0.0
    %156 = vmatpush1.msra.mxu0 0.0
    %157 = vmatprep.subr.mxu0 0.0
    %158 = vmatpush1.msra.mxu0 0.0
    %159 = vmatprep.subr.mxu0 0.0
    %160 = vmatpush1.msra.mxu0 0.0
    %161 = vmatprep.subr.mxu0 0.0
    %162 = vmatpush1.msra.mxu0 0.0
    %163 = vmatprep.subr.mxu0 0.0
    %164 = vmatpush1.msra.mxu0 0.0
    %165 = vmatprep.subr.mxu0 0.0
    %166 = vmatpush1.msra.mxu0 0.0
    %167 = vmatprep.subr.mxu0 0.0
    %168 = vmatpush1.msra.mxu0 0.0
    %169 = vmatprep.subr.mxu0 0.0
    %170 = vmatpush1.msra.mxu0 0.0
    %171 = vmatprep.subr.mxu0 0.0
    %172 = vmatpush1.msra.mxu0 0.0
    %173 = vmatprep.subr.mxu0 0.0
    %174 = vmatpush1.msra.mxu0 0.0
    %175 = vmatprep.subr.mxu0 0.0
    %176 = vmatpush1.msra.mxu0 0.0
    %177 = vmatprep.subr.mxu0 0.0
    %178 = vmatpush1.msra.mxu0 0.0
    %179 = vmatprep.subr.mxu0 0.0
    %180 = vmatpush1.msra.mxu0 0.0
    %181 = vmatprep.subr.mxu0 0.0
    %182 = vmatpush1.msra.mxu0 0.0
    %183 = vmatprep.subr.mxu0 0.0
    %184 = vmatpush1.msra.mxu0 0.0
    %185 = vmatprep.subr.mxu0 0.0
    %186 = vmatpush1.msra.mxu0 0.0
    %187 = vmatprep.mubr.f32.mxu0 0.0
    %188 = vmatmul.mubr.f32.gmra.mrb[0].mxu0 %v121
    %v189 = vpop.f32.mrb[0].mxu0
    %v190 = vadd.f32 0.0, %v189
    %v191 = vpop.f32.mrb[0].mxu0
    %192 = vdwg.mxu0
    %v193 = vmul.f32 %v190, %v190
    %v194 = vsel %vm30, %v193, 0.0
    %195 = vadd.xlane.f32.xlu0 %v194
    %v196 = vpop.xlane.xlu0 %195
    %v197 = vadd.f32 %v196, 0.001
    %v198 = vrsqrt.pop %v197
    %v199 = vmul.f32 %v190, %v198
    %v200 = vmax.f32 %v199, 0.0
    %v201 = vmul.f32 %v200, 0.1
    %v202 = vsub.f32 %v23, %v201
    %s203 = scalar_lea.vmem %s1, 16
    %v204 = vld [vmem:[%s203] sm:$0xff]
    %v205 = vld [vmem:[%s203 + $0x8] sm:$0xff]
    %v207 = vsel %vm30, %v202, 0
    %209 = vmatprep.subr.mxu0 0.0
    %210 = vmatpush1.msra.mxu0 %v204
    %211 = vmatprep.subr.mxu0 0.0
    %212 = vmatpush1.msra.mxu0 %v205
    %213 = vmatprep.subr.mxu0 0.0
    %214 = vmatpush1.msra.mxu0 0.0
    %215 = vmatprep.subr.mxu0 0.0
    %216 = vmatpush1.msra.mxu0 0.0
    %217 = vmatprep.subr.mxu0 0.0
    %218 = vmatpush1.msra.mxu0 0.0
    %219 = vmatprep.subr.mxu0 0.0
    %220 = vmatpush1.msra.mxu0 0.0
    %221 = vmatprep.subr.mxu0 0.0
    %222 = vmatpush1.msra.mxu0 0.0
    %223 = vmatprep.subr.mxu0 0.0
    %224 = vmatpush1.msra.mxu0 0.0
    %225 = vmatprep.subr.mxu0 0.0
    %226 = vmatpush1.msra.mxu0 0.0
    %227 = vmatprep.subr.mxu0 0.0
    %228 = vmatpush1.msra.mxu0 0.0
    %229 = vmatprep.subr.mxu0 0.0
    %230 = vmatpush1.msra.mxu0 0.0
    %231 = vmatprep.subr.mxu0 0.0
    %232 = vmatpush1.msra.mxu0 0.0
    %233 = vmatprep.subr.mxu0 0.0
    %234 = vmatpush1.msra.mxu0 0.0
    %235 = vmatprep.subr.mxu0 0.0
    %236 = vmatpush1.msra.mxu0 0.0
    %237 = vmatprep.subr.mxu0 0.0
    %238 = vmatpush1.msra.mxu0 0.0
    %239 = vmatprep.subr.mxu0 0.0
    %240 = vmatpush1.msra.mxu0 0.0
    %241 = vmatprep.subr.mxu0 0.0
    %242 = vmatpush1.msra.mxu0 0.0
    %243 = vmatprep.subr.mxu0 0.0
    %244 = vmatpush1.msra.mxu0 0.0
    %245 = vmatprep.subr.mxu0 0.0
    %246 = vmatpush1.msra.mxu0 0.0
    %247 = vmatprep.subr.mxu0 0.0
    %248 = vmatpush1.msra.mxu0 0.0
    %249 = vmatprep.subr.mxu0 0.0
    %250 = vmatpush1.msra.mxu0 0.0
    %251 = vmatprep.subr.mxu0 0.0
    %252 = vmatpush1.msra.mxu0 0.0
    %253 = vmatprep.subr.mxu0 0.0
    %254 = vmatpush1.msra.mxu0 0.0
    %255 = vmatprep.subr.mxu0 0.0
    %256 = vmatpush1.msra.mxu0 0.0
    %257 = vmatprep.subr.mxu0 0.0
    %258 = vmatpush1.msra.mxu0 0.0
    %259 = vmatprep.subr.mxu0 0.0
    %260 = vmatpush1.msra.mxu0 0.0
    %261 = vmatprep.subr.mxu0 0.0
    %262 = vmatpush1.msra.mxu0 0.0
    %263 = vmatprep.subr.mxu0 0.0
    %264 = vmatpush1.msra.mxu0 0.0
    %265 = vmatprep.subr.mxu0 0.0
    %266 = vmatpush1.msra.mxu0 0.0
    %267 = vmatprep.subr.mxu0 0.0
    %268 = vmatpush1.msra.mxu0 0.0
    %269 = vmatprep.subr.mxu0 0.0
    %270 = vmatpush1.msra.mxu0 0.0
    %271 = vmatprep.subr.mxu0 0.0
    %272 = vmatpush1.msra.mxu0 0.0
    %273 = vmatprep.mubr.f32.mxu0 0.0
    %274 = vmatmul.mubr.f32.gmra.mrb[0].mxu0 %v207
    %v275 = vpop.f32.mrb[0].mxu0
    %v276 = vadd.f32 0.0, %v275
    %v277 = vpop.f32.mrb[0].mxu0
    %278 = vdwg.mxu0
    %v279 = vmul.f32 %v276, %v276
    %v280 = vsel %vm105, %v279, 0.0
    %281 = vadd.xlane.f32.xlu0 %v280
    %v282 = vpop.xlane.xlu0 %281
    %v283 = vadd.f32 %v282, 0.001
    %v284 = vrsqrt.pop %v283
    %v285 = vmul.f32 %v276, %v284
    %v286 = vmax.f32 %v285, 0.0
    %288 = vrot.lane.b32.xlu0 %v25, 96
    %v289 = vpop.permute.xlu0 %288
    %v291 = vadd.f32 %v286, %v289
    %v292 = vmul.f32 %v291, 0.1
    %v293 = vadd.f32 %v115, %v292
    %s294 = scalar_lea.vmem %s2, 32
    %v295 = vld [vmem:[%s294] sm:$0xff]
    %v296 = vld [vmem:[%s294 + $0x8] sm:$0xff]
    %v297 = vld [vmem:[%s294 + $0x10] sm:$0xff]
    %v298 = vld [vmem:[%s294 + $0x18] sm:$0xff]
    %v300 = vsel %vm105, %v293, 0
    %302 = vmatprep.subr.mxu0 0.0
    %303 = vmatpush1.msra.mxu0 %v295
    %304 = vmatprep.subr.mxu0 0.0
    %305 = vmatpush1.msra.mxu0 %v296
    %306 = vmatprep.subr.mxu0 0.0
    %307 = vmatpush1.msra.mxu0 %v297
    %308 = vmatprep.subr.mxu0 0.0
    %309 = vmatpush1.msra.mxu0 %v298
    %310 = vmatprep.subr.mxu0 0.0
    %311 = vmatpush1.msra.mxu0 0.0
    %312 = vmatprep.subr.mxu0 0.0
    %313 = vmatpush1.msra.mxu0 0.0
    %314 = vmatprep.subr.mxu0 0.0
    %315 = vmatpush1.msra.mxu0 0.0
    %316 = vmatprep.subr.mxu0 0.0
    %317 = vmatpush1.msra.mxu0 0.0
    %318 = vmatprep.subr.mxu0 0.0
    %319 = vmatpush1.msra.mxu0 0.0
    %320 = vmatprep.subr.mxu0 0.0
    %321 = vmatpush1.msra.mxu0 0.0
    %322 = vmatprep.subr.mxu0 0.0
    %323 = vmatpush1.msra.mxu0 0.0
    %324 = vmatprep.subr.mxu0 0.0
    %325 = vmatpush1.msra.mxu0 0.0
    %326 = vmatprep.subr.mxu0 0.0
    %327 = vmatpush1.msra.mxu0 0.0
    %328 = vmatprep.subr.mxu0 0.0
    %329 = vmatpush1.msra.mxu0 0.0
    %330 = vmatprep.subr.mxu0 0.0
    %331 = vmatpush1.msra.mxu0 0.0
    %332 = vmatprep.subr.mxu0 0.0
    %333 = vmatpush1.msra.mxu0 0.0
    %334 = vmatprep.subr.mxu0 0.0
    %335 = vmatpush1.msra.mxu0 0.0
    %336 = vmatprep.subr.mxu0 0.0
    %337 = vmatpush1.msra.mxu0 0.0
    %338 = vmatprep.subr.mxu0 0.0
    %339 = vmatpush1.msra.mxu0 0.0
    %340 = vmatprep.subr.mxu0 0.0
    %341 = vmatpush1.msra.mxu0 0.0
    %342 = vmatprep.subr.mxu0 0.0
    %343 = vmatpush1.msra.mxu0 0.0
    %344 = vmatprep.subr.mxu0 0.0
    %345 = vmatpush1.msra.mxu0 0.0
    %346 = vmatprep.subr.mxu0 0.0
    %347 = vmatpush1.msra.mxu0 0.0
    %348 = vmatprep.subr.mxu0 0.0
    %349 = vmatpush1.msra.mxu0 0.0
    %350 = vmatprep.subr.mxu0 0.0
    %351 = vmatpush1.msra.mxu0 0.0
    %352 = vmatprep.subr.mxu0 0.0
    %353 = vmatpush1.msra.mxu0 0.0
    %354 = vmatprep.subr.mxu0 0.0
    %355 = vmatpush1.msra.mxu0 0.0
    %356 = vmatprep.subr.mxu0 0.0
    %357 = vmatpush1.msra.mxu0 0.0
    %358 = vmatprep.subr.mxu0 0.0
    %359 = vmatpush1.msra.mxu0 0.0
    %360 = vmatprep.subr.mxu0 0.0
    %361 = vmatpush1.msra.mxu0 0.0
    %362 = vmatprep.subr.mxu0 0.0
    %363 = vmatpush1.msra.mxu0 0.0
    %364 = vmatprep.subr.mxu0 0.0
    %365 = vmatpush1.msra.mxu0 0.0
    %366 = vmatprep.mubr.f32.mxu0 0.0
    %367 = vmatmul.mubr.f32.gmra.mrb[0].mxu0 %v300
    %v368 = vpop.f32.mrb[0].mxu0
    %v369 = vadd.f32 0.0, %v368
    %v370 = vpop.f32.mrb[0].mxu0
    %371 = vdwg.mxu0
    %v372 = vmul.f32 %v369, %v369
    %v373 = vsel %vm30, %v372, 0.0
    %374 = vadd.xlane.f32.xlu0 %v373
    %v375 = vpop.xlane.xlu0 %374
    %v376 = vadd.f32 %v375, 0.001
    %v377 = vrsqrt.pop %v376
    %v378 = vmul.f32 %v369, %v377
    %v379 = vmax.f32 %v378, 0.0
    %v380 = vmul.f32 %v379, 0.1
    %v381 = vsub.f32 %v202, %v380
    %s382 = scalar_lea.vmem %s1, 32
    %v383 = vld [vmem:[%s382] sm:$0xff]
    %v384 = vld [vmem:[%s382 + $0x8] sm:$0xff]
    %v386 = vsel %vm30, %v381, 0
    %388 = vmatprep.subr.mxu0 0.0
    %389 = vmatpush1.msra.mxu0 %v383
    %390 = vmatprep.subr.mxu0 0.0
    %391 = vmatpush1.msra.mxu0 %v384
    %392 = vmatprep.subr.mxu0 0.0
    %393 = vmatpush1.msra.mxu0 0.0
    %394 = vmatprep.subr.mxu0 0.0
    %395 = vmatpush1.msra.mxu0 0.0
    %396 = vmatprep.subr.mxu0 0.0
    %397 = vmatpush1.msra.mxu0 0.0
    %398 = vmatprep.subr.mxu0 0.0
    %399 = vmatpush1.msra.mxu0 0.0
    %400 = vmatprep.subr.mxu0 0.0
    %401 = vmatpush1.msra.mxu0 0.0
    %402 = vmatprep.subr.mxu0 0.0
    %403 = vmatpush1.msra.mxu0 0.0
    %404 = vmatprep.subr.mxu0 0.0
    %405 = vmatpush1.msra.mxu0 0.0
    %406 = vmatprep.subr.mxu0 0.0
    %407 = vmatpush1.msra.mxu0 0.0
    %408 = vmatprep.subr.mxu0 0.0
    %409 = vmatpush1.msra.mxu0 0.0
    %410 = vmatprep.subr.mxu0 0.0
    %411 = vmatpush1.msra.mxu0 0.0
    %412 = vmatprep.subr.mxu0 0.0
    %413 = vmatpush1.msra.mxu0 0.0
    %414 = vmatprep.subr.mxu0 0.0
    %415 = vmatpush1.msra.mxu0 0.0
    %416 = vmatprep.subr.mxu0 0.0
    %417 = vmatpush1.msra.mxu0 0.0
    %418 = vmatprep.subr.mxu0 0.0
    %419 = vmatpush1.msra.mxu0 0.0
    %420 = vmatprep.subr.mxu0 0.0
    %421 = vmatpush1.msra.mxu0 0.0
    %422 = vmatprep.subr.mxu0 0.0
    %423 = vmatpush1.msra.mxu0 0.0
    %424 = vmatprep.subr.mxu0 0.0
    %425 = vmatpush1.msra.mxu0 0.0
    %426 = vmatprep.subr.mxu0 0.0
    %427 = vmatpush1.msra.mxu0 0.0
    %428 = vmatprep.subr.mxu0 0.0
    %429 = vmatpush1.msra.mxu0 0.0
    %430 = vmatprep.subr.mxu0 0.0
    %431 = vmatpush1.msra.mxu0 0.0
    %432 = vmatprep.subr.mxu0 0.0
    %433 = vmatpush1.msra.mxu0 0.0
    %434 = vmatprep.subr.mxu0 0.0
    %435 = vmatpush1.msra.mxu0 0.0
    %436 = vmatprep.subr.mxu0 0.0
    %437 = vmatpush1.msra.mxu0 0.0
    %438 = vmatprep.subr.mxu0 0.0
    %439 = vmatpush1.msra.mxu0 0.0
    %440 = vmatprep.subr.mxu0 0.0
    %441 = vmatpush1.msra.mxu0 0.0
    %442 = vmatprep.subr.mxu0 0.0
    %443 = vmatpush1.msra.mxu0 0.0
    %444 = vmatprep.subr.mxu0 0.0
    %445 = vmatpush1.msra.mxu0 0.0
    %446 = vmatprep.subr.mxu0 0.0
    %447 = vmatpush1.msra.mxu0 0.0
    %448 = vmatprep.subr.mxu0 0.0
    %449 = vmatpush1.msra.mxu0 0.0
    %450 = vmatprep.subr.mxu0 0.0
    %451 = vmatpush1.msra.mxu0 0.0
    %452 = vmatprep.mubr.f32.mxu0 0.0
    %453 = vmatmul.mubr.f32.gmra.mrb[0].mxu0 %v386
    %v454 = vpop.f32.mrb[0].mxu0
    %v455 = vadd.f32 0.0, %v454
    %v456 = vpop.f32.mrb[0].mxu0
    %457 = vdwg.mxu0
    %v458 = vmul.f32 %v455, %v455
    %v459 = vsel %vm105, %v458, 0.0
    %460 = vadd.xlane.f32.xlu0 %v459
    %v461 = vpop.xlane.xlu0 %460
    %v462 = vadd.f32 %v461, 0.001
    %v463 = vrsqrt.pop %v462
    %v464 = vmul.f32 %v455, %v463
    %v465 = vmax.f32 %v464, 0.0
    %466 = vrot.lane.b32.xlu0 %v25, 64
    %v467 = vpop.permute.xlu0 %466
    %v469 = vadd.f32 %v465, %v467
    %v470 = vmul.f32 %v469, 0.1
    %v471 = vadd.f32 %v293, %v470
    %s472 = scalar_lea.vmem %s2, 64
    %v473 = vld [vmem:[%s472] sm:$0xff]
    %v474 = vld [vmem:[%s472 + $0x8] sm:$0xff]
    %v475 = vld [vmem:[%s472 + $0x10] sm:$0xff]
    %v476 = vld [vmem:[%s472 + $0x18] sm:$0xff]
    %v478 = vsel %vm105, %v471, 0
    %480 = vmatprep.subr.mxu0 0.0
    %481 = vmatpush1.msra.mxu0 %v473
    %482 = vmatprep.subr.mxu0 0.0
    %483 = vmatpush1.msra.mxu0 %v474
    %484 = vmatprep.subr.mxu0 0.0
    %485 = vmatpush1.msra.mxu0 %v475
    %486 = vmatprep.subr.mxu0 0.0
    %487 = vmatpush1.msra.mxu0 %v476
    %488 = vmatprep.subr.mxu0 0.0
    %489 = vmatpush1.msra.mxu0 0.0
    %490 = vmatprep.subr.mxu0 0.0
    %491 = vmatpush1.msra.mxu0 0.0
    %492 = vmatprep.subr.mxu0 0.0
    %493 = vmatpush1.msra.mxu0 0.0
    %494 = vmatprep.subr.mxu0 0.0
    %495 = vmatpush1.msra.mxu0 0.0
    %496 = vmatprep.subr.mxu0 0.0
    %497 = vmatpush1.msra.mxu0 0.0
    %498 = vmatprep.subr.mxu0 0.0
    %499 = vmatpush1.msra.mxu0 0.0
    %500 = vmatprep.subr.mxu0 0.0
    %501 = vmatpush1.msra.mxu0 0.0
    %502 = vmatprep.subr.mxu0 0.0
    %503 = vmatpush1.msra.mxu0 0.0
    %504 = vmatprep.subr.mxu0 0.0
    %505 = vmatpush1.msra.mxu0 0.0
    %506 = vmatprep.subr.mxu0 0.0
    %507 = vmatpush1.msra.mxu0 0.0
    %508 = vmatprep.subr.mxu0 0.0
    %509 = vmatpush1.msra.mxu0 0.0
    %510 = vmatprep.subr.mxu0 0.0
    %511 = vmatpush1.msra.mxu0 0.0
    %512 = vmatprep.subr.mxu0 0.0
    %513 = vmatpush1.msra.mxu0 0.0
    %514 = vmatprep.subr.mxu0 0.0
    %515 = vmatpush1.msra.mxu0 0.0
    %516 = vmatprep.subr.mxu0 0.0
    %517 = vmatpush1.msra.mxu0 0.0
    %518 = vmatprep.subr.mxu0 0.0
    %519 = vmatpush1.msra.mxu0 0.0
    %520 = vmatprep.subr.mxu0 0.0
    %521 = vmatpush1.msra.mxu0 0.0
    %522 = vmatprep.subr.mxu0 0.0
    %523 = vmatpush1.msra.mxu0 0.0
    %524 = vmatprep.subr.mxu0 0.0
    %525 = vmatpush1.msra.mxu0 0.0
    %526 = vmatprep.subr.mxu0 0.0
    %527 = vmatpush1.msra.mxu0 0.0
    %528 = vmatprep.subr.mxu0 0.0
    %529 = vmatpush1.msra.mxu0 0.0
    %530 = vmatprep.subr.mxu0 0.0
    %531 = vmatpush1.msra.mxu0 0.0
    %532 = vmatprep.subr.mxu0 0.0
    %533 = vmatpush1.msra.mxu0 0.0
    %534 = vmatprep.subr.mxu0 0.0
    %535 = vmatpush1.msra.mxu0 0.0
    %536 = vmatprep.subr.mxu0 0.0
    %537 = vmatpush1.msra.mxu0 0.0
    %538 = vmatprep.subr.mxu0 0.0
    %539 = vmatpush1.msra.mxu0 0.0
    %540 = vmatprep.subr.mxu0 0.0
    %541 = vmatpush1.msra.mxu0 0.0
    %542 = vmatprep.subr.mxu0 0.0
    %543 = vmatpush1.msra.mxu0 0.0
    %544 = vmatprep.mubr.f32.mxu0 0.0
    %545 = vmatmul.mubr.f32.gmra.mrb[0].mxu0 %v478
    %v546 = vpop.f32.mrb[0].mxu0
    %v547 = vadd.f32 0.0, %v546
    %v548 = vpop.f32.mrb[0].mxu0
    %549 = vdwg.mxu0
    %v550 = vmul.f32 %v547, %v547
    %v551 = vsel %vm30, %v550, 0.0
    %552 = vadd.xlane.f32.xlu0 %v551
    %v553 = vpop.xlane.xlu0 %552
    %v554 = vadd.f32 %v553, 0.001
    %v555 = vrsqrt.pop %v554
    %v556 = vmul.f32 %v547, %v555
    %v557 = vmax.f32 %v556, 0.0
    %v558 = vmul.f32 %v557, 0.1
    %v559 = vsub.f32 %v381, %v558
    %v561 = vsel %vm30, %v559, 0
    %563 = vmatprep.subr.mxu0 0.0
    %564 = vmatpush1.msra.mxu0 %v28
    %565 = vmatprep.subr.mxu0 0.0
    %566 = vmatpush1.msra.mxu0 %v29
    %567 = vmatprep.subr.mxu0 0.0
    %568 = vmatpush1.msra.mxu0 0.0
    %569 = vmatprep.subr.mxu0 0.0
    %570 = vmatpush1.msra.mxu0 0.0
    %571 = vmatprep.subr.mxu0 0.0
    %572 = vmatpush1.msra.mxu0 0.0
    %573 = vmatprep.subr.mxu0 0.0
    %574 = vmatpush1.msra.mxu0 0.0
    %575 = vmatprep.subr.mxu0 0.0
    %576 = vmatpush1.msra.mxu0 0.0
    %577 = vmatprep.subr.mxu0 0.0
    %578 = vmatpush1.msra.mxu0 0.0
    %579 = vmatprep.subr.mxu0 0.0
    %580 = vmatpush1.msra.mxu0 0.0
    %581 = vmatprep.subr.mxu0 0.0
    %582 = vmatpush1.msra.mxu0 0.0
    %583 = vmatprep.subr.mxu0 0.0
    %584 = vmatpush1.msra.mxu0 0.0
    %585 = vmatprep.subr.mxu0 0.0
    %586 = vmatpush1.msra.mxu0 0.0
    %587 = vmatprep.subr.mxu0 0.0
    %588 = vmatpush1.msra.mxu0 0.0
    %589 = vmatprep.subr.mxu0 0.0
    %590 = vmatpush1.msra.mxu0 0.0
    %591 = vmatprep.subr.mxu0 0.0
    %592 = vmatpush1.msra.mxu0 0.0
    %593 = vmatprep.subr.mxu0 0.0
    %594 = vmatpush1.msra.mxu0 0.0
    %595 = vmatprep.subr.mxu0 0.0
    %596 = vmatpush1.msra.mxu0 0.0
    %597 = vmatprep.subr.mxu0 0.0
    %598 = vmatpush1.msra.mxu0 0.0
    %599 = vmatprep.subr.mxu0 0.0
    %600 = vmatpush1.msra.mxu0 0.0
    %601 = vmatprep.subr.mxu0 0.0
    %602 = vmatpush1.msra.mxu0 0.0
    %603 = vmatprep.subr.mxu0 0.0
    %604 = vmatpush1.msra.mxu0 0.0
    %605 = vmatprep.subr.mxu0 0.0
    %606 = vmatpush1.msra.mxu0 0.0
    %607 = vmatprep.subr.mxu0 0.0
    %608 = vmatpush1.msra.mxu0 0.0
    %609 = vmatprep.subr.mxu0 0.0
    %610 = vmatpush1.msra.mxu0 0.0
    %611 = vmatprep.subr.mxu0 0.0
    %612 = vmatpush1.msra.mxu0 0.0
    %613 = vmatprep.subr.mxu0 0.0
    %614 = vmatpush1.msra.mxu0 0.0
    %615 = vmatprep.subr.mxu0 0.0
    %616 = vmatpush1.msra.mxu0 0.0
    %617 = vmatprep.subr.mxu0 0.0
    %618 = vmatpush1.msra.mxu0 0.0
    %619 = vmatprep.subr.mxu0 0.0
    %620 = vmatpush1.msra.mxu0 0.0
    %621 = vmatprep.subr.mxu0 0.0
    %622 = vmatpush1.msra.mxu0 0.0
    %623 = vmatprep.subr.mxu0 0.0
    %624 = vmatpush1.msra.mxu0 0.0
    %625 = vmatprep.subr.mxu0 0.0
    %626 = vmatpush1.msra.mxu0 0.0
    %627 = vmatprep.mubr.f32.mxu0 0.0
    %628 = vmatmul.mubr.f32.gmra.mrb[0].mxu0 %v561
    %v629 = vpop.f32.mrb[0].mxu0
    %v630 = vadd.f32 0.0, %v629
    %v631 = vpop.f32.mrb[0].mxu0
    %632 = vdwg.mxu0
    %v633 = vmul.f32 %v630, %v630
    %v634 = vsel %vm105, %v633, 0.0
    %635 = vadd.xlane.f32.xlu0 %v634
    %v636 = vpop.xlane.xlu0 %635
    %v637 = vadd.f32 %v636, 0.001
    %v638 = vrsqrt.pop %v637
    %v639 = vmul.f32 %v630, %v638
    %v640 = vmax.f32 %v639, 0.0
    %641 = vrot.lane.b32.xlu0 %v25, 32
    %v642 = vpop.permute.xlu0 %641
    %v644 = vadd.f32 %v640, %v642
    %v645 = vmul.f32 %v644, 0.1
    %v646 = vadd.f32 %v471, %v645
    %v648 = vsel %vm105, %v646, 0
    %650 = vmatprep.subr.mxu0 0.0
    %651 = vmatpush1.msra.mxu0 %v116
    %652 = vmatprep.subr.mxu0 0.0
    %653 = vmatpush1.msra.mxu0 %v117
    %654 = vmatprep.subr.mxu0 0.0
    %655 = vmatpush1.msra.mxu0 %v118
    %656 = vmatprep.subr.mxu0 0.0
    %657 = vmatpush1.msra.mxu0 %v119
    %658 = vmatprep.subr.mxu0 0.0
    %659 = vmatpush1.msra.mxu0 0.0
    %660 = vmatprep.subr.mxu0 0.0
    %661 = vmatpush1.msra.mxu0 0.0
    %662 = vmatprep.subr.mxu0 0.0
    %663 = vmatpush1.msra.mxu0 0.0
    %664 = vmatprep.subr.mxu0 0.0
    %665 = vmatpush1.msra.mxu0 0.0
    %666 = vmatprep.subr.mxu0 0.0
    %667 = vmatpush1.msra.mxu0 0.0
    %668 = vmatprep.subr.mxu0 0.0
    %669 = vmatpush1.msra.mxu0 0.0
    %670 = vmatprep.subr.mxu0 0.0
    %671 = vmatpush1.msra.mxu0 0.0
    %672 = vmatprep.subr.mxu0 0.0
    %673 = vmatpush1.msra.mxu0 0.0
    %674 = vmatprep.subr.mxu0 0.0
    %675 = vmatpush1.msra.mxu0 0.0
    %676 = vmatprep.subr.mxu0 0.0
    %677 = vmatpush1.msra.mxu0 0.0
    %678 = vmatprep.subr.mxu0 0.0
    %679 = vmatpush1.msra.mxu0 0.0
    %680 = vmatprep.subr.mxu0 0.0
    %681 = vmatpush1.msra.mxu0 0.0
    %682 = vmatprep.subr.mxu0 0.0
    %683 = vmatpush1.msra.mxu0 0.0
    %684 = vmatprep.subr.mxu0 0.0
    %685 = vmatpush1.msra.mxu0 0.0
    %686 = vmatprep.subr.mxu0 0.0
    %687 = vmatpush1.msra.mxu0 0.0
    %688 = vmatprep.subr.mxu0 0.0
    %689 = vmatpush1.msra.mxu0 0.0
    %690 = vmatprep.subr.mxu0 0.0
    %691 = vmatpush1.msra.mxu0 0.0
    %692 = vmatprep.subr.mxu0 0.0
    %693 = vmatpush1.msra.mxu0 0.0
    %694 = vmatprep.subr.mxu0 0.0
    %695 = vmatpush1.msra.mxu0 0.0
    %696 = vmatprep.subr.mxu0 0.0
    %697 = vmatpush1.msra.mxu0 0.0
    %698 = vmatprep.subr.mxu0 0.0
    %699 = vmatpush1.msra.mxu0 0.0
    %700 = vmatprep.subr.mxu0 0.0
    %701 = vmatpush1.msra.mxu0 0.0
    %702 = vmatprep.subr.mxu0 0.0
    %703 = vmatpush1.msra.mxu0 0.0
    %704 = vmatprep.subr.mxu0 0.0
    %705 = vmatpush1.msra.mxu0 0.0
    %706 = vmatprep.subr.mxu0 0.0
    %707 = vmatpush1.msra.mxu0 0.0
    %708 = vmatprep.subr.mxu0 0.0
    %709 = vmatpush1.msra.mxu0 0.0
    %710 = vmatprep.subr.mxu0 0.0
    %711 = vmatpush1.msra.mxu0 0.0
    %712 = vmatprep.subr.mxu0 0.0
    %713 = vmatpush1.msra.mxu0 0.0
    %714 = vmatprep.mubr.f32.mxu0 0.0
    %715 = vmatmul.mubr.f32.gmra.mrb[0].mxu0 %v648
    %v716 = vpop.f32.mrb[0].mxu0
    %v717 = vadd.f32 0.0, %v716
    %v718 = vpop.f32.mrb[0].mxu0
    %719 = vdwg.mxu0
    %v720 = vmul.f32 %v717, %v717
    %v721 = vsel %vm30, %v720, 0.0
    %722 = vadd.xlane.f32.xlu0 %v721
    %v723 = vpop.xlane.xlu0 %722
    %v724 = vadd.f32 %v723, 0.001
    %v725 = vrsqrt.pop %v724
    %v726 = vmul.f32 %v717, %v725
    %v727 = vmax.f32 %v726, 0.0
    %v728 = vmul.f32 %v727, 0.1
    %v729 = vsub.f32 %v559, %v728
    %v731 = vsel %vm30, %v729, 0
    %733 = vmatprep.subr.mxu0 0.0
    %734 = vmatpush1.msra.mxu0 %v204
    %735 = vmatprep.subr.mxu0 0.0
    %736 = vmatpush1.msra.mxu0 %v205
    %737 = vmatprep.subr.mxu0 0.0
    %738 = vmatpush1.msra.mxu0 0.0
    %739 = vmatprep.subr.mxu0 0.0
    %740 = vmatpush1.msra.mxu0 0.0
    %741 = vmatprep.subr.mxu0 0.0
    %742 = vmatpush1.msra.mxu0 0.0
    %743 = vmatprep.subr.mxu0 0.0
    %744 = vmatpush1.msra.mxu0 0.0
    %745 = vmatprep.subr.mxu0 0.0
    %746 = vmatpush1.msra.mxu0 0.0
    %747 = vmatprep.subr.mxu0 0.0
    %748 = vmatpush1.msra.mxu0 0.0
    %749 = vmatprep.subr.mxu0 0.0
    %750 = vmatpush1.msra.mxu0 0.0
    %751 = vmatprep.subr.mxu0 0.0
    %752 = vmatpush1.msra.mxu0 0.0
    %753 = vmatprep.subr.mxu0 0.0
    %754 = vmatpush1.msra.mxu0 0.0
    %755 = vmatprep.subr.mxu0 0.0
    %756 = vmatpush1.msra.mxu0 0.0
    %757 = vmatprep.subr.mxu0 0.0
    %758 = vmatpush1.msra.mxu0 0.0
    %759 = vmatprep.subr.mxu0 0.0
    %760 = vmatpush1.msra.mxu0 0.0
    %761 = vmatprep.subr.mxu0 0.0
    %762 = vmatpush1.msra.mxu0 0.0
    %763 = vmatprep.subr.mxu0 0.0
    %764 = vmatpush1.msra.mxu0 0.0
    %765 = vmatprep.subr.mxu0 0.0
    %766 = vmatpush1.msra.mxu0 0.0
    %767 = vmatprep.subr.mxu0 0.0
    %768 = vmatpush1.msra.mxu0 0.0
    %769 = vmatprep.subr.mxu0 0.0
    %770 = vmatpush1.msra.mxu0 0.0
    %771 = vmatprep.subr.mxu0 0.0
    %772 = vmatpush1.msra.mxu0 0.0
    %773 = vmatprep.subr.mxu0 0.0
    %774 = vmatpush1.msra.mxu0 0.0
    %775 = vmatprep.subr.mxu0 0.0
    %776 = vmatpush1.msra.mxu0 0.0
    %777 = vmatprep.subr.mxu0 0.0
    %778 = vmatpush1.msra.mxu0 0.0
    %779 = vmatprep.subr.mxu0 0.0
    %780 = vmatpush1.msra.mxu0 0.0
    %781 = vmatprep.subr.mxu0 0.0
    %782 = vmatpush1.msra.mxu0 0.0
    %783 = vmatprep.subr.mxu0 0.0
    %784 = vmatpush1.msra.mxu0 0.0
    %785 = vmatprep.subr.mxu0 0.0
    %786 = vmatpush1.msra.mxu0 0.0
    %787 = vmatprep.subr.mxu0 0.0
    %788 = vmatpush1.msra.mxu0 0.0
    %789 = vmatprep.subr.mxu0 0.0
    %790 = vmatpush1.msra.mxu0 0.0
    %791 = vmatprep.subr.mxu0 0.0
    %792 = vmatpush1.msra.mxu0 0.0
    %793 = vmatprep.subr.mxu0 0.0
    %794 = vmatpush1.msra.mxu0 0.0
    %795 = vmatprep.subr.mxu0 0.0
    %796 = vmatpush1.msra.mxu0 0.0
    %797 = vmatprep.mubr.f32.mxu0 0.0
    %798 = vmatmul.mubr.f32.gmra.mrb[0].mxu0 %v731
    %v799 = vpop.f32.mrb[0].mxu0
    %v800 = vadd.f32 0.0, %v799
    %v801 = vpop.f32.mrb[0].mxu0
    %802 = vdwg.mxu0
    %v803 = vmul.f32 %v800, %v800
    %v804 = vsel %vm105, %v803, 0.0
    %805 = vadd.xlane.f32.xlu0 %v804
    %v806 = vpop.xlane.xlu0 %805
    %v807 = vadd.f32 %v806, 0.001
    %v808 = vrsqrt.pop %v807
    %v809 = vmul.f32 %v800, %v808
    %v810 = vmax.f32 %v809, 0.0
    %v811 = vadd.f32 %v810, %v26
    %v812 = vmul.f32 %v811, 0.1
    %v813 = vadd.f32 %v646, %v812
    %v815 = vsel %vm105, %v813, 0
    %817 = vmatprep.subr.mxu0 0.0
    %818 = vmatpush1.msra.mxu0 %v295
    %819 = vmatprep.subr.mxu0 0.0
    %820 = vmatpush1.msra.mxu0 %v296
    %821 = vmatprep.subr.mxu0 0.0
    %822 = vmatpush1.msra.mxu0 %v297
    %823 = vmatprep.subr.mxu0 0.0
    %824 = vmatpush1.msra.mxu0 %v298
    %825 = vmatprep.subr.mxu0 0.0
    %826 = vmatpush1.msra.mxu0 0.0
    %827 = vmatprep.subr.mxu0 0.0
    %828 = vmatpush1.msra.mxu0 0.0
    %829 = vmatprep.subr.mxu0 0.0
    %830 = vmatpush1.msra.mxu0 0.0
    %831 = vmatprep.subr.mxu0 0.0
    %832 = vmatpush1.msra.mxu0 0.0
    %833 = vmatprep.subr.mxu0 0.0
    %834 = vmatpush1.msra.mxu0 0.0
    %835 = vmatprep.subr.mxu0 0.0
    %836 = vmatpush1.msra.mxu0 0.0
    %837 = vmatprep.subr.mxu0 0.0
    %838 = vmatpush1.msra.mxu0 0.0
    %839 = vmatprep.subr.mxu0 0.0
    %840 = vmatpush1.msra.mxu0 0.0
    %841 = vmatprep.subr.mxu0 0.0
    %842 = vmatpush1.msra.mxu0 0.0
    %843 = vmatprep.subr.mxu0 0.0
    %844 = vmatpush1.msra.mxu0 0.0
    %845 = vmatprep.subr.mxu0 0.0
    %846 = vmatpush1.msra.mxu0 0.0
    %847 = vmatprep.subr.mxu0 0.0
    %848 = vmatpush1.msra.mxu0 0.0
    %849 = vmatprep.subr.mxu0 0.0
    %850 = vmatpush1.msra.mxu0 0.0
    %851 = vmatprep.subr.mxu0 0.0
    %852 = vmatpush1.msra.mxu0 0.0
    %853 = vmatprep.subr.mxu0 0.0
    %854 = vmatpush1.msra.mxu0 0.0
    %855 = vmatprep.subr.mxu0 0.0
    %856 = vmatpush1.msra.mxu0 0.0
    %857 = vmatprep.subr.mxu0 0.0
    %858 = vmatpush1.msra.mxu0 0.0
    %859 = vmatprep.subr.mxu0 0.0
    %860 = vmatpush1.msra.mxu0 0.0
    %861 = vmatprep.subr.mxu0 0.0
    %862 = vmatpush1.msra.mxu0 0.0
    %863 = vmatprep.subr.mxu0 0.0
    %864 = vmatpush1.msra.mxu0 0.0
    %865 = vmatprep.subr.mxu0 0.0
    %866 = vmatpush1.msra.mxu0 0.0
    %867 = vmatprep.subr.mxu0 0.0
    %868 = vmatpush1.msra.mxu0 0.0
    %869 = vmatprep.subr.mxu0 0.0
    %870 = vmatpush1.msra.mxu0 0.0
    %871 = vmatprep.subr.mxu0 0.0
    %872 = vmatpush1.msra.mxu0 0.0
    %873 = vmatprep.subr.mxu0 0.0
    %874 = vmatpush1.msra.mxu0 0.0
    %875 = vmatprep.subr.mxu0 0.0
    %876 = vmatpush1.msra.mxu0 0.0
    %877 = vmatprep.subr.mxu0 0.0
    %878 = vmatpush1.msra.mxu0 0.0
    %879 = vmatprep.subr.mxu0 0.0
    %880 = vmatpush1.msra.mxu0 0.0
    %881 = vmatprep.mubr.f32.mxu0 0.0
    %882 = vmatmul.mubr.f32.gmra.mrb[0].mxu0 %v815
    %v883 = vpop.f32.mrb[0].mxu0
    %v884 = vadd.f32 0.0, %v883
    %v885 = vpop.f32.mrb[0].mxu0
    %886 = vdwg.mxu0
    %v887 = vmul.f32 %v884, %v884
    %v888 = vsel %vm30, %v887, 0.0
    %889 = vadd.xlane.f32.xlu0 %v888
    %v890 = vpop.xlane.xlu0 %889
    %v891 = vadd.f32 %v890, 0.001
    %v892 = vrsqrt.pop %v891
    %v893 = vmul.f32 %v884, %v892
    %v894 = vmax.f32 %v893, 0.0
    %v895 = vmul.f32 %v894, 0.1
    %v896 = vsub.f32 %v729, %v895
    %v898 = vsel %vm30, %v896, 0
    %900 = vmatprep.subr.mxu0 0.0
    %901 = vmatpush1.msra.mxu0 %v383
    %902 = vmatprep.subr.mxu0 0.0
    %903 = vmatpush1.msra.mxu0 %v384
    %904 = vmatprep.subr.mxu0 0.0
    %905 = vmatpush1.msra.mxu0 0.0
    %906 = vmatprep.subr.mxu0 0.0
    %907 = vmatpush1.msra.mxu0 0.0
    %908 = vmatprep.subr.mxu0 0.0
    %909 = vmatpush1.msra.mxu0 0.0
    %910 = vmatprep.subr.mxu0 0.0
    %911 = vmatpush1.msra.mxu0 0.0
    %912 = vmatprep.subr.mxu0 0.0
    %913 = vmatpush1.msra.mxu0 0.0
    %914 = vmatprep.subr.mxu0 0.0
    %915 = vmatpush1.msra.mxu0 0.0
    %916 = vmatprep.subr.mxu0 0.0
    %917 = vmatpush1.msra.mxu0 0.0
    %918 = vmatprep.subr.mxu0 0.0
    %919 = vmatpush1.msra.mxu0 0.0
    %920 = vmatprep.subr.mxu0 0.0
    %921 = vmatpush1.msra.mxu0 0.0
    %922 = vmatprep.subr.mxu0 0.0
    %923 = vmatpush1.msra.mxu0 0.0
    %924 = vmatprep.subr.mxu0 0.0
    %925 = vmatpush1.msra.mxu0 0.0
    %926 = vmatprep.subr.mxu0 0.0
    %927 = vmatpush1.msra.mxu0 0.0
    %928 = vmatprep.subr.mxu0 0.0
    %929 = vmatpush1.msra.mxu0 0.0
    %930 = vmatprep.subr.mxu0 0.0
    %931 = vmatpush1.msra.mxu0 0.0
    %932 = vmatprep.subr.mxu0 0.0
    %933 = vmatpush1.msra.mxu0 0.0
    %934 = vmatprep.subr.mxu0 0.0
    %935 = vmatpush1.msra.mxu0 0.0
    %936 = vmatprep.subr.mxu0 0.0
    %937 = vmatpush1.msra.mxu0 0.0
    %938 = vmatprep.subr.mxu0 0.0
    %939 = vmatpush1.msra.mxu0 0.0
    %940 = vmatprep.subr.mxu0 0.0
    %941 = vmatpush1.msra.mxu0 0.0
    %942 = vmatprep.subr.mxu0 0.0
    %943 = vmatpush1.msra.mxu0 0.0
    %944 = vmatprep.subr.mxu0 0.0
    %945 = vmatpush1.msra.mxu0 0.0
    %946 = vmatprep.subr.mxu0 0.0
    %947 = vmatpush1.msra.mxu0 0.0
    %948 = vmatprep.subr.mxu0 0.0
    %949 = vmatpush1.msra.mxu0 0.0
    %950 = vmatprep.subr.mxu0 0.0
    %951 = vmatpush1.msra.mxu0 0.0
    %952 = vmatprep.subr.mxu0 0.0
    %953 = vmatpush1.msra.mxu0 0.0
    %954 = vmatprep.subr.mxu0 0.0
    %955 = vmatpush1.msra.mxu0 0.0
    %956 = vmatprep.subr.mxu0 0.0
    %957 = vmatpush1.msra.mxu0 0.0
    %958 = vmatprep.subr.mxu0 0.0
    %959 = vmatpush1.msra.mxu0 0.0
    %960 = vmatprep.subr.mxu0 0.0
    %961 = vmatpush1.msra.mxu0 0.0
    %962 = vmatprep.subr.mxu0 0.0
    %963 = vmatpush1.msra.mxu0 0.0
    %964 = vmatprep.mubr.f32.mxu0 0.0
    %965 = vmatmul.mubr.f32.gmra.mrb[0].mxu0 %v898
    %v966 = vpop.f32.mrb[0].mxu0
    %v967 = vadd.f32 0.0, %v966
    %v968 = vpop.f32.mrb[0].mxu0
    %969 = vdwg.mxu0
    %v970 = vmul.f32 %v967, %v967
    %v971 = vsel %vm105, %v970, 0.0
    %972 = vadd.xlane.f32.xlu0 %v971
    %v973 = vpop.xlane.xlu0 %972
    %v974 = vadd.f32 %v973, 0.001
    %v975 = vrsqrt.pop %v974
    %v976 = vmul.f32 %v967, %v975
    %v977 = vmax.f32 %v976, 0.0
    %979 = vrot.lane.b32.xlu0 %v26, 96
    %v980 = vpop.permute.xlu0 %979
    %v982 = vadd.f32 %v977, %v980
    %v983 = vmul.f32 %v982, 0.1
    %v984 = vadd.f32 %v813, %v983
    %v986 = vsel %vm105, %v984, 0
    %988 = vmatprep.subr.mxu0 0.0
    %989 = vmatpush1.msra.mxu0 %v473
    %990 = vmatprep.subr.mxu0 0.0
    %991 = vmatpush1.msra.mxu0 %v474
    %992 = vmatprep.subr.mxu0 0.0
    %993 = vmatpush1.msra.mxu0 %v475
    %994 = vmatprep.subr.mxu0 0.0
    %995 = vmatpush1.msra.mxu0 %v476
    %996 = vmatprep.subr.mxu0 0.0
    %997 = vmatpush1.msra.mxu0 0.0
    %998 = vmatprep.subr.mxu0 0.0
    %999 = vmatpush1.msra.mxu0 0.0
    %1000 = vmatprep.subr.mxu0 0.0
    %1001 = vmatpush1.msra.mxu0 0.0
    %1002 = vmatprep.subr.mxu0 0.0
    %1003 = vmatpush1.msra.mxu0 0.0
    %1004 = vmatprep.subr.mxu0 0.0
    %1005 = vmatpush1.msra.mxu0 0.0
    %1006 = vmatprep.subr.mxu0 0.0
    %1007 = vmatpush1.msra.mxu0 0.0
    %1008 = vmatprep.subr.mxu0 0.0
    %1009 = vmatpush1.msra.mxu0 0.0
    %1010 = vmatprep.subr.mxu0 0.0
    %1011 = vmatpush1.msra.mxu0 0.0
    %1012 = vmatprep.subr.mxu0 0.0
    %1013 = vmatpush1.msra.mxu0 0.0
    %1014 = vmatprep.subr.mxu0 0.0
    %1015 = vmatpush1.msra.mxu0 0.0
    %1016 = vmatprep.subr.mxu0 0.0
    %1017 = vmatpush1.msra.mxu0 0.0
    %1018 = vmatprep.subr.mxu0 0.0
    %1019 = vmatpush1.msra.mxu0 0.0
    %1020 = vmatprep.subr.mxu0 0.0
    %1021 = vmatpush1.msra.mxu0 0.0
    %1022 = vmatprep.subr.mxu0 0.0
    %1023 = vmatpush1.msra.mxu0 0.0
    %1024 = vmatprep.subr.mxu0 0.0
    %1025 = vmatpush1.msra.mxu0 0.0
    %1026 = vmatprep.subr.mxu0 0.0
    %1027 = vmatpush1.msra.mxu0 0.0
    %1028 = vmatprep.subr.mxu0 0.0
    %1029 = vmatpush1.msra.mxu0 0.0
    %1030 = vmatprep.subr.mxu0 0.0
    %1031 = vmatpush1.msra.mxu0 0.0
    %1032 = vmatprep.subr.mxu0 0.0
    %1033 = vmatpush1.msra.mxu0 0.0
    %1034 = vmatprep.subr.mxu0 0.0
    %1035 = vmatpush1.msra.mxu0 0.0
    %1036 = vmatprep.subr.mxu0 0.0
    %1037 = vmatpush1.msra.mxu0 0.0
    %1038 = vmatprep.subr.mxu0 0.0
    %1039 = vmatpush1.msra.mxu0 0.0
    %1040 = vmatprep.subr.mxu0 0.0
    %1041 = vmatpush1.msra.mxu0 0.0
    %1042 = vmatprep.subr.mxu0 0.0
    %1043 = vmatpush1.msra.mxu0 0.0
    %1044 = vmatprep.subr.mxu0 0.0
    %1045 = vmatpush1.msra.mxu0 0.0
    %1046 = vmatprep.subr.mxu0 0.0
    %1047 = vmatpush1.msra.mxu0 0.0
    %1048 = vmatprep.subr.mxu0 0.0
    %1049 = vmatpush1.msra.mxu0 0.0
    %1050 = vmatprep.subr.mxu0 0.0
    %1051 = vmatpush1.msra.mxu0 0.0
    %1052 = vmatprep.mubr.f32.mxu0 0.0
    %1053 = vmatmul.mubr.f32.gmra.mrb[0].mxu0 %v986
    %v1054 = vpop.f32.mrb[0].mxu0
    %v1055 = vadd.f32 0.0, %v1054
    %v1056 = vpop.f32.mrb[0].mxu0
    %1057 = vdwg.mxu0
    %v1058 = vmul.f32 %v1055, %v1055
    %v1059 = vsel %vm30, %v1058, 0.0
    %1060 = vadd.xlane.f32.xlu0 %v1059
    %v1061 = vpop.xlane.xlu0 %1060
    %v1062 = vadd.f32 %v1061, 0.001
    %v1063 = vrsqrt.pop %v1062
    %v1064 = vmul.f32 %v1055, %v1063
    %v1065 = vmax.f32 %v1064, 0.0
    %v1066 = vmul.f32 %v1065, 0.1
    %v1067 = vsub.f32 %v896, %v1066
    %v1069 = vsel %vm30, %v1067, 0
    %1071 = vmatprep.subr.mxu0 0.0
    %1072 = vmatpush1.msra.mxu0 %v28
    %1073 = vmatprep.subr.mxu0 0.0
    %1074 = vmatpush1.msra.mxu0 %v29
    %1075 = vmatprep.subr.mxu0 0.0
    %1076 = vmatpush1.msra.mxu0 0.0
    %1077 = vmatprep.subr.mxu0 0.0
    %1078 = vmatpush1.msra.mxu0 0.0
    %1079 = vmatprep.subr.mxu0 0.0
    %1080 = vmatpush1.msra.mxu0 0.0
    %1081 = vmatprep.subr.mxu0 0.0
    %1082 = vmatpush1.msra.mxu0 0.0
    %1083 = vmatprep.subr.mxu0 0.0
    %1084 = vmatpush1.msra.mxu0 0.0
    %1085 = vmatprep.subr.mxu0 0.0
    %1086 = vmatpush1.msra.mxu0 0.0
    %1087 = vmatprep.subr.mxu0 0.0
    %1088 = vmatpush1.msra.mxu0 0.0
    %1089 = vmatprep.subr.mxu0 0.0
    %1090 = vmatpush1.msra.mxu0 0.0
    %1091 = vmatprep.subr.mxu0 0.0
    %1092 = vmatpush1.msra.mxu0 0.0
    %1093 = vmatprep.subr.mxu0 0.0
    %1094 = vmatpush1.msra.mxu0 0.0
    %1095 = vmatprep.subr.mxu0 0.0
    %1096 = vmatpush1.msra.mxu0 0.0
    %1097 = vmatprep.subr.mxu0 0.0
    %1098 = vmatpush1.msra.mxu0 0.0
    %1099 = vmatprep.subr.mxu0 0.0
    %1100 = vmatpush1.msra.mxu0 0.0
    %1101 = vmatprep.subr.mxu0 0.0
    %1102 = vmatpush1.msra.mxu0 0.0
    %1103 = vmatprep.subr.mxu0 0.0
    %1104 = vmatpush1.msra.mxu0 0.0
    %1105 = vmatprep.subr.mxu0 0.0
    %1106 = vmatpush1.msra.mxu0 0.0
    %1107 = vmatprep.subr.mxu0 0.0
    %1108 = vmatpush1.msra.mxu0 0.0
    %1109 = vmatprep.subr.mxu0 0.0
    %1110 = vmatpush1.msra.mxu0 0.0
    %1111 = vmatprep.subr.mxu0 0.0
    %1112 = vmatpush1.msra.mxu0 0.0
    %1113 = vmatprep.subr.mxu0 0.0
    %1114 = vmatpush1.msra.mxu0 0.0
    %1115 = vmatprep.subr.mxu0 0.0
    %1116 = vmatpush1.msra.mxu0 0.0
    %1117 = vmatprep.subr.mxu0 0.0
    %1118 = vmatpush1.msra.mxu0 0.0
    %1119 = vmatprep.subr.mxu0 0.0
    %1120 = vmatpush1.msra.mxu0 0.0
    %1121 = vmatprep.subr.mxu0 0.0
    %1122 = vmatpush1.msra.mxu0 0.0
    %1123 = vmatprep.subr.mxu0 0.0
    %1124 = vmatpush1.msra.mxu0 0.0
    %1125 = vmatprep.subr.mxu0 0.0
    %1126 = vmatpush1.msra.mxu0 0.0
    %1127 = vmatprep.subr.mxu0 0.0
    %1128 = vmatpush1.msra.mxu0 0.0
    %1129 = vmatprep.subr.mxu0 0.0
    %1130 = vmatpush1.msra.mxu0 0.0
    %1131 = vmatprep.subr.mxu0 0.0
    %1132 = vmatpush1.msra.mxu0 0.0
    %1133 = vmatprep.subr.mxu0 0.0
    %1134 = vmatpush1.msra.mxu0 0.0
    %1135 = vmatprep.mubr.f32.mxu0 0.0
    %1136 = vmatmul.mubr.f32.gmra.mrb[0].mxu0 %v1069
    %v1137 = vpop.f32.mrb[0].mxu0
    %v1138 = vadd.f32 0.0, %v1137
    %v1139 = vpop.f32.mrb[0].mxu0
    %1140 = vdwg.mxu0
    %v1141 = vmul.f32 %v1138, %v1138
    %v1142 = vsel %vm105, %v1141, 0.0
    %1143 = vadd.xlane.f32.xlu0 %v1142
    %v1144 = vpop.xlane.xlu0 %1143
    %v1145 = vadd.f32 %v1144, 0.001
    %v1146 = vrsqrt.pop %v1145
    %v1147 = vmul.f32 %v1138, %v1146
    %v1148 = vmax.f32 %v1147, 0.0
    %1149 = vrot.lane.b32.xlu0 %v26, 64
    %v1150 = vpop.permute.xlu0 %1149
    %v1152 = vadd.f32 %v1148, %v1150
    %v1153 = vmul.f32 %v1152, 0.1
    %v1154 = vadd.f32 %v984, %v1153
    %v1156 = vsel %vm105, %v1154, 0
    %1158 = vmatprep.subr.mxu0 0.0
    %1159 = vmatpush1.msra.mxu0 %v116
    %1160 = vmatprep.subr.mxu0 0.0
    %1161 = vmatpush1.msra.mxu0 %v117
    %1162 = vmatprep.subr.mxu0 0.0
    %1163 = vmatpush1.msra.mxu0 %v118
    %1164 = vmatprep.subr.mxu0 0.0
    %1165 = vmatpush1.msra.mxu0 %v119
    %1166 = vmatprep.subr.mxu0 0.0
    %1167 = vmatpush1.msra.mxu0 0.0
    %1168 = vmatprep.subr.mxu0 0.0
    %1169 = vmatpush1.msra.mxu0 0.0
    %1170 = vmatprep.subr.mxu0 0.0
    %1171 = vmatpush1.msra.mxu0 0.0
    %1172 = vmatprep.subr.mxu0 0.0
    %1173 = vmatpush1.msra.mxu0 0.0
    %1174 = vmatprep.subr.mxu0 0.0
    %1175 = vmatpush1.msra.mxu0 0.0
    %1176 = vmatprep.subr.mxu0 0.0
    %1177 = vmatpush1.msra.mxu0 0.0
    %1178 = vmatprep.subr.mxu0 0.0
    %1179 = vmatpush1.msra.mxu0 0.0
    %1180 = vmatprep.subr.mxu0 0.0
    %1181 = vmatpush1.msra.mxu0 0.0
    %1182 = vmatprep.subr.mxu0 0.0
    %1183 = vmatpush1.msra.mxu0 0.0
    %1184 = vmatprep.subr.mxu0 0.0
    %1185 = vmatpush1.msra.mxu0 0.0
    %1186 = vmatprep.subr.mxu0 0.0
    %1187 = vmatpush1.msra.mxu0 0.0
    %1188 = vmatprep.subr.mxu0 0.0
    %1189 = vmatpush1.msra.mxu0 0.0
    %1190 = vmatprep.subr.mxu0 0.0
    %1191 = vmatpush1.msra.mxu0 0.0
    %1192 = vmatprep.subr.mxu0 0.0
    %1193 = vmatpush1.msra.mxu0 0.0
    %1194 = vmatprep.subr.mxu0 0.0
    %1195 = vmatpush1.msra.mxu0 0.0
    %1196 = vmatprep.subr.mxu0 0.0
    %1197 = vmatpush1.msra.mxu0 0.0
    %1198 = vmatprep.subr.mxu0 0.0
    %1199 = vmatpush1.msra.mxu0 0.0
    %1200 = vmatprep.subr.mxu0 0.0
    %1201 = vmatpush1.msra.mxu0 0.0
    %1202 = vmatprep.subr.mxu0 0.0
    %1203 = vmatpush1.msra.mxu0 0.0
    %1204 = vmatprep.subr.mxu0 0.0
    %1205 = vmatpush1.msra.mxu0 0.0
    %1206 = vmatprep.subr.mxu0 0.0
    %1207 = vmatpush1.msra.mxu0 0.0
    %1208 = vmatprep.subr.mxu0 0.0
    %1209 = vmatpush1.msra.mxu0 0.0
    %1210 = vmatprep.subr.mxu0 0.0
    %1211 = vmatpush1.msra.mxu0 0.0
    %1212 = vmatprep.subr.mxu0 0.0
    %1213 = vmatpush1.msra.mxu0 0.0
    %1214 = vmatprep.subr.mxu0 0.0
    %1215 = vmatpush1.msra.mxu0 0.0
    %1216 = vmatprep.subr.mxu0 0.0
    %1217 = vmatpush1.msra.mxu0 0.0
    %1218 = vmatprep.subr.mxu0 0.0
    %1219 = vmatpush1.msra.mxu0 0.0
    %1220 = vmatprep.subr.mxu0 0.0
    %1221 = vmatpush1.msra.mxu0 0.0
    %1222 = vmatprep.mubr.f32.mxu0 0.0
    %1223 = vmatmul.mubr.f32.gmra.mrb[0].mxu0 %v1156
    %v1224 = vpop.f32.mrb[0].mxu0
    %v1225 = vadd.f32 0.0, %v1224
    %v1226 = vpop.f32.mrb[0].mxu0
    %1227 = vdwg.mxu0
    %v1228 = vmul.f32 %v1225, %v1225
    %v1229 = vsel %vm30, %v1228, 0.0
    %1230 = vadd.xlane.f32.xlu0 %v1229
    %v1231 = vpop.xlane.xlu0 %1230
    %v1232 = vadd.f32 %v1231, 0.001
    %v1233 = vrsqrt.pop %v1232
    %v1234 = vmul.f32 %v1225, %v1233
    %v1235 = vmax.f32 %v1234, 0.0
    %v1236 = vmul.f32 %v1235, 0.1
    %v1237 = vsub.f32 %v1067, %v1236
    %v1239 = vsel %vm30, %v1237, 0
    %1241 = vmatprep.subr.mxu0 0.0
    %1242 = vmatpush1.msra.mxu0 %v204
    %1243 = vmatprep.subr.mxu0 0.0
    %1244 = vmatpush1.msra.mxu0 %v205
    %1245 = vmatprep.subr.mxu0 0.0
    %1246 = vmatpush1.msra.mxu0 0.0
    %1247 = vmatprep.subr.mxu0 0.0
    %1248 = vmatpush1.msra.mxu0 0.0
    %1249 = vmatprep.subr.mxu0 0.0
    %1250 = vmatpush1.msra.mxu0 0.0
    %1251 = vmatprep.subr.mxu0 0.0
    %1252 = vmatpush1.msra.mxu0 0.0
    %1253 = vmatprep.subr.mxu0 0.0
    %1254 = vmatpush1.msra.mxu0 0.0
    %1255 = vmatprep.subr.mxu0 0.0
    %1256 = vmatpush1.msra.mxu0 0.0
    %1257 = vmatprep.subr.mxu0 0.0
    %1258 = vmatpush1.msra.mxu0 0.0
    %1259 = vmatprep.subr.mxu0 0.0
    %1260 = vmatpush1.msra.mxu0 0.0
    %1261 = vmatprep.subr.mxu0 0.0
    %1262 = vmatpush1.msra.mxu0 0.0
    %1263 = vmatprep.subr.mxu0 0.0
    %1264 = vmatpush1.msra.mxu0 0.0
    %1265 = vmatprep.subr.mxu0 0.0
    %1266 = vmatpush1.msra.mxu0 0.0
    %1267 = vmatprep.subr.mxu0 0.0
    %1268 = vmatpush1.msra.mxu0 0.0
    %1269 = vmatprep.subr.mxu0 0.0
    %1270 = vmatpush1.msra.mxu0 0.0
    %1271 = vmatprep.subr.mxu0 0.0
    %1272 = vmatpush1.msra.mxu0 0.0
    %1273 = vmatprep.subr.mxu0 0.0
    %1274 = vmatpush1.msra.mxu0 0.0
    %1275 = vmatprep.subr.mxu0 0.0
    %1276 = vmatpush1.msra.mxu0 0.0
    %1277 = vmatprep.subr.mxu0 0.0
    %1278 = vmatpush1.msra.mxu0 0.0
    %1279 = vmatprep.subr.mxu0 0.0
    %1280 = vmatpush1.msra.mxu0 0.0
    %1281 = vmatprep.subr.mxu0 0.0
    %1282 = vmatpush1.msra.mxu0 0.0
    %1283 = vmatprep.subr.mxu0 0.0
    %1284 = vmatpush1.msra.mxu0 0.0
    %1285 = vmatprep.subr.mxu0 0.0
    %1286 = vmatpush1.msra.mxu0 0.0
    %1287 = vmatprep.subr.mxu0 0.0
    %1288 = vmatpush1.msra.mxu0 0.0
    %1289 = vmatprep.subr.mxu0 0.0
    %1290 = vmatpush1.msra.mxu0 0.0
    %1291 = vmatprep.subr.mxu0 0.0
    %1292 = vmatpush1.msra.mxu0 0.0
    %1293 = vmatprep.subr.mxu0 0.0
    %1294 = vmatpush1.msra.mxu0 0.0
    %1295 = vmatprep.subr.mxu0 0.0
    %1296 = vmatpush1.msra.mxu0 0.0
    %1297 = vmatprep.subr.mxu0 0.0
    %1298 = vmatpush1.msra.mxu0 0.0
    %1299 = vmatprep.subr.mxu0 0.0
    %1300 = vmatpush1.msra.mxu0 0.0
    %1301 = vmatprep.subr.mxu0 0.0
    %1302 = vmatpush1.msra.mxu0 0.0
    %1303 = vmatprep.subr.mxu0 0.0
    %1304 = vmatpush1.msra.mxu0 0.0
    %1305 = vmatprep.mubr.f32.mxu0 0.0
    %1306 = vmatmul.mubr.f32.gmra.mrb[0].mxu0 %v1239
    %v1307 = vpop.f32.mrb[0].mxu0
    %v1308 = vadd.f32 0.0, %v1307
    %v1309 = vpop.f32.mrb[0].mxu0
    %1310 = vdwg.mxu0
    %v1311 = vmul.f32 %v1308, %v1308
    %v1312 = vsel %vm105, %v1311, 0.0
    %1313 = vadd.xlane.f32.xlu0 %v1312
    %v1314 = vpop.xlane.xlu0 %1313
    %v1315 = vadd.f32 %v1314, 0.001
    %v1316 = vrsqrt.pop %v1315
    %v1317 = vmul.f32 %v1308, %v1316
    %v1318 = vmax.f32 %v1317, 0.0
    %1319 = vrot.lane.b32.xlu0 %v26, 32
    %v1320 = vpop.permute.xlu0 %1319
    %v1322 = vadd.f32 %v1318, %v1320
    %v1323 = vmul.f32 %v1322, 0.1
    %v1324 = vadd.f32 %v1154, %v1323
    %v1326 = vsel %vm105, %v1324, 0
    %1328 = vmatprep.subr.mxu0 0.0
    %1329 = vmatpush1.msra.mxu0 %v295
    %1330 = vmatprep.subr.mxu0 0.0
    %1331 = vmatpush1.msra.mxu0 %v296
    %1332 = vmatprep.subr.mxu0 0.0
    %1333 = vmatpush1.msra.mxu0 %v297
    %1334 = vmatprep.subr.mxu0 0.0
    %1335 = vmatpush1.msra.mxu0 %v298
    %1336 = vmatprep.subr.mxu0 0.0
    %1337 = vmatpush1.msra.mxu0 0.0
    %1338 = vmatprep.subr.mxu0 0.0
    %1339 = vmatpush1.msra.mxu0 0.0
    %1340 = vmatprep.subr.mxu0 0.0
    %1341 = vmatpush1.msra.mxu0 0.0
    %1342 = vmatprep.subr.mxu0 0.0
    %1343 = vmatpush1.msra.mxu0 0.0
    %1344 = vmatprep.subr.mxu0 0.0
    %1345 = vmatpush1.msra.mxu0 0.0
    %1346 = vmatprep.subr.mxu0 0.0
    %1347 = vmatpush1.msra.mxu0 0.0
    %1348 = vmatprep.subr.mxu0 0.0
    %1349 = vmatpush1.msra.mxu0 0.0
    %1350 = vmatprep.subr.mxu0 0.0
    %1351 = vmatpush1.msra.mxu0 0.0
    %1352 = vmatprep.subr.mxu0 0.0
    %1353 = vmatpush1.msra.mxu0 0.0
    %1354 = vmatprep.subr.mxu0 0.0
    %1355 = vmatpush1.msra.mxu0 0.0
    %1356 = vmatprep.subr.mxu0 0.0
    %1357 = vmatpush1.msra.mxu0 0.0
    %1358 = vmatprep.subr.mxu0 0.0
    %1359 = vmatpush1.msra.mxu0 0.0
    %1360 = vmatprep.subr.mxu0 0.0
    %1361 = vmatpush1.msra.mxu0 0.0
    %1362 = vmatprep.subr.mxu0 0.0
    %1363 = vmatpush1.msra.mxu0 0.0
    %1364 = vmatprep.subr.mxu0 0.0
    %1365 = vmatpush1.msra.mxu0 0.0
    %1366 = vmatprep.subr.mxu0 0.0
    %1367 = vmatpush1.msra.mxu0 0.0
    %1368 = vmatprep.subr.mxu0 0.0
    %1369 = vmatpush1.msra.mxu0 0.0
    %1370 = vmatprep.subr.mxu0 0.0
    %1371 = vmatpush1.msra.mxu0 0.0
    %1372 = vmatprep.subr.mxu0 0.0
    %1373 = vmatpush1.msra.mxu0 0.0
    %1374 = vmatprep.subr.mxu0 0.0
    %1375 = vmatpush1.msra.mxu0 0.0
    %1376 = vmatprep.subr.mxu0 0.0
    %1377 = vmatpush1.msra.mxu0 0.0
    %1378 = vmatprep.subr.mxu0 0.0
    %1379 = vmatpush1.msra.mxu0 0.0
    %1380 = vmatprep.subr.mxu0 0.0
    %1381 = vmatpush1.msra.mxu0 0.0
    %1382 = vmatprep.subr.mxu0 0.0
    %1383 = vmatpush1.msra.mxu0 0.0
    %1384 = vmatprep.subr.mxu0 0.0
    %1385 = vmatpush1.msra.mxu0 0.0
    %1386 = vmatprep.subr.mxu0 0.0
    %1387 = vmatpush1.msra.mxu0 0.0
    %1388 = vmatprep.subr.mxu0 0.0
    %1389 = vmatpush1.msra.mxu0 0.0
    %1390 = vmatprep.subr.mxu0 0.0
    %1391 = vmatpush1.msra.mxu0 0.0
    %1392 = vmatprep.mubr.f32.mxu0 0.0
    %1393 = vmatmul.mubr.f32.gmra.mrb[0].mxu0 %v1326
    %v1394 = vpop.f32.mrb[0].mxu0
    %v1395 = vadd.f32 0.0, %v1394
    %v1396 = vpop.f32.mrb[0].mxu0
    %1397 = vdwg.mxu0
    %v1398 = vmul.f32 %v1395, %v1395
    %v1399 = vsel %vm30, %v1398, 0.0
    %1400 = vadd.xlane.f32.xlu0 %v1399
    %v1401 = vpop.xlane.xlu0 %1400
    %v1402 = vadd.f32 %v1401, 0.001
    %v1403 = vrsqrt.pop %v1402
    %v1404 = vmul.f32 %v1395, %v1403
    %v1405 = vmax.f32 %v1404, 0.0
    %v1406 = vmul.f32 %v1405, 0.1
    %v1407 = vsub.f32 %v1237, %v1406
    %v1409 = vsel %vm30, %v1407, 0
    %1411 = vmatprep.subr.mxu0 0.0
    %1412 = vmatpush1.msra.mxu0 %v383
    %1413 = vmatprep.subr.mxu0 0.0
    %1414 = vmatpush1.msra.mxu0 %v384
    %1415 = vmatprep.subr.mxu0 0.0
    %1416 = vmatpush1.msra.mxu0 0.0
    %1417 = vmatprep.subr.mxu0 0.0
    %1418 = vmatpush1.msra.mxu0 0.0
    %1419 = vmatprep.subr.mxu0 0.0
    %1420 = vmatpush1.msra.mxu0 0.0
    %1421 = vmatprep.subr.mxu0 0.0
    %1422 = vmatpush1.msra.mxu0 0.0
    %1423 = vmatprep.subr.mxu0 0.0
    %1424 = vmatpush1.msra.mxu0 0.0
    %1425 = vmatprep.subr.mxu0 0.0
    %1426 = vmatpush1.msra.mxu0 0.0
    %1427 = vmatprep.subr.mxu0 0.0
    %1428 = vmatpush1.msra.mxu0 0.0
    %1429 = vmatprep.subr.mxu0 0.0
    %1430 = vmatpush1.msra.mxu0 0.0
    %1431 = vmatprep.subr.mxu0 0.0
    %1432 = vmatpush1.msra.mxu0 0.0
    %1433 = vmatprep.subr.mxu0 0.0
    %1434 = vmatpush1.msra.mxu0 0.0
    %1435 = vmatprep.subr.mxu0 0.0
    %1436 = vmatpush1.msra.mxu0 0.0
    %1437 = vmatprep.subr.mxu0 0.0
    %1438 = vmatpush1.msra.mxu0 0.0
    %1439 = vmatprep.subr.mxu0 0.0
    %1440 = vmatpush1.msra.mxu0 0.0
    %1441 = vmatprep.subr.mxu0 0.0
    %1442 = vmatpush1.msra.mxu0 0.0
    %1443 = vmatprep.subr.mxu0 0.0
    %1444 = vmatpush1.msra.mxu0 0.0
    %1445 = vmatprep.subr.mxu0 0.0
    %1446 = vmatpush1.msra.mxu0 0.0
    %1447 = vmatprep.subr.mxu0 0.0
    %1448 = vmatpush1.msra.mxu0 0.0
    %1449 = vmatprep.subr.mxu0 0.0
    %1450 = vmatpush1.msra.mxu0 0.0
    %1451 = vmatprep.subr.mxu0 0.0
    %1452 = vmatpush1.msra.mxu0 0.0
    %1453 = vmatprep.subr.mxu0 0.0
    %1454 = vmatpush1.msra.mxu0 0.0
    %1455 = vmatprep.subr.mxu0 0.0
    %1456 = vmatpush1.msra.mxu0 0.0
    %1457 = vmatprep.subr.mxu0 0.0
    %1458 = vmatpush1.msra.mxu0 0.0
    %1459 = vmatprep.subr.mxu0 0.0
    %1460 = vmatpush1.msra.mxu0 0.0
    %1461 = vmatprep.subr.mxu0 0.0
    %1462 = vmatpush1.msra.mxu0 0.0
    %1463 = vmatprep.subr.mxu0 0.0
    %1464 = vmatpush1.msra.mxu0 0.0
    %1465 = vmatprep.subr.mxu0 0.0
    %1466 = vmatpush1.msra.mxu0 0.0
    %1467 = vmatprep.subr.mxu0 0.0
    %1468 = vmatpush1.msra.mxu0 0.0
    %1469 = vmatprep.subr.mxu0 0.0
    %1470 = vmatpush1.msra.mxu0 0.0
    %1471 = vmatprep.subr.mxu0 0.0
    %1472 = vmatpush1.msra.mxu0 0.0
    %1473 = vmatprep.subr.mxu0 0.0
    %1474 = vmatpush1.msra.mxu0 0.0
    %1475 = vmatprep.mubr.f32.mxu0 0.0
    %1476 = vmatmul.mubr.f32.gmra.mrb[0].mxu0 %v1409
    %v1477 = vpop.f32.mrb[0].mxu0
    %v1478 = vadd.f32 0.0, %v1477
    %v1479 = vpop.f32.mrb[0].mxu0
    %1480 = vdwg.mxu0
    %v1481 = vmul.f32 %v1478, %v1478
    %v1482 = vsel %vm105, %v1481, 0.0
    %1483 = vadd.xlane.f32.xlu0 %v1482
    %v1484 = vpop.xlane.xlu0 %1483
    %v1485 = vadd.f32 %v1484, 0.001
    %v1486 = vrsqrt.pop %v1485
    %v1487 = vmul.f32 %v1478, %v1486
    %v1488 = vmax.f32 %v1487, 0.0
    %v1489 = vadd.f32 %v1488, %v27
    %v1490 = vmul.f32 %v1489, 0.1
    %v1491 = vadd.f32 %v1324, %v1490
    %v1493 = vsel %vm105, %v1491, 0
    %1495 = vmatprep.subr.mxu0 0.0
    %1496 = vmatpush1.msra.mxu0 %v473
    %1497 = vmatprep.subr.mxu0 0.0
    %1498 = vmatpush1.msra.mxu0 %v474
    %1499 = vmatprep.subr.mxu0 0.0
    %1500 = vmatpush1.msra.mxu0 %v475
    %1501 = vmatprep.subr.mxu0 0.0
    %1502 = vmatpush1.msra.mxu0 %v476
    %1503 = vmatprep.subr.mxu0 0.0
    %1504 = vmatpush1.msra.mxu0 0.0
    %1505 = vmatprep.subr.mxu0 0.0
    %1506 = vmatpush1.msra.mxu0 0.0
    %1507 = vmatprep.subr.mxu0 0.0
    %1508 = vmatpush1.msra.mxu0 0.0
    %1509 = vmatprep.subr.mxu0 0.0
    %1510 = vmatpush1.msra.mxu0 0.0
    %1511 = vmatprep.subr.mxu0 0.0
    %1512 = vmatpush1.msra.mxu0 0.0
    %1513 = vmatprep.subr.mxu0 0.0
    %1514 = vmatpush1.msra.mxu0 0.0
    %1515 = vmatprep.subr.mxu0 0.0
    %1516 = vmatpush1.msra.mxu0 0.0
    %1517 = vmatprep.subr.mxu0 0.0
    %1518 = vmatpush1.msra.mxu0 0.0
    %1519 = vmatprep.subr.mxu0 0.0
    %1520 = vmatpush1.msra.mxu0 0.0
    %1521 = vmatprep.subr.mxu0 0.0
    %1522 = vmatpush1.msra.mxu0 0.0
    %1523 = vmatprep.subr.mxu0 0.0
    %1524 = vmatpush1.msra.mxu0 0.0
    %1525 = vmatprep.subr.mxu0 0.0
    %1526 = vmatpush1.msra.mxu0 0.0
    %1527 = vmatprep.subr.mxu0 0.0
    %1528 = vmatpush1.msra.mxu0 0.0
    %1529 = vmatprep.subr.mxu0 0.0
    %1530 = vmatpush1.msra.mxu0 0.0
    %1531 = vmatprep.subr.mxu0 0.0
    %1532 = vmatpush1.msra.mxu0 0.0
    %1533 = vmatprep.subr.mxu0 0.0
    %1534 = vmatpush1.msra.mxu0 0.0
    %1535 = vmatprep.subr.mxu0 0.0
    %1536 = vmatpush1.msra.mxu0 0.0
    %1537 = vmatprep.subr.mxu0 0.0
    %1538 = vmatpush1.msra.mxu0 0.0
    %1539 = vmatprep.subr.mxu0 0.0
    %1540 = vmatpush1.msra.mxu0 0.0
    %1541 = vmatprep.subr.mxu0 0.0
    %1542 = vmatpush1.msra.mxu0 0.0
    %1543 = vmatprep.subr.mxu0 0.0
    %1544 = vmatpush1.msra.mxu0 0.0
    %1545 = vmatprep.subr.mxu0 0.0
    %1546 = vmatpush1.msra.mxu0 0.0
    %1547 = vmatprep.subr.mxu0 0.0
    %1548 = vmatpush1.msra.mxu0 0.0
    %1549 = vmatprep.subr.mxu0 0.0
    %1550 = vmatpush1.msra.mxu0 0.0
    %1551 = vmatprep.subr.mxu0 0.0
    %1552 = vmatpush1.msra.mxu0 0.0
    %1553 = vmatprep.subr.mxu0 0.0
    %1554 = vmatpush1.msra.mxu0 0.0
    %1555 = vmatprep.subr.mxu0 0.0
    %1556 = vmatpush1.msra.mxu0 0.0
    %1557 = vmatprep.subr.mxu0 0.0
    %1558 = vmatpush1.msra.mxu0 0.0
    %1559 = vmatprep.mubr.f32.mxu0 0.0
    %1560 = vmatmul.mubr.f32.gmra.mrb[0].mxu0 %v1493
    %v1561 = vpop.f32.mrb[0].mxu0
    %v1562 = vadd.f32 0.0, %v1561
    %v1563 = vpop.f32.mrb[0].mxu0
    %1564 = vdwg.mxu0
    %v1565 = vmul.f32 %v1562, %v1562
    %v1566 = vsel %vm30, %v1565, 0.0
    %1567 = vadd.xlane.f32.xlu0 %v1566
    %v1568 = vpop.xlane.xlu0 %1567
    %v1569 = vadd.f32 %v1568, 0.001
    %v1570 = vrsqrt.pop %v1569
    %v1571 = vmul.f32 %v1562, %v1570
    %v1572 = vmax.f32 %v1571, 0.0
    %v1573 = vmul.f32 %v1572, 0.1
    %v1574 = vsub.f32 %v1407, %v1573
    %v1576 = vsel %vm30, %v1574, 0
    %1578 = vmatprep.subr.mxu0 0.0
    %1579 = vmatpush1.msra.mxu0 %v28
    %1580 = vmatprep.subr.mxu0 0.0
    %1581 = vmatpush1.msra.mxu0 %v29
    %1582 = vmatprep.subr.mxu0 0.0
    %1583 = vmatpush1.msra.mxu0 0.0
    %1584 = vmatprep.subr.mxu0 0.0
    %1585 = vmatpush1.msra.mxu0 0.0
    %1586 = vmatprep.subr.mxu0 0.0
    %1587 = vmatpush1.msra.mxu0 0.0
    %1588 = vmatprep.subr.mxu0 0.0
    %1589 = vmatpush1.msra.mxu0 0.0
    %1590 = vmatprep.subr.mxu0 0.0
    %1591 = vmatpush1.msra.mxu0 0.0
    %1592 = vmatprep.subr.mxu0 0.0
    %1593 = vmatpush1.msra.mxu0 0.0
    %1594 = vmatprep.subr.mxu0 0.0
    %1595 = vmatpush1.msra.mxu0 0.0
    %1596 = vmatprep.subr.mxu0 0.0
    %1597 = vmatpush1.msra.mxu0 0.0
    %1598 = vmatprep.subr.mxu0 0.0
    %1599 = vmatpush1.msra.mxu0 0.0
    %1600 = vmatprep.subr.mxu0 0.0
    %1601 = vmatpush1.msra.mxu0 0.0
    %1602 = vmatprep.subr.mxu0 0.0
    %1603 = vmatpush1.msra.mxu0 0.0
    %1604 = vmatprep.subr.mxu0 0.0
    %1605 = vmatpush1.msra.mxu0 0.0
    %1606 = vmatprep.subr.mxu0 0.0
    %1607 = vmatpush1.msra.mxu0 0.0
    %1608 = vmatprep.subr.mxu0 0.0
    %1609 = vmatpush1.msra.mxu0 0.0
    %1610 = vmatprep.subr.mxu0 0.0
    %1611 = vmatpush1.msra.mxu0 0.0
    %1612 = vmatprep.subr.mxu0 0.0
    %1613 = vmatpush1.msra.mxu0 0.0
    %1614 = vmatprep.subr.mxu0 0.0
    %1615 = vmatpush1.msra.mxu0 0.0
    %1616 = vmatprep.subr.mxu0 0.0
    %1617 = vmatpush1.msra.mxu0 0.0
    %1618 = vmatprep.subr.mxu0 0.0
    %1619 = vmatpush1.msra.mxu0 0.0
    %1620 = vmatprep.subr.mxu0 0.0
    %1621 = vmatpush1.msra.mxu0 0.0
    %1622 = vmatprep.subr.mxu0 0.0
    %1623 = vmatpush1.msra.mxu0 0.0
    %1624 = vmatprep.subr.mxu0 0.0
    %1625 = vmatpush1.msra.mxu0 0.0
    %1626 = vmatprep.subr.mxu0 0.0
    %1627 = vmatpush1.msra.mxu0 0.0
    %1628 = vmatprep.subr.mxu0 0.0
    %1629 = vmatpush1.msra.mxu0 0.0
    %1630 = vmatprep.subr.mxu0 0.0
    %1631 = vmatpush1.msra.mxu0 0.0
    %1632 = vmatprep.subr.mxu0 0.0
    %1633 = vmatpush1.msra.mxu0 0.0
    %1634 = vmatprep.subr.mxu0 0.0
    %1635 = vmatpush1.msra.mxu0 0.0
    %1636 = vmatprep.subr.mxu0 0.0
    %1637 = vmatpush1.msra.mxu0 0.0
    %1638 = vmatprep.subr.mxu0 0.0
    %1639 = vmatpush1.msra.mxu0 0.0
    %1640 = vmatprep.subr.mxu0 0.0
    %1641 = vmatpush1.msra.mxu0 0.0
    %1642 = vmatprep.mubr.f32.mxu0 0.0
    %1643 = vmatmul.mubr.f32.gmra.mrb[0].mxu0 %v1576
    %v1644 = vpop.f32.mrb[0].mxu0
    %v1645 = vadd.f32 0.0, %v1644
    %v1646 = vpop.f32.mrb[0].mxu0
    %1647 = vdwg.mxu0
    %v1648 = vmul.f32 %v1645, %v1645
    %v1649 = vsel %vm105, %v1648, 0.0
    %1650 = vadd.xlane.f32.xlu0 %v1649
    %v1651 = vpop.xlane.xlu0 %1650
    %v1652 = vadd.f32 %v1651, 0.001
    %v1653 = vrsqrt.pop %v1652
    %v1654 = vmul.f32 %v1645, %v1653
    %v1655 = vmax.f32 %v1654, 0.0
    %1657 = vrot.lane.b32.xlu0 %v27, 96
    %v1658 = vpop.permute.xlu0 %1657
    %v1660 = vadd.f32 %v1655, %v1658
    %v1661 = vmul.f32 %v1660, 0.1
    %v1662 = vadd.f32 %v1491, %v1661
    %v1664 = vsel %vm105, %v1662, 0
    %1666 = vmatprep.subr.mxu0 0.0
    %1667 = vmatpush1.msra.mxu0 %v116
    %1668 = vmatprep.subr.mxu0 0.0
    %1669 = vmatpush1.msra.mxu0 %v117
    %1670 = vmatprep.subr.mxu0 0.0
    %1671 = vmatpush1.msra.mxu0 %v118
    %1672 = vmatprep.subr.mxu0 0.0
    %1673 = vmatpush1.msra.mxu0 %v119
    %1674 = vmatprep.subr.mxu0 0.0
    %1675 = vmatpush1.msra.mxu0 0.0
    %1676 = vmatprep.subr.mxu0 0.0
    %1677 = vmatpush1.msra.mxu0 0.0
    %1678 = vmatprep.subr.mxu0 0.0
    %1679 = vmatpush1.msra.mxu0 0.0
    %1680 = vmatprep.subr.mxu0 0.0
    %1681 = vmatpush1.msra.mxu0 0.0
    %1682 = vmatprep.subr.mxu0 0.0
    %1683 = vmatpush1.msra.mxu0 0.0
    %1684 = vmatprep.subr.mxu0 0.0
    %1685 = vmatpush1.msra.mxu0 0.0
    %1686 = vmatprep.subr.mxu0 0.0
    %1687 = vmatpush1.msra.mxu0 0.0
    %1688 = vmatprep.subr.mxu0 0.0
    %1689 = vmatpush1.msra.mxu0 0.0
    %1690 = vmatprep.subr.mxu0 0.0
    %1691 = vmatpush1.msra.mxu0 0.0
    %1692 = vmatprep.subr.mxu0 0.0
    %1693 = vmatpush1.msra.mxu0 0.0
    %1694 = vmatprep.subr.mxu0 0.0
    %1695 = vmatpush1.msra.mxu0 0.0
    %1696 = vmatprep.subr.mxu0 0.0
    %1697 = vmatpush1.msra.mxu0 0.0
    %1698 = vmatprep.subr.mxu0 0.0
    %1699 = vmatpush1.msra.mxu0 0.0
    %1700 = vmatprep.subr.mxu0 0.0
    %1701 = vmatpush1.msra.mxu0 0.0
    %1702 = vmatprep.subr.mxu0 0.0
    %1703 = vmatpush1.msra.mxu0 0.0
    %1704 = vmatprep.subr.mxu0 0.0
    %1705 = vmatpush1.msra.mxu0 0.0
    %1706 = vmatprep.subr.mxu0 0.0
    %1707 = vmatpush1.msra.mxu0 0.0
    %1708 = vmatprep.subr.mxu0 0.0
    %1709 = vmatpush1.msra.mxu0 0.0
    %1710 = vmatprep.subr.mxu0 0.0
    %1711 = vmatpush1.msra.mxu0 0.0
    %1712 = vmatprep.subr.mxu0 0.0
    %1713 = vmatpush1.msra.mxu0 0.0
    %1714 = vmatprep.subr.mxu0 0.0
    %1715 = vmatpush1.msra.mxu0 0.0
    %1716 = vmatprep.subr.mxu0 0.0
    %1717 = vmatpush1.msra.mxu0 0.0
    %1718 = vmatprep.subr.mxu0 0.0
    %1719 = vmatpush1.msra.mxu0 0.0
    %1720 = vmatprep.subr.mxu0 0.0
    %1721 = vmatpush1.msra.mxu0 0.0
    %1722 = vmatprep.subr.mxu0 0.0
    %1723 = vmatpush1.msra.mxu0 0.0
    %1724 = vmatprep.subr.mxu0 0.0
    %1725 = vmatpush1.msra.mxu0 0.0
    %1726 = vmatprep.subr.mxu0 0.0
    %1727 = vmatpush1.msra.mxu0 0.0
    %1728 = vmatprep.subr.mxu0 0.0
    %1729 = vmatpush1.msra.mxu0 0.0
    %1730 = vmatprep.mubr.f32.mxu0 0.0
    %1731 = vmatmul.mubr.f32.gmra.mrb[0].mxu0 %v1664
    %v1732 = vpop.f32.mrb[0].mxu0
    %v1733 = vadd.f32 0.0, %v1732
    %v1734 = vpop.f32.mrb[0].mxu0
    %1735 = vdwg.mxu0
    %v1736 = vmul.f32 %v1733, %v1733
    %v1737 = vsel %vm30, %v1736, 0.0
    %1738 = vadd.xlane.f32.xlu0 %v1737
    %v1739 = vpop.xlane.xlu0 %1738
    %v1740 = vadd.f32 %v1739, 0.001
    %v1741 = vrsqrt.pop %v1740
    %v1742 = vmul.f32 %v1733, %v1741
    %v1743 = vmax.f32 %v1742, 0.0
    %v1744 = vmul.f32 %v1743, 0.1
    %v1745 = vsub.f32 %v1574, %v1744
    %v1747 = vsel %vm30, %v1745, 0
    %1749 = vmatprep.subr.mxu0 0.0
    %1750 = vmatpush1.msra.mxu0 %v204
    %1751 = vmatprep.subr.mxu0 0.0
    %1752 = vmatpush1.msra.mxu0 %v205
    %1753 = vmatprep.subr.mxu0 0.0
    %1754 = vmatpush1.msra.mxu0 0.0
    %1755 = vmatprep.subr.mxu0 0.0
    %1756 = vmatpush1.msra.mxu0 0.0
    %1757 = vmatprep.subr.mxu0 0.0
    %1758 = vmatpush1.msra.mxu0 0.0
    %1759 = vmatprep.subr.mxu0 0.0
    %1760 = vmatpush1.msra.mxu0 0.0
    %1761 = vmatprep.subr.mxu0 0.0
    %1762 = vmatpush1.msra.mxu0 0.0
    %1763 = vmatprep.subr.mxu0 0.0
    %1764 = vmatpush1.msra.mxu0 0.0
    %1765 = vmatprep.subr.mxu0 0.0
    %1766 = vmatpush1.msra.mxu0 0.0
    %1767 = vmatprep.subr.mxu0 0.0
    %1768 = vmatpush1.msra.mxu0 0.0
    %1769 = vmatprep.subr.mxu0 0.0
    %1770 = vmatpush1.msra.mxu0 0.0
    %1771 = vmatprep.subr.mxu0 0.0
    %1772 = vmatpush1.msra.mxu0 0.0
    %1773 = vmatprep.subr.mxu0 0.0
    %1774 = vmatpush1.msra.mxu0 0.0
    %1775 = vmatprep.subr.mxu0 0.0
    %1776 = vmatpush1.msra.mxu0 0.0
    %1777 = vmatprep.subr.mxu0 0.0
    %1778 = vmatpush1.msra.mxu0 0.0
    %1779 = vmatprep.subr.mxu0 0.0
    %1780 = vmatpush1.msra.mxu0 0.0
    %1781 = vmatprep.subr.mxu0 0.0
    %1782 = vmatpush1.msra.mxu0 0.0
    %1783 = vmatprep.subr.mxu0 0.0
    %1784 = vmatpush1.msra.mxu0 0.0
    %1785 = vmatprep.subr.mxu0 0.0
    %1786 = vmatpush1.msra.mxu0 0.0
    %1787 = vmatprep.subr.mxu0 0.0
    %1788 = vmatpush1.msra.mxu0 0.0
    %1789 = vmatprep.subr.mxu0 0.0
    %1790 = vmatpush1.msra.mxu0 0.0
    %1791 = vmatprep.subr.mxu0 0.0
    %1792 = vmatpush1.msra.mxu0 0.0
    %1793 = vmatprep.subr.mxu0 0.0
    %1794 = vmatpush1.msra.mxu0 0.0
    %1795 = vmatprep.subr.mxu0 0.0
    %1796 = vmatpush1.msra.mxu0 0.0
    %1797 = vmatprep.subr.mxu0 0.0
    %1798 = vmatpush1.msra.mxu0 0.0
    %1799 = vmatprep.subr.mxu0 0.0
    %1800 = vmatpush1.msra.mxu0 0.0
    %1801 = vmatprep.subr.mxu0 0.0
    %1802 = vmatpush1.msra.mxu0 0.0
    %1803 = vmatprep.subr.mxu0 0.0
    %1804 = vmatpush1.msra.mxu0 0.0
    %1805 = vmatprep.subr.mxu0 0.0
    %1806 = vmatpush1.msra.mxu0 0.0
    %1807 = vmatprep.subr.mxu0 0.0
    %1808 = vmatpush1.msra.mxu0 0.0
    %1809 = vmatprep.subr.mxu0 0.0
    %1810 = vmatpush1.msra.mxu0 0.0
    %1811 = vmatprep.subr.mxu0 0.0
    %1812 = vmatpush1.msra.mxu0 0.0
    %1813 = vmatprep.mubr.f32.mxu0 0.0
    %1814 = vmatmul.mubr.f32.gmra.mrb[0].mxu0 %v1747
    %v1815 = vpop.f32.mrb[0].mxu0
    %v1816 = vadd.f32 0.0, %v1815
    %v1817 = vpop.f32.mrb[0].mxu0
    %1818 = vdwg.mxu0
    %v1819 = vmul.f32 %v1816, %v1816
    %v1820 = vsel %vm105, %v1819, 0.0
    %1821 = vadd.xlane.f32.xlu0 %v1820
    %v1822 = vpop.xlane.xlu0 %1821
    %v1823 = vadd.f32 %v1822, 0.001
    %v1824 = vrsqrt.pop %v1823
    %v1825 = vmul.f32 %v1816, %v1824
    %v1826 = vmax.f32 %v1825, 0.0
    %1827 = vrot.lane.b32.xlu0 %v27, 64
    %v1828 = vpop.permute.xlu0 %1827
    %v1830 = vadd.f32 %v1826, %v1828
    %v1831 = vmul.f32 %v1830, 0.1
    %v1832 = vadd.f32 %v1662, %v1831
    %v1834 = vsel %vm105, %v1832, 0
    %1836 = vmatprep.subr.mxu0 0.0
    %1837 = vmatpush1.msra.mxu0 %v295
    %1838 = vmatprep.subr.mxu0 0.0
    %1839 = vmatpush1.msra.mxu0 %v296
    %1840 = vmatprep.subr.mxu0 0.0
    %1841 = vmatpush1.msra.mxu0 %v297
    %1842 = vmatprep.subr.mxu0 0.0
    %1843 = vmatpush1.msra.mxu0 %v298
    %1844 = vmatprep.subr.mxu0 0.0
    %1845 = vmatpush1.msra.mxu0 0.0
    %1846 = vmatprep.subr.mxu0 0.0
    %1847 = vmatpush1.msra.mxu0 0.0
    %1848 = vmatprep.subr.mxu0 0.0
    %1849 = vmatpush1.msra.mxu0 0.0
    %1850 = vmatprep.subr.mxu0 0.0
    %1851 = vmatpush1.msra.mxu0 0.0
    %1852 = vmatprep.subr.mxu0 0.0
    %1853 = vmatpush1.msra.mxu0 0.0
    %1854 = vmatprep.subr.mxu0 0.0
    %1855 = vmatpush1.msra.mxu0 0.0
    %1856 = vmatprep.subr.mxu0 0.0
    %1857 = vmatpush1.msra.mxu0 0.0
    %1858 = vmatprep.subr.mxu0 0.0
    %1859 = vmatpush1.msra.mxu0 0.0
    %1860 = vmatprep.subr.mxu0 0.0
    %1861 = vmatpush1.msra.mxu0 0.0
    %1862 = vmatprep.subr.mxu0 0.0
    %1863 = vmatpush1.msra.mxu0 0.0
    %1864 = vmatprep.subr.mxu0 0.0
    %1865 = vmatpush1.msra.mxu0 0.0
    %1866 = vmatprep.subr.mxu0 0.0
    %1867 = vmatpush1.msra.mxu0 0.0
    %1868 = vmatprep.subr.mxu0 0.0
    %1869 = vmatpush1.msra.mxu0 0.0
    %1870 = vmatprep.subr.mxu0 0.0
    %1871 = vmatpush1.msra.mxu0 0.0
    %1872 = vmatprep.subr.mxu0 0.0
    %1873 = vmatpush1.msra.mxu0 0.0
    %1874 = vmatprep.subr.mxu0 0.0
    %1875 = vmatpush1.msra.mxu0 0.0
    %1876 = vmatprep.subr.mxu0 0.0
    %1877 = vmatpush1.msra.mxu0 0.0
    %1878 = vmatprep.subr.mxu0 0.0
    %1879 = vmatpush1.msra.mxu0 0.0
    %1880 = vmatprep.subr.mxu0 0.0
    %1881 = vmatpush1.msra.mxu0 0.0
    %1882 = vmatprep.subr.mxu0 0.0
    %1883 = vmatpush1.msra.mxu0 0.0
    %1884 = vmatprep.subr.mxu0 0.0
    %1885 = vmatpush1.msra.mxu0 0.0
    %1886 = vmatprep.subr.mxu0 0.0
    %1887 = vmatpush1.msra.mxu0 0.0
    %1888 = vmatprep.subr.mxu0 0.0
    %1889 = vmatpush1.msra.mxu0 0.0
    %1890 = vmatprep.subr.mxu0 0.0
    %1891 = vmatpush1.msra.mxu0 0.0
    %1892 = vmatprep.subr.mxu0 0.0
    %1893 = vmatpush1.msra.mxu0 0.0
    %1894 = vmatprep.subr.mxu0 0.0
    %1895 = vmatpush1.msra.mxu0 0.0
    %1896 = vmatprep.subr.mxu0 0.0
    %1897 = vmatpush1.msra.mxu0 0.0
    %1898 = vmatprep.subr.mxu0 0.0
    %1899 = vmatpush1.msra.mxu0 0.0
    %1900 = vmatprep.mubr.f32.mxu0 0.0
    %1901 = vmatmul.mubr.f32.gmra.mrb[0].mxu0 %v1834
    %v1902 = vpop.f32.mrb[0].mxu0
    %v1903 = vadd.f32 0.0, %v1902
    %v1904 = vpop.f32.mrb[0].mxu0
    %1905 = vdwg.mxu0
    %v1906 = vmul.f32 %v1903, %v1903
    %v1907 = vsel %vm30, %v1906, 0.0
    %1908 = vadd.xlane.f32.xlu0 %v1907
    %v1909 = vpop.xlane.xlu0 %1908
    %v1910 = vadd.f32 %v1909, 0.001
    %v1911 = vrsqrt.pop %v1910
    %v1912 = vmul.f32 %v1903, %v1911
    %v1913 = vmax.f32 %v1912, 0.0
    %v1914 = vmul.f32 %v1913, 0.1
    %v1915 = vsub.f32 %v1745, %v1914
    %v1917 = vsel %vm30, %v1915, 0
    %1919 = vmatprep.subr.mxu0 0.0
    %1920 = vmatpush1.msra.mxu0 %v383
    %1921 = vmatprep.subr.mxu0 0.0
    %1922 = vmatpush1.msra.mxu0 %v384
    %1923 = vmatprep.subr.mxu0 0.0
    %1924 = vmatpush1.msra.mxu0 0.0
    %1925 = vmatprep.subr.mxu0 0.0
    %1926 = vmatpush1.msra.mxu0 0.0
    %1927 = vmatprep.subr.mxu0 0.0
    %1928 = vmatpush1.msra.mxu0 0.0
    %1929 = vmatprep.subr.mxu0 0.0
    %1930 = vmatpush1.msra.mxu0 0.0
    %1931 = vmatprep.subr.mxu0 0.0
    %1932 = vmatpush1.msra.mxu0 0.0
    %1933 = vmatprep.subr.mxu0 0.0
    %1934 = vmatpush1.msra.mxu0 0.0
    %1935 = vmatprep.subr.mxu0 0.0
    %1936 = vmatpush1.msra.mxu0 0.0
    %1937 = vmatprep.subr.mxu0 0.0
    %1938 = vmatpush1.msra.mxu0 0.0
    %1939 = vmatprep.subr.mxu0 0.0
    %1940 = vmatpush1.msra.mxu0 0.0
    %1941 = vmatprep.subr.mxu0 0.0
    %1942 = vmatpush1.msra.mxu0 0.0
    %1943 = vmatprep.subr.mxu0 0.0
    %1944 = vmatpush1.msra.mxu0 0.0
    %1945 = vmatprep.subr.mxu0 0.0
    %1946 = vmatpush1.msra.mxu0 0.0
    %1947 = vmatprep.subr.mxu0 0.0
    %1948 = vmatpush1.msra.mxu0 0.0
    %1949 = vmatprep.subr.mxu0 0.0
    %1950 = vmatpush1.msra.mxu0 0.0
    %1951 = vmatprep.subr.mxu0 0.0
    %1952 = vmatpush1.msra.mxu0 0.0
    %1953 = vmatprep.subr.mxu0 0.0
    %1954 = vmatpush1.msra.mxu0 0.0
    %1955 = vmatprep.subr.mxu0 0.0
    %1956 = vmatpush1.msra.mxu0 0.0
    %1957 = vmatprep.subr.mxu0 0.0
    %1958 = vmatpush1.msra.mxu0 0.0
    %1959 = vmatprep.subr.mxu0 0.0
    %1960 = vmatpush1.msra.mxu0 0.0
    %1961 = vmatprep.subr.mxu0 0.0
    %1962 = vmatpush1.msra.mxu0 0.0
    %1963 = vmatprep.subr.mxu0 0.0
    %1964 = vmatpush1.msra.mxu0 0.0
    %1965 = vmatprep.subr.mxu0 0.0
    %1966 = vmatpush1.msra.mxu0 0.0
    %1967 = vmatprep.subr.mxu0 0.0
    %1968 = vmatpush1.msra.mxu0 0.0
    %1969 = vmatprep.subr.mxu0 0.0
    %1970 = vmatpush1.msra.mxu0 0.0
    %1971 = vmatprep.subr.mxu0 0.0
    %1972 = vmatpush1.msra.mxu0 0.0
    %1973 = vmatprep.subr.mxu0 0.0
    %1974 = vmatpush1.msra.mxu0 0.0
    %1975 = vmatprep.subr.mxu0 0.0
    %1976 = vmatpush1.msra.mxu0 0.0
    %1977 = vmatprep.subr.mxu0 0.0
    %1978 = vmatpush1.msra.mxu0 0.0
    %1979 = vmatprep.subr.mxu0 0.0
    %1980 = vmatpush1.msra.mxu0 0.0
    %1981 = vmatprep.subr.mxu0 0.0
    %1982 = vmatpush1.msra.mxu0 0.0
    %1983 = vmatprep.mubr.f32.mxu0 0.0
    %1984 = vmatmul.mubr.f32.gmra.mrb[0].mxu0 %v1917
    %v1985 = vpop.f32.mrb[0].mxu0
    %v1986 = vadd.f32 0.0, %v1985
    %v1987 = vpop.f32.mrb[0].mxu0
    %1988 = vdwg.mxu0
    %v1989 = vmul.f32 %v1986, %v1986
    %v1990 = vsel %vm105, %v1989, 0.0
    %1991 = vadd.xlane.f32.xlu0 %v1990
    %v1992 = vpop.xlane.xlu0 %1991
    %v1993 = vadd.f32 %v1992, 0.001
    %v1994 = vrsqrt.pop %v1993
    %v1995 = vmul.f32 %v1986, %v1994
    %v1996 = vmax.f32 %v1995, 0.0
    %1997 = vrot.lane.b32.xlu0 %v27, 32
    %v1998 = vpop.permute.xlu0 %1997
    %v2000 = vadd.f32 %v1996, %v1998
    %v2001 = vmul.f32 %v2000, 0.1
    %v2002 = vadd.f32 %v1832, %v2001
    %v2004 = vsel %vm105, %v2002, 0
    %2006 = vmatprep.subr.mxu0 0.0
    %2007 = vmatpush1.msra.mxu0 %v473
    %2008 = vmatprep.subr.mxu0 0.0
    %2009 = vmatpush1.msra.mxu0 %v474
    %2010 = vmatprep.subr.mxu0 0.0
    %2011 = vmatpush1.msra.mxu0 %v475
    %2012 = vmatprep.subr.mxu0 0.0
    %2013 = vmatpush1.msra.mxu0 %v476
    %2014 = vmatprep.subr.mxu0 0.0
    %2015 = vmatpush1.msra.mxu0 0.0
    %2016 = vmatprep.subr.mxu0 0.0
    %2017 = vmatpush1.msra.mxu0 0.0
    %2018 = vmatprep.subr.mxu0 0.0
    %2019 = vmatpush1.msra.mxu0 0.0
    %2020 = vmatprep.subr.mxu0 0.0
    %2021 = vmatpush1.msra.mxu0 0.0
    %2022 = vmatprep.subr.mxu0 0.0
    %2023 = vmatpush1.msra.mxu0 0.0
    %2024 = vmatprep.subr.mxu0 0.0
    %2025 = vmatpush1.msra.mxu0 0.0
    %2026 = vmatprep.subr.mxu0 0.0
    %2027 = vmatpush1.msra.mxu0 0.0
    %2028 = vmatprep.subr.mxu0 0.0
    %2029 = vmatpush1.msra.mxu0 0.0
    %2030 = vmatprep.subr.mxu0 0.0
    %2031 = vmatpush1.msra.mxu0 0.0
    %2032 = vmatprep.subr.mxu0 0.0
    %2033 = vmatpush1.msra.mxu0 0.0
    %2034 = vmatprep.subr.mxu0 0.0
    %2035 = vmatpush1.msra.mxu0 0.0
    %2036 = vmatprep.subr.mxu0 0.0
    %2037 = vmatpush1.msra.mxu0 0.0
    %2038 = vmatprep.subr.mxu0 0.0
    %2039 = vmatpush1.msra.mxu0 0.0
    %2040 = vmatprep.subr.mxu0 0.0
    %2041 = vmatpush1.msra.mxu0 0.0
    %2042 = vmatprep.subr.mxu0 0.0
    %2043 = vmatpush1.msra.mxu0 0.0
    %2044 = vmatprep.subr.mxu0 0.0
    %2045 = vmatpush1.msra.mxu0 0.0
    %2046 = vmatprep.subr.mxu0 0.0
    %2047 = vmatpush1.msra.mxu0 0.0
    %2048 = vmatprep.subr.mxu0 0.0
    %2049 = vmatpush1.msra.mxu0 0.0
    %2050 = vmatprep.subr.mxu0 0.0
    %2051 = vmatpush1.msra.mxu0 0.0
    %2052 = vmatprep.subr.mxu0 0.0
    %2053 = vmatpush1.msra.mxu0 0.0
    %2054 = vmatprep.subr.mxu0 0.0
    %2055 = vmatpush1.msra.mxu0 0.0
    %2056 = vmatprep.subr.mxu0 0.0
    %2057 = vmatpush1.msra.mxu0 0.0
    %2058 = vmatprep.subr.mxu0 0.0
    %2059 = vmatpush1.msra.mxu0 0.0
    %2060 = vmatprep.subr.mxu0 0.0
    %2061 = vmatpush1.msra.mxu0 0.0
    %2062 = vmatprep.subr.mxu0 0.0
    %2063 = vmatpush1.msra.mxu0 0.0
    %2064 = vmatprep.subr.mxu0 0.0
    %2065 = vmatpush1.msra.mxu0 0.0
    %2066 = vmatprep.subr.mxu0 0.0
    %2067 = vmatpush1.msra.mxu0 0.0
    %2068 = vmatprep.subr.mxu0 0.0
    %2069 = vmatpush1.msra.mxu0 0.0
    %2070 = vmatprep.mubr.f32.mxu0 0.0
    %2071 = vmatmul.mubr.f32.gmra.mrb[0].mxu0 %v2004
    %v2072 = vpop.f32.mrb[0].mxu0
    %v2073 = vadd.f32 0.0, %v2072
    %v2074 = vpop.f32.mrb[0].mxu0
    %2075 = vdwg.mxu0
    %v2076 = vmul.f32 %v2073, %v2073
    %v2077 = vsel %vm30, %v2076, 0.0
    %2078 = vadd.xlane.f32.xlu0 %v2077
    %v2079 = vpop.xlane.xlu0 %2078
    %v2080 = vadd.f32 %v2079, 0.001
    %v2081 = vrsqrt.pop %v2080
    %v2082 = vmul.f32 %v2073, %v2081
    %v2083 = vmax.f32 %v2082, 0.0
    %v2084 = vmul.f32 %v2083, 0.1
    %v2085 = vsub.f32 %v1915, %v2084
    %2086 = vrot.lane.b32.xlu0 %v984, 32
    %v2087 = vpop.permute.xlu0 %2086
    %2089 = vrot.lane.b32.xlu0 %v1491, 64
    %v2090 = vpop.permute.xlu0 %2089
    %2092 = vrot.lane.b32.xlu0 %v2002, 96
    %v2093 = vpop.permute.xlu0 %2092
    %v2095 = vsel %vm105, %v471, %v2087
    %vm2096 = vcmask 523264
    %v2097 = vsel %vm2096, %v2095, %v2090
    %vm2098 = vcmask 785408
    %v2099 = vsel %vm2098, %v2097, %v2093
    %2100 = vst [vmem:[#allocation4] sm:$0xff] %v2099
    %s2101 = scalar_lea.vmem %s0, 24
    %v2102 = vld [vmem:[%s2101] sm:$0xff]
    %v2103 = vld [vmem:[%s2101 + $0x8] sm:$0xff]
    %v2104 = vld [vmem:[%s2101 + $0x10] sm:$0xff]
    %v2105 = vld [vmem:[%s1] sm:$0xff]
    %v2106 = vld [vmem:[%s1 + $0x8] sm:$0xff]
    %v2108 = vsel %vm30, %v2085, 0
    %2110 = vmatprep.subr.mxu0 0.0
    %2111 = vmatpush1.msra.mxu0 %v2105
    %2112 = vmatprep.subr.mxu0 0.0
    %2113 = vmatpush1.msra.mxu0 %v2106
    %2114 = vmatprep.subr.mxu0 0.0
    %2115 = vmatpush1.msra.mxu0 0.0
    %2116 = vmatprep.subr.mxu0 0.0
    %2117 = vmatpush1.msra.mxu0 0.0
    %2118 = vmatprep.subr.mxu0 0.0
    %2119 = vmatpush1.msra.mxu0 0.0
    %2120 = vmatprep.subr.mxu0 0.0
    %2121 = vmatpush1.msra.mxu0 0.0
    %2122 = vmatprep.subr.mxu0 0.0
    %2123 = vmatpush1.msra.mxu0 0.0
    %2124 = vmatprep.subr.mxu0 0.0
    %2125 = vmatpush1.msra.mxu0 0.0
    %2126 = vmatprep.subr.mxu0 0.0
    %2127 = vmatpush1.msra.mxu0 0.0
    %2128 = vmatprep.subr.mxu0 0.0
    %2129 = vmatpush1.msra.mxu0 0.0
    %2130 = vmatprep.subr.mxu0 0.0
    %2131 = vmatpush1.msra.mxu0 0.0
    %2132 = vmatprep.subr.mxu0 0.0
    %2133 = vmatpush1.msra.mxu0 0.0
    %2134 = vmatprep.subr.mxu0 0.0
    %2135 = vmatpush1.msra.mxu0 0.0
    %2136 = vmatprep.subr.mxu0 0.0
    %2137 = vmatpush1.msra.mxu0 0.0
    %2138 = vmatprep.subr.mxu0 0.0
    %2139 = vmatpush1.msra.mxu0 0.0
    %2140 = vmatprep.subr.mxu0 0.0
    %2141 = vmatpush1.msra.mxu0 0.0
    %2142 = vmatprep.subr.mxu0 0.0
    %2143 = vmatpush1.msra.mxu0 0.0
    %2144 = vmatprep.subr.mxu0 0.0
    %2145 = vmatpush1.msra.mxu0 0.0
    %2146 = vmatprep.subr.mxu0 0.0
    %2147 = vmatpush1.msra.mxu0 0.0
    %2148 = vmatprep.subr.mxu0 0.0
    %2149 = vmatpush1.msra.mxu0 0.0
    %2150 = vmatprep.subr.mxu0 0.0
    %2151 = vmatpush1.msra.mxu0 0.0
    %2152 = vmatprep.subr.mxu0 0.0
    %2153 = vmatpush1.msra.mxu0 0.0
    %2154 = vmatprep.subr.mxu0 0.0
    %2155 = vmatpush1.msra.mxu0 0.0
    %2156 = vmatprep.subr.mxu0 0.0
    %2157 = vmatpush1.msra.mxu0 0.0
    %2158 = vmatprep.subr.mxu0 0.0
    %2159 = vmatpush1.msra.mxu0 0.0
    %2160 = vmatprep.subr.mxu0 0.0
    %2161 = vmatpush1.msra.mxu0 0.0
    %2162 = vmatprep.subr.mxu0 0.0
    %2163 = vmatpush1.msra.mxu0 0.0
    %2164 = vmatprep.subr.mxu0 0.0
    %2165 = vmatpush1.msra.mxu0 0.0
    %2166 = vmatprep.subr.mxu0 0.0
    %2167 = vmatpush1.msra.mxu0 0.0
    %2168 = vmatprep.subr.mxu0 0.0
    %2169 = vmatpush1.msra.mxu0 0.0
    %2170 = vmatprep.subr.mxu0 0.0
    %2171 = vmatpush1.msra.mxu0 0.0
    %2172 = vmatprep.subr.mxu0 0.0
    %2173 = vmatpush1.msra.mxu0 0.0
    %2174 = vmatprep.mubr.f32.mxu0 0.0
    %2175 = vmatmul.mubr.f32.gmra.mrb[0].mxu0 %v2108
    %v2176 = vpop.f32.mrb[0].mxu0
    %v2177 = vadd.f32 0.0, %v2176
    %v2178 = vpop.f32.mrb[0].mxu0
    %2179 = vdwg.mxu0
    %v2180 = vmul.f32 %v2177, %v2177
    %v2181 = vsel %vm105, %v2180, 0.0
    %2182 = vadd.xlane.f32.xlu0 %v2181
    %v2183 = vpop.xlane.xlu0 %2182
    %v2184 = vadd.f32 %v2183, 0.001
    %v2185 = vrsqrt.pop %v2184
    %v2186 = vmul.f32 %v2177, %v2185
    %v2187 = vmax.f32 %v2186, 0.0
    %v2188 = vadd.f32 %v2187, %v2102
    %v2189 = vmul.f32 %v2188, 0.1
    %v2190 = vadd.f32 %v2002, %v2189
    %v2191 = vld [vmem:[%s2] sm:$0xff]
    %v2192 = vld [vmem:[%s2 + $0x8] sm:$0xff]
    %v2193 = vld [vmem:[%s2 + $0x10] sm:$0xff]
    %v2194 = vld [vmem:[%s2 + $0x18] sm:$0xff]
    %v2196 = vsel %vm105, %v2190, 0
    %2198 = vmatprep.subr.mxu0 0.0
    %2199 = vmatpush1.msra.mxu0 %v2191
    %2200 = vmatprep.subr.mxu0 0.0
    %2201 = vmatpush1.msra.mxu0 %v2192
    %2202 = vmatprep.subr.mxu0 0.0
    %2203 = vmatpush1.msra.mxu0 %v2193
    %2204 = vmatprep.subr.mxu0 0.0
    %2205 = vmatpush1.msra.mxu0 %v2194
    %2206 = vmatprep.subr.mxu0 0.0
    %2207 = vmatpush1.msra.mxu0 0.0
    %2208 = vmatprep.subr.mxu0 0.0
    %2209 = vmatpush1.msra.mxu0 0.0
    %2210 = vmatprep.subr.mxu0 0.0
    %2211 = vmatpush1.msra.mxu0 0.0
    %2212 = vmatprep.subr.mxu0 0.0
    %2213 = vmatpush1.msra.mxu0 0.0
    %2214 = vmatprep.subr.mxu0 0.0
    %2215 = vmatpush1.msra.mxu0 0.0
    %2216 = vmatprep.subr.mxu0 0.0
    %2217 = vmatpush1.msra.mxu0 0.0
    %2218 = vmatprep.subr.mxu0 0.0
    %2219 = vmatpush1.msra.mxu0 0.0
    %2220 = vmatprep.subr.mxu0 0.0
    %2221 = vmatpush1.msra.mxu0 0.0
    %2222 = vmatprep.subr.mxu0 0.0
    %2223 = vmatpush1.msra.mxu0 0.0
    %2224 = vmatprep.subr.mxu0 0.0
    %2225 = vmatpush1.msra.mxu0 0.0
    %2226 = vmatprep.subr.mxu0 0.0
    %2227 = vmatpush1.msra.mxu0 0.0
    %2228 = vmatprep.subr.mxu0 0.0
    %2229 = vmatpush1.msra.mxu0 0.0
    %2230 = vmatprep.subr.mxu0 0.0
    %2231 = vmatpush1.msra.mxu0 0.0
    %2232 = vmatprep.subr.mxu0 0.0
    %2233 = vmatpush1.msra.mxu0 0.0
    %2234 = vmatprep.subr.mxu0 0.0
    %2235 = vmatpush1.msra.mxu0 0.0
    %2236 = vmatprep.subr.mxu0 0.0
    %2237 = vmatpush1.msra.mxu0 0.0
    %2238 = vmatprep.subr.mxu0 0.0
    %2239 = vmatpush1.msra.mxu0 0.0
    %2240 = vmatprep.subr.mxu0 0.0
    %2241 = vmatpush1.msra.mxu0 0.0
    %2242 = vmatprep.subr.mxu0 0.0
    %2243 = vmatpush1.msra.mxu0 0.0
    %2244 = vmatprep.subr.mxu0 0.0
    %2245 = vmatpush1.msra.mxu0 0.0
    %2246 = vmatprep.subr.mxu0 0.0
    %2247 = vmatpush1.msra.mxu0 0.0
    %2248 = vmatprep.subr.mxu0 0.0
    %2249 = vmatpush1.msra.mxu0 0.0
    %2250 = vmatprep.subr.mxu0 0.0
    %2251 = vmatpush1.msra.mxu0 0.0
    %2252 = vmatprep.subr.mxu0 0.0
    %2253 = vmatpush1.msra.mxu0 0.0
    %2254 = vmatprep.subr.mxu0 0.0
    %2255 = vmatpush1.msra.mxu0 0.0
    %2256 = vmatprep.subr.mxu0 0.0
    %2257 = vmatpush1.msra.mxu0 0.0
    %2258 = vmatprep.subr.mxu0 0.0
    %2259 = vmatpush1.msra.mxu0 0.0
    %2260 = vmatprep.subr.mxu0 0.0
    %2261 = vmatpush1.msra.mxu0 0.0
    %2262 = vmatprep.mubr.f32.mxu0 0.0
    %2263 = vmatmul.mubr.f32.gmra.mrb[0].mxu0 %v2196
    %v2264 = vpop.f32.mrb[0].mxu0
    %v2265 = vadd.f32 0.0, %v2264
    %v2266 = vpop.f32.mrb[0].mxu0
    %2267 = vdwg.mxu0
    %v2268 = vmul.f32 %v2265, %v2265
    %v2269 = vsel %vm30, %v2268, 0.0
    %2270 = vadd.xlane.f32.xlu0 %v2269
    %v2271 = vpop.xlane.xlu0 %2270
    %v2272 = vadd.f32 %v2271, 0.001
    %v2273 = vrsqrt.pop %v2272
    %v2274 = vmul.f32 %v2265, %v2273
    %v2275 = vmax.f32 %v2274, 0.0
    %v2276 = vmul.f32 %v2275, 0.1
    %v2277 = vsub.f32 %v2085, %v2276
    %v2278 = vld [vmem:[%s203] sm:$0xff]
    %v2279 = vld [vmem:[%s203 + $0x8] sm:$0xff]
    %v2281 = vsel %vm30, %v2277, 0
    %2283 = vmatprep.subr.mxu0 0.0
    %2284 = vmatpush1.msra.mxu0 %v2278
    %2285 = vmatprep.subr.mxu0 0.0
    %2286 = vmatpush1.msra.mxu0 %v2279
    %2287 = vmatprep.subr.mxu0 0.0
    %2288 = vmatpush1.msra.mxu0 0.0
    %2289 = vmatprep.subr.mxu0 0.0
    %2290 = vmatpush1.msra.mxu0 0.0
    %2291 = vmatprep.subr.mxu0 0.0
    %2292 = vmatpush1.msra.mxu0 0.0
    %2293 = vmatprep.subr.mxu0 0.0
    %2294 = vmatpush1.msra.mxu0 0.0
    %2295 = vmatprep.subr.mxu0 0.0
    %2296 = vmatpush1.msra.mxu0 0.0
    %2297 = vmatprep.subr.mxu0 0.0
    %2298 = vmatpush1.msra.mxu0 0.0
    %2299 = vmatprep.subr.mxu0 0.0
    %2300 = vmatpush1.msra.mxu0 0.0
    %2301 = vmatprep.subr.mxu0 0.0
    %2302 = vmatpush1.msra.mxu0 0.0
    %2303 = vmatprep.subr.mxu0 0.0
    %2304 = vmatpush1.msra.mxu0 0.0
    %2305 = vmatprep.subr.mxu0 0.0
    %2306 = vmatpush1.msra.mxu0 0.0
    %2307 = vmatprep.subr.mxu0 0.0
    %2308 = vmatpush1.msra.mxu0 0.0
    %2309 = vmatprep.subr.mxu0 0.0
    %2310 = vmatpush1.msra.mxu0 0.0
    %2311 = vmatprep.subr.mxu0 0.0
    %2312 = vmatpush1.msra.mxu0 0.0
    %2313 = vmatprep.subr.mxu0 0.0
    %2314 = vmatpush1.msra.mxu0 0.0
    %2315 = vmatprep.subr.mxu0 0.0
    %2316 = vmatpush1.msra.mxu0 0.0
    %2317 = vmatprep.subr.mxu0 0.0
    %2318 = vmatpush1.msra.mxu0 0.0
    %2319 = vmatprep.subr.mxu0 0.0
    %2320 = vmatpush1.msra.mxu0 0.0
    %2321 = vmatprep.subr.mxu0 0.0
    %2322 = vmatpush1.msra.mxu0 0.0
    %2323 = vmatprep.subr.mxu0 0.0
    %2324 = vmatpush1.msra.mxu0 0.0
    %2325 = vmatprep.subr.mxu0 0.0
    %2326 = vmatpush1.msra.mxu0 0.0
    %2327 = vmatprep.subr.mxu0 0.0
    %2328 = vmatpush1.msra.mxu0 0.0
    %2329 = vmatprep.subr.mxu0 0.0
    %2330 = vmatpush1.msra.mxu0 0.0
    %2331 = vmatprep.subr.mxu0 0.0
    %2332 = vmatpush1.msra.mxu0 0.0
    %2333 = vmatprep.subr.mxu0 0.0
    %2334 = vmatpush1.msra.mxu0 0.0
    %2335 = vmatprep.subr.mxu0 0.0
    %2336 = vmatpush1.msra.mxu0 0.0
    %2337 = vmatprep.subr.mxu0 0.0
    %2338 = vmatpush1.msra.mxu0 0.0
    %2339 = vmatprep.subr.mxu0 0.0
    %2340 = vmatpush1.msra.mxu0 0.0
    %2341 = vmatprep.subr.mxu0 0.0
    %2342 = vmatpush1.msra.mxu0 0.0
    %2343 = vmatprep.subr.mxu0 0.0
    %2344 = vmatpush1.msra.mxu0 0.0
    %2345 = vmatprep.subr.mxu0 0.0
    %2346 = vmatpush1.msra.mxu0 0.0
    %2347 = vmatprep.mubr.f32.mxu0 0.0
    %2348 = vmatmul.mubr.f32.gmra.mrb[0].mxu0 %v2281
    %v2349 = vpop.f32.mrb[0].mxu0
    %v2350 = vadd.f32 0.0, %v2349
    %v2351 = vpop.f32.mrb[0].mxu0
    %2352 = vdwg.mxu0
    %v2353 = vmul.f32 %v2350, %v2350
    %v2354 = vsel %vm105, %v2353, 0.0
    %2355 = vadd.xlane.f32.xlu0 %v2354
    %v2356 = vpop.xlane.xlu0 %2355
    %v2357 = vadd.f32 %v2356, 0.001
    %v2358 = vrsqrt.pop %v2357
    %v2359 = vmul.f32 %v2350, %v2358
    %v2360 = vmax.f32 %v2359, 0.0
    %2362 = vrot.lane.b32.xlu0 %v2102, 96
    %v2363 = vpop.permute.xlu0 %2362
    %v2365 = vadd.f32 %v2360, %v2363
    %v2366 = vmul.f32 %v2365, 0.1
    %v2367 = vadd.f32 %v2190, %v2366
    %v2368 = vld [vmem:[%s294] sm:$0xff]
    %v2369 = vld [vmem:[%s294 + $0x8] sm:$0xff]
    %v2370 = vld [vmem:[%s294 + $0x10] sm:$0xff]
    %v2371 = vld [vmem:[%s294 + $0x18] sm:$0xff]
    %v2373 = vsel %vm105, %v2367, 0
    %2375 = vmatprep.subr.mxu0 0.0
    %2376 = vmatpush1.msra.mxu0 %v2368
    %2377 = vmatprep.subr.mxu0 0.0
    %2378 = vmatpush1.msra.mxu0 %v2369
    %2379 = vmatprep.subr.mxu0 0.0
    %2380 = vmatpush1.msra.mxu0 %v2370
    %2381 = vmatprep.subr.mxu0 0.0
    %2382 = vmatpush1.msra.mxu0 %v2371
    %2383 = vmatprep.subr.mxu0 0.0
    %2384 = vmatpush1.msra.mxu0 0.0
    %2385 = vmatprep.subr.mxu0 0.0
    %2386 = vmatpush1.msra.mxu0 0.0
    %2387 = vmatprep.subr.mxu0 0.0
    %2388 = vmatpush1.msra.mxu0 0.0
    %2389 = vmatprep.subr.mxu0 0.0
    %2390 = vmatpush1.msra.mxu0 0.0
    %2391 = vmatprep.subr.mxu0 0.0
    %2392 = vmatpush1.msra.mxu0 0.0
    %2393 = vmatprep.subr.mxu0 0.0
    %2394 = vmatpush1.msra.mxu0 0.0
    %2395 = vmatprep.subr.mxu0 0.0
    %2396 = vmatpush1.msra.mxu0 0.0
    %2397 = vmatprep.subr.mxu0 0.0
    %2398 = vmatpush1.msra.mxu0 0.0
    %2399 = vmatprep.subr.mxu0 0.0
    %2400 = vmatpush1.msra.mxu0 0.0
    %2401 = vmatprep.subr.mxu0 0.0
    %2402 = vmatpush1.msra.mxu0 0.0
    %2403 = vmatprep.subr.mxu0 0.0
    %2404 = vmatpush1.msra.mxu0 0.0
    %2405 = vmatprep.subr.mxu0 0.0
    %2406 = vmatpush1.msra.mxu0 0.0
    %2407 = vmatprep.subr.mxu0 0.0
    %2408 = vmatpush1.msra.mxu0 0.0
    %2409 = vmatprep.subr.mxu0 0.0
    %2410 = vmatpush1.msra.mxu0 0.0
    %2411 = vmatprep.subr.mxu0 0.0
    %2412 = vmatpush1.msra.mxu0 0.0
    %2413 = vmatprep.subr.mxu0 0.0
    %2414 = vmatpush1.msra.mxu0 0.0
    %2415 = vmatprep.subr.mxu0 0.0
    %2416 = vmatpush1.msra.mxu0 0.0
    %2417 = vmatprep.subr.mxu0 0.0
    %2418 = vmatpush1.msra.mxu0 0.0
    %2419 = vmatprep.subr.mxu0 0.0
    %2420 = vmatpush1.msra.mxu0 0.0
    %2421 = vmatprep.subr.mxu0 0.0
    %2422 = vmatpush1.msra.mxu0 0.0
    %2423 = vmatprep.subr.mxu0 0.0
    %2424 = vmatpush1.msra.mxu0 0.0
    %2425 = vmatprep.subr.mxu0 0.0
    %2426 = vmatpush1.msra.mxu0 0.0
    %2427 = vmatprep.subr.mxu0 0.0
    %2428 = vmatpush1.msra.mxu0 0.0
    %2429 = vmatprep.subr.mxu0 0.0
    %2430 = vmatpush1.msra.mxu0 0.0
    %2431 = vmatprep.subr.mxu0 0.0
    %2432 = vmatpush1.msra.mxu0 0.0
    %2433 = vmatprep.subr.mxu0 0.0
    %2434 = vmatpush1.msra.mxu0 0.0
    %2435 = vmatprep.subr.mxu0 0.0
    %2436 = vmatpush1.msra.mxu0 0.0
    %2437 = vmatprep.subr.mxu0 0.0
    %2438 = vmatpush1.msra.mxu0 0.0
    %2439 = vmatprep.mubr.f32.mxu0 0.0
    %2440 = vmatmul.mubr.f32.gmra.mrb[0].mxu0 %v2373
    %v2441 = vpop.f32.mrb[0].mxu0
    %v2442 = vadd.f32 0.0, %v2441
    %v2443 = vpop.f32.mrb[0].mxu0
    %2444 = vdwg.mxu0
    %v2445 = vmul.f32 %v2442, %v2442
    %v2446 = vsel %vm30, %v2445, 0.0
    %2447 = vadd.xlane.f32.xlu0 %v2446
    %v2448 = vpop.xlane.xlu0 %2447
    %v2449 = vadd.f32 %v2448, 0.001
    %v2450 = vrsqrt.pop %v2449
    %v2451 = vmul.f32 %v2442, %v2450
    %v2452 = vmax.f32 %v2451, 0.0
    %v2453 = vmul.f32 %v2452, 0.1
    %v2454 = vsub.f32 %v2277, %v2453
    %v2455 = vld [vmem:[%s382] sm:$0xff]
    %v2456 = vld [vmem:[%s382 + $0x8] sm:$0xff]
    %v2458 = vsel %vm30, %v2454, 0
    %2460 = vmatprep.subr.mxu0 0.0
    %2461 = vmatpush1.msra.mxu0 %v2455
    %2462 = vmatprep.subr.mxu0 0.0
    %2463 = vmatpush1.msra.mxu0 %v2456
    %2464 = vmatprep.subr.mxu0 0.0
    %2465 = vmatpush1.msra.mxu0 0.0
    %2466 = vmatprep.subr.mxu0 0.0
    %2467 = vmatpush1.msra.mxu0 0.0
    %2468 = vmatprep.subr.mxu0 0.0
    %2469 = vmatpush1.msra.mxu0 0.0
    %2470 = vmatprep.subr.mxu0 0.0
    %2471 = vmatpush1.msra.mxu0 0.0
    %2472 = vmatprep.subr.mxu0 0.0
    %2473 = vmatpush1.msra.mxu0 0.0
    %2474 = vmatprep.subr.mxu0 0.0
    %2475 = vmatpush1.msra.mxu0 0.0
    %2476 = vmatprep.subr.mxu0 0.0
    %2477 = vmatpush1.msra.mxu0 0.0
    %2478 = vmatprep.subr.mxu0 0.0
    %2479 = vmatpush1.msra.mxu0 0.0
    %2480 = vmatprep.subr.mxu0 0.0
    %2481 = vmatpush1.msra.mxu0 0.0
    %2482 = vmatprep.subr.mxu0 0.0
    %2483 = vmatpush1.msra.mxu0 0.0
    %2484 = vmatprep.subr.mxu0 0.0
    %2485 = vmatpush1.msra.mxu0 0.0
    %2486 = vmatprep.subr.mxu0 0.0
    %2487 = vmatpush1.msra.mxu0 0.0
    %2488 = vmatprep.subr.mxu0 0.0
    %2489 = vmatpush1.msra.mxu0 0.0
    %2490 = vmatprep.subr.mxu0 0.0
    %2491 = vmatpush1.msra.mxu0 0.0
    %2492 = vmatprep.subr.mxu0 0.0
    %2493 = vmatpush1.msra.mxu0 0.0
    %2494 = vmatprep.subr.mxu0 0.0
    %2495 = vmatpush1.msra.mxu0 0.0
    %2496 = vmatprep.subr.mxu0 0.0
    %2497 = vmatpush1.msra.mxu0 0.0
    %2498 = vmatprep.subr.mxu0 0.0
    %2499 = vmatpush1.msra.mxu0 0.0
    %2500 = vmatprep.subr.mxu0 0.0
    %2501 = vmatpush1.msra.mxu0 0.0
    %2502 = vmatprep.subr.mxu0 0.0
    %2503 = vmatpush1.msra.mxu0 0.0
    %2504 = vmatprep.subr.mxu0 0.0
    %2505 = vmatpush1.msra.mxu0 0.0
    %2506 = vmatprep.subr.mxu0 0.0
    %2507 = vmatpush1.msra.mxu0 0.0
    %2508 = vmatprep.subr.mxu0 0.0
    %2509 = vmatpush1.msra.mxu0 0.0
    %2510 = vmatprep.subr.mxu0 0.0
    %2511 = vmatpush1.msra.mxu0 0.0
    %2512 = vmatprep.subr.mxu0 0.0
    %2513 = vmatpush1.msra.mxu0 0.0
    %2514 = vmatprep.subr.mxu0 0.0
    %2515 = vmatpush1.msra.mxu0 0.0
    %2516 = vmatprep.subr.mxu0 0.0
    %2517 = vmatpush1.msra.mxu0 0.0
    %2518 = vmatprep.subr.mxu0 0.0
    %2519 = vmatpush1.msra.mxu0 0.0
    %2520 = vmatprep.subr.mxu0 0.0
    %2521 = vmatpush1.msra.mxu0 0.0
    %2522 = vmatprep.subr.mxu0 0.0
    %2523 = vmatpush1.msra.mxu0 0.0
    %2524 = vmatprep.mubr.f32.mxu0 0.0
    %2525 = vmatmul.mubr.f32.gmra.mrb[0].mxu0 %v2458
    %v2526 = vpop.f32.mrb[0].mxu0
    %v2527 = vadd.f32 0.0, %v2526
    %v2528 = vpop.f32.mrb[0].mxu0
    %2529 = vdwg.mxu0
    %v2530 = vmul.f32 %v2527, %v2527
    %v2531 = vsel %vm105, %v2530, 0.0
    %2532 = vadd.xlane.f32.xlu0 %v2531
    %v2533 = vpop.xlane.xlu0 %2532
    %v2534 = vadd.f32 %v2533, 0.001
    %v2535 = vrsqrt.pop %v2534
    %v2536 = vmul.f32 %v2527, %v2535
    %v2537 = vmax.f32 %v2536, 0.0
    %2538 = vrot.lane.b32.xlu0 %v2102, 64
    %v2539 = vpop.permute.xlu0 %2538
    %v2541 = vadd.f32 %v2537, %v2539
    %v2542 = vmul.f32 %v2541, 0.1
    %v2543 = vadd.f32 %v2367, %v2542
    %v2544 = vld [vmem:[%s472] sm:$0xff]
    %v2545 = vld [vmem:[%s472 + $0x8] sm:$0xff]
    %v2546 = vld [vmem:[%s472 + $0x10] sm:$0xff]
    %v2547 = vld [vmem:[%s472 + $0x18] sm:$0xff]
    %v2549 = vsel %vm105, %v2543, 0
    %2551 = vmatprep.subr.mxu0 0.0
    %2552 = vmatpush1.msra.mxu0 %v2544
    %2553 = vmatprep.subr.mxu0 0.0
    %2554 = vmatpush1.msra.mxu0 %v2545
    %2555 = vmatprep.subr.mxu0 0.0
    %2556 = vmatpush1.msra.mxu0 %v2546
    %2557 = vmatprep.subr.mxu0 0.0
    %2558 = vmatpush1.msra.mxu0 %v2547
    %2559 = vmatprep.subr.mxu0 0.0
    %2560 = vmatpush1.msra.mxu0 0.0
    %2561 = vmatprep.subr.mxu0 0.0
    %2562 = vmatpush1.msra.mxu0 0.0
    %2563 = vmatprep.subr.mxu0 0.0
    %2564 = vmatpush1.msra.mxu0 0.0
    %2565 = vmatprep.subr.mxu0 0.0
    %2566 = vmatpush1.msra.mxu0 0.0
    %2567 = vmatprep.subr.mxu0 0.0
    %2568 = vmatpush1.msra.mxu0 0.0
    %2569 = vmatprep.subr.mxu0 0.0
    %2570 = vmatpush1.msra.mxu0 0.0
    %2571 = vmatprep.subr.mxu0 0.0
    %2572 = vmatpush1.msra.mxu0 0.0
    %2573 = vmatprep.subr.mxu0 0.0
    %2574 = vmatpush1.msra.mxu0 0.0
    %2575 = vmatprep.subr.mxu0 0.0
    %2576 = vmatpush1.msra.mxu0 0.0
    %2577 = vmatprep.subr.mxu0 0.0
    %2578 = vmatpush1.msra.mxu0 0.0
    %2579 = vmatprep.subr.mxu0 0.0
    %2580 = vmatpush1.msra.mxu0 0.0
    %2581 = vmatprep.subr.mxu0 0.0
    %2582 = vmatpush1.msra.mxu0 0.0
    %2583 = vmatprep.subr.mxu0 0.0
    %2584 = vmatpush1.msra.mxu0 0.0
    %2585 = vmatprep.subr.mxu0 0.0
    %2586 = vmatpush1.msra.mxu0 0.0
    %2587 = vmatprep.subr.mxu0 0.0
    %2588 = vmatpush1.msra.mxu0 0.0
    %2589 = vmatprep.subr.mxu0 0.0
    %2590 = vmatpush1.msra.mxu0 0.0
    %2591 = vmatprep.subr.mxu0 0.0
    %2592 = vmatpush1.msra.mxu0 0.0
    %2593 = vmatprep.subr.mxu0 0.0
    %2594 = vmatpush1.msra.mxu0 0.0
    %2595 = vmatprep.subr.mxu0 0.0
    %2596 = vmatpush1.msra.mxu0 0.0
    %2597 = vmatprep.subr.mxu0 0.0
    %2598 = vmatpush1.msra.mxu0 0.0
    %2599 = vmatprep.subr.mxu0 0.0
    %2600 = vmatpush1.msra.mxu0 0.0
    %2601 = vmatprep.subr.mxu0 0.0
    %2602 = vmatpush1.msra.mxu0 0.0
    %2603 = vmatprep.subr.mxu0 0.0
    %2604 = vmatpush1.msra.mxu0 0.0
    %2605 = vmatprep.subr.mxu0 0.0
    %2606 = vmatpush1.msra.mxu0 0.0
    %2607 = vmatprep.subr.mxu0 0.0
    %2608 = vmatpush1.msra.mxu0 0.0
    %2609 = vmatprep.subr.mxu0 0.0
    %2610 = vmatpush1.msra.mxu0 0.0
    %2611 = vmatprep.subr.mxu0 0.0
    %2612 = vmatpush1.msra.mxu0 0.0
    %2613 = vmatprep.subr.mxu0 0.0
    %2614 = vmatpush1.msra.mxu0 0.0
    %2615 = vmatprep.mubr.f32.mxu0 0.0
    %2616 = vmatmul.mubr.f32.gmra.mrb[0].mxu0 %v2549
    %v2617 = vpop.f32.mrb[0].mxu0
    %v2618 = vadd.f32 0.0, %v2617
    %v2619 = vpop.f32.mrb[0].mxu0
    %2620 = vdwg.mxu0
    %v2621 = vmul.f32 %v2618, %v2618
    %v2622 = vsel %vm30, %v2621, 0.0
    %2623 = vadd.xlane.f32.xlu0 %v2622
    %v2624 = vpop.xlane.xlu0 %2623
    %v2625 = vadd.f32 %v2624, 0.001
    %v2626 = vrsqrt.pop %v2625
    %v2627 = vmul.f32 %v2618, %v2626
    %v2628 = vmax.f32 %v2627, 0.0
    %v2629 = vmul.f32 %v2628, 0.1
    %v2630 = vsub.f32 %v2454, %v2629
    %v2632 = vsel %vm30, %v2630, 0
    %2634 = vmatprep.subr.mxu0 0.0
    %2635 = vmatpush1.msra.mxu0 %v2105
    %2636 = vmatprep.subr.mxu0 0.0
    %2637 = vmatpush1.msra.mxu0 %v2106
    %2638 = vmatprep.subr.mxu0 0.0
    %2639 = vmatpush1.msra.mxu0 0.0
    %2640 = vmatprep.subr.mxu0 0.0
    %2641 = vmatpush1.msra.mxu0 0.0
    %2642 = vmatprep.subr.mxu0 0.0
    %2643 = vmatpush1.msra.mxu0 0.0
    %2644 = vmatprep.subr.mxu0 0.0
    %2645 = vmatpush1.msra.mxu0 0.0
    %2646 = vmatprep.subr.mxu0 0.0
    %2647 = vmatpush1.msra.mxu0 0.0
    %2648 = vmatprep.subr.mxu0 0.0
    %2649 = vmatpush1.msra.mxu0 0.0
    %2650 = vmatprep.subr.mxu0 0.0
    %2651 = vmatpush1.msra.mxu0 0.0
    %2652 = vmatprep.subr.mxu0 0.0
    %2653 = vmatpush1.msra.mxu0 0.0
    %2654 = vmatprep.subr.mxu0 0.0
    %2655 = vmatpush1.msra.mxu0 0.0
    %2656 = vmatprep.subr.mxu0 0.0
    %2657 = vmatpush1.msra.mxu0 0.0
    %2658 = vmatprep.subr.mxu0 0.0
    %2659 = vmatpush1.msra.mxu0 0.0
    %2660 = vmatprep.subr.mxu0 0.0
    %2661 = vmatpush1.msra.mxu0 0.0
    %2662 = vmatprep.subr.mxu0 0.0
    %2663 = vmatpush1.msra.mxu0 0.0
    %2664 = vmatprep.subr.mxu0 0.0
    %2665 = vmatpush1.msra.mxu0 0.0
    %2666 = vmatprep.subr.mxu0 0.0
    %2667 = vmatpush1.msra.mxu0 0.0
    %2668 = vmatprep.subr.mxu0 0.0
    %2669 = vmatpush1.msra.mxu0 0.0
    %2670 = vmatprep.subr.mxu0 0.0
    %2671 = vmatpush1.msra.mxu0 0.0
    %2672 = vmatprep.subr.mxu0 0.0
    %2673 = vmatpush1.msra.mxu0 0.0
    %2674 = vmatprep.subr.mxu0 0.0
    %2675 = vmatpush1.msra.mxu0 0.0
    %2676 = vmatprep.subr.mxu0 0.0
    %2677 = vmatpush1.msra.mxu0 0.0
    %2678 = vmatprep.subr.mxu0 0.0
    %2679 = vmatpush1.msra.mxu0 0.0
    %2680 = vmatprep.subr.mxu0 0.0
    %2681 = vmatpush1.msra.mxu0 0.0
    %2682 = vmatprep.subr.mxu0 0.0
    %2683 = vmatpush1.msra.mxu0 0.0
    %2684 = vmatprep.subr.mxu0 0.0
    %2685 = vmatpush1.msra.mxu0 0.0
    %2686 = vmatprep.subr.mxu0 0.0
    %2687 = vmatpush1.msra.mxu0 0.0
    %2688 = vmatprep.subr.mxu0 0.0
    %2689 = vmatpush1.msra.mxu0 0.0
    %2690 = vmatprep.subr.mxu0 0.0
    %2691 = vmatpush1.msra.mxu0 0.0
    %2692 = vmatprep.subr.mxu0 0.0
    %2693 = vmatpush1.msra.mxu0 0.0
    %2694 = vmatprep.subr.mxu0 0.0
    %2695 = vmatpush1.msra.mxu0 0.0
    %2696 = vmatprep.subr.mxu0 0.0
    %2697 = vmatpush1.msra.mxu0 0.0
    %2698 = vmatprep.mubr.f32.mxu0 0.0
    %2699 = vmatmul.mubr.f32.gmra.mrb[0].mxu0 %v2632
    %v2700 = vpop.f32.mrb[0].mxu0
    %v2701 = vadd.f32 0.0, %v2700
    %v2702 = vpop.f32.mrb[0].mxu0
    %2703 = vdwg.mxu0
    %v2704 = vmul.f32 %v2701, %v2701
    %v2705 = vsel %vm105, %v2704, 0.0
    %2706 = vadd.xlane.f32.xlu0 %v2705
    %v2707 = vpop.xlane.xlu0 %2706
    %v2708 = vadd.f32 %v2707, 0.001
    %v2709 = vrsqrt.pop %v2708
    %v2710 = vmul.f32 %v2701, %v2709
    %v2711 = vmax.f32 %v2710, 0.0
    %2712 = vrot.lane.b32.xlu0 %v2102, 32
    %v2713 = vpop.permute.xlu0 %2712
    %v2715 = vadd.f32 %v2711, %v2713
    %v2716 = vmul.f32 %v2715, 0.1
    %v2717 = vadd.f32 %v2543, %v2716
    %v2719 = vsel %vm105, %v2717, 0
    %2721 = vmatprep.subr.mxu0 0.0
    %2722 = vmatpush1.msra.mxu0 %v2191
    %2723 = vmatprep.subr.mxu0 0.0
    %2724 = vmatpush1.msra.mxu0 %v2192
    %2725 = vmatprep.subr.mxu0 0.0
    %2726 = vmatpush1.msra.mxu0 %v2193
    %2727 = vmatprep.subr.mxu0 0.0
    %2728 = vmatpush1.msra.mxu0 %v2194
    %2729 = vmatprep.subr.mxu0 0.0
    %2730 = vmatpush1.msra.mxu0 0.0
    %2731 = vmatprep.subr.mxu0 0.0
    %2732 = vmatpush1.msra.mxu0 0.0
    %2733 = vmatprep.subr.mxu0 0.0
    %2734 = vmatpush1.msra.mxu0 0.0
    %2735 = vmatprep.subr.mxu0 0.0
    %2736 = vmatpush1.msra.mxu0 0.0
    %2737 = vmatprep.subr.mxu0 0.0
    %2738 = vmatpush1.msra.mxu0 0.0
    %2739 = vmatprep.subr.mxu0 0.0
    %2740 = vmatpush1.msra.mxu0 0.0
    %2741 = vmatprep.subr.mxu0 0.0
    %2742 = vmatpush1.msra.mxu0 0.0
    %2743 = vmatprep.subr.mxu0 0.0
    %2744 = vmatpush1.msra.mxu0 0.0
    %2745 = vmatprep.subr.mxu0 0.0
    %2746 = vmatpush1.msra.mxu0 0.0
    %2747 = vmatprep.subr.mxu0 0.0
    %2748 = vmatpush1.msra.mxu0 0.0
    %2749 = vmatprep.subr.mxu0 0.0
    %2750 = vmatpush1.msra.mxu0 0.0
    %2751 = vmatprep.subr.mxu0 0.0
    %2752 = vmatpush1.msra.mxu0 0.0
    %2753 = vmatprep.subr.mxu0 0.0
    %2754 = vmatpush1.msra.mxu0 0.0
    %2755 = vmatprep.subr.mxu0 0.0
    %2756 = vmatpush1.msra.mxu0 0.0
    %2757 = vmatprep.subr.mxu0 0.0
    %2758 = vmatpush1.msra.mxu0 0.0
    %2759 = vmatprep.subr.mxu0 0.0
    %2760 = vmatpush1.msra.mxu0 0.0
    %2761 = vmatprep.subr.mxu0 0.0
    %2762 = vmatpush1.msra.mxu0 0.0
    %2763 = vmatprep.subr.mxu0 0.0
    %2764 = vmatpush1.msra.mxu0 0.0
    %2765 = vmatprep.subr.mxu0 0.0
    %2766 = vmatpush1.msra.mxu0 0.0
    %2767 = vmatprep.subr.mxu0 0.0
    %2768 = vmatpush1.msra.mxu0 0.0
    %2769 = vmatprep.subr.mxu0 0.0
    %2770 = vmatpush1.msra.mxu0 0.0
    %2771 = vmatprep.subr.mxu0 0.0
    %2772 = vmatpush1.msra.mxu0 0.0
    %2773 = vmatprep.subr.mxu0 0.0
    %2774 = vmatpush1.msra.mxu0 0.0
    %2775 = vmatprep.subr.mxu0 0.0
    %2776 = vmatpush1.msra.mxu0 0.0
    %2777 = vmatprep.subr.mxu0 0.0
    %2778 = vmatpush1.msra.mxu0 0.0
    %2779 = vmatprep.subr.mxu0 0.0
    %2780 = vmatpush1.msra.mxu0 0.0
    %2781 = vmatprep.subr.mxu0 0.0
    %2782 = vmatpush1.msra.mxu0 0.0
    %2783 = vmatprep.subr.mxu0 0.0
    %2784 = vmatpush1.msra.mxu0 0.0
    %2785 = vmatprep.mubr.f32.mxu0 0.0
    %2786 = vmatmul.mubr.f32.gmra.mrb[0].mxu0 %v2719
    %v2787 = vpop.f32.mrb[0].mxu0
    %v2788 = vadd.f32 0.0, %v2787
    %v2789 = vpop.f32.mrb[0].mxu0
    %2790 = vdwg.mxu0
    %v2791 = vmul.f32 %v2788, %v2788
    %v2792 = vsel %vm30, %v2791, 0.0
    %2793 = vadd.xlane.f32.xlu0 %v2792
    %v2794 = vpop.xlane.xlu0 %2793
    %v2795 = vadd.f32 %v2794, 0.001
    %v2796 = vrsqrt.pop %v2795
    %v2797 = vmul.f32 %v2788, %v2796
    %v2798 = vmax.f32 %v2797, 0.0
    %v2799 = vmul.f32 %v2798, 0.1
    %v2800 = vsub.f32 %v2630, %v2799
    %v2802 = vsel %vm30, %v2800, 0
    %2804 = vmatprep.subr.mxu0 0.0
    %2805 = vmatpush1.msra.mxu0 %v2278
    %2806 = vmatprep.subr.mxu0 0.0
    %2807 = vmatpush1.msra.mxu0 %v2279
    %2808 = vmatprep.subr.mxu0 0.0
    %2809 = vmatpush1.msra.mxu0 0.0
    %2810 = vmatprep.subr.mxu0 0.0
    %2811 = vmatpush1.msra.mxu0 0.0
    %2812 = vmatprep.subr.mxu0 0.0
    %2813 = vmatpush1.msra.mxu0 0.0
    %2814 = vmatprep.subr.mxu0 0.0
    %2815 = vmatpush1.msra.mxu0 0.0
    %2816 = vmatprep.subr.mxu0 0.0
    %2817 = vmatpush1.msra.mxu0 0.0
    %2818 = vmatprep.subr.mxu0 0.0
    %2819 = vmatpush1.msra.mxu0 0.0
    %2820 = vmatprep.subr.mxu0 0.0
    %2821 = vmatpush1.msra.mxu0 0.0
    %2822 = vmatprep.subr.mxu0 0.0
    %2823 = vmatpush1.msra.mxu0 0.0
    %2824 = vmatprep.subr.mxu0 0.0
    %2825 = vmatpush1.msra.mxu0 0.0
    %2826 = vmatprep.subr.mxu0 0.0
    %2827 = vmatpush1.msra.mxu0 0.0
    %2828 = vmatprep.subr.mxu0 0.0
    %2829 = vmatpush1.msra.mxu0 0.0
    %2830 = vmatprep.subr.mxu0 0.0
    %2831 = vmatpush1.msra.mxu0 0.0
    %2832 = vmatprep.subr.mxu0 0.0
    %2833 = vmatpush1.msra.mxu0 0.0
    %2834 = vmatprep.subr.mxu0 0.0
    %2835 = vmatpush1.msra.mxu0 0.0
    %2836 = vmatprep.subr.mxu0 0.0
    %2837 = vmatpush1.msra.mxu0 0.0
    %2838 = vmatprep.subr.mxu0 0.0
    %2839 = vmatpush1.msra.mxu0 0.0
    %2840 = vmatprep.subr.mxu0 0.0
    %2841 = vmatpush1.msra.mxu0 0.0
    %2842 = vmatprep.subr.mxu0 0.0
    %2843 = vmatpush1.msra.mxu0 0.0
    %2844 = vmatprep.subr.mxu0 0.0
    %2845 = vmatpush1.msra.mxu0 0.0
    %2846 = vmatprep.subr.mxu0 0.0
    %2847 = vmatpush1.msra.mxu0 0.0
    %2848 = vmatprep.subr.mxu0 0.0
    %2849 = vmatpush1.msra.mxu0 0.0
    %2850 = vmatprep.subr.mxu0 0.0
    %2851 = vmatpush1.msra.mxu0 0.0
    %2852 = vmatprep.subr.mxu0 0.0
    %2853 = vmatpush1.msra.mxu0 0.0
    %2854 = vmatprep.subr.mxu0 0.0
    %2855 = vmatpush1.msra.mxu0 0.0
    %2856 = vmatprep.subr.mxu0 0.0
    %2857 = vmatpush1.msra.mxu0 0.0
    %2858 = vmatprep.subr.mxu0 0.0
    %2859 = vmatpush1.msra.mxu0 0.0
    %2860 = vmatprep.subr.mxu0 0.0
    %2861 = vmatpush1.msra.mxu0 0.0
    %2862 = vmatprep.subr.mxu0 0.0
    %2863 = vmatpush1.msra.mxu0 0.0
    %2864 = vmatprep.subr.mxu0 0.0
    %2865 = vmatpush1.msra.mxu0 0.0
    %2866 = vmatprep.subr.mxu0 0.0
    %2867 = vmatpush1.msra.mxu0 0.0
    %2868 = vmatprep.mubr.f32.mxu0 0.0
    %2869 = vmatmul.mubr.f32.gmra.mrb[0].mxu0 %v2802
    %v2870 = vpop.f32.mrb[0].mxu0
    %v2871 = vadd.f32 0.0, %v2870
    %v2872 = vpop.f32.mrb[0].mxu0
    %2873 = vdwg.mxu0
    %v2874 = vmul.f32 %v2871, %v2871
    %v2875 = vsel %vm105, %v2874, 0.0
    %2876 = vadd.xlane.f32.xlu0 %v2875
    %v2877 = vpop.xlane.xlu0 %2876
    %v2878 = vadd.f32 %v2877, 0.001
    %v2879 = vrsqrt.pop %v2878
    %v2880 = vmul.f32 %v2871, %v2879
    %v2881 = vmax.f32 %v2880, 0.0
    %v2882 = vadd.f32 %v2881, %v2103
    %v2883 = vmul.f32 %v2882, 0.1
    %v2884 = vadd.f32 %v2717, %v2883
    %v2886 = vsel %vm105, %v2884, 0
    %2888 = vmatprep.subr.mxu0 0.0
    %2889 = vmatpush1.msra.mxu0 %v2368
    %2890 = vmatprep.subr.mxu0 0.0
    %2891 = vmatpush1.msra.mxu0 %v2369
    %2892 = vmatprep.subr.mxu0 0.0
    %2893 = vmatpush1.msra.mxu0 %v2370
    %2894 = vmatprep.subr.mxu0 0.0
    %2895 = vmatpush1.msra.mxu0 %v2371
    %2896 = vmatprep.subr.mxu0 0.0
    %2897 = vmatpush1.msra.mxu0 0.0
    %2898 = vmatprep.subr.mxu0 0.0
    %2899 = vmatpush1.msra.mxu0 0.0
    %2900 = vmatprep.subr.mxu0 0.0
    %2901 = vmatpush1.msra.mxu0 0.0
    %2902 = vmatprep.subr.mxu0 0.0
    %2903 = vmatpush1.msra.mxu0 0.0
    %2904 = vmatprep.subr.mxu0 0.0
    %2905 = vmatpush1.msra.mxu0 0.0
    %2906 = vmatprep.subr.mxu0 0.0
    %2907 = vmatpush1.msra.mxu0 0.0
    %2908 = vmatprep.subr.mxu0 0.0
    %2909 = vmatpush1.msra.mxu0 0.0
    %2910 = vmatprep.subr.mxu0 0.0
    %2911 = vmatpush1.msra.mxu0 0.0
    %2912 = vmatprep.subr.mxu0 0.0
    %2913 = vmatpush1.msra.mxu0 0.0
    %2914 = vmatprep.subr.mxu0 0.0
    %2915 = vmatpush1.msra.mxu0 0.0
    %2916 = vmatprep.subr.mxu0 0.0
    %2917 = vmatpush1.msra.mxu0 0.0
    %2918 = vmatprep.subr.mxu0 0.0
    %2919 = vmatpush1.msra.mxu0 0.0
    %2920 = vmatprep.subr.mxu0 0.0
    %2921 = vmatpush1.msra.mxu0 0.0
    %2922 = vmatprep.subr.mxu0 0.0
    %2923 = vmatpush1.msra.mxu0 0.0
    %2924 = vmatprep.subr.mxu0 0.0
    %2925 = vmatpush1.msra.mxu0 0.0
    %2926 = vmatprep.subr.mxu0 0.0
    %2927 = vmatpush1.msra.mxu0 0.0
    %2928 = vmatprep.subr.mxu0 0.0
    %2929 = vmatpush1.msra.mxu0 0.0
    %2930 = vmatprep.subr.mxu0 0.0
    %2931 = vmatpush1.msra.mxu0 0.0
    %2932 = vmatprep.subr.mxu0 0.0
    %2933 = vmatpush1.msra.mxu0 0.0
    %2934 = vmatprep.subr.mxu0 0.0
    %2935 = vmatpush1.msra.mxu0 0.0
    %2936 = vmatprep.subr.mxu0 0.0
    %2937 = vmatpush1.msra.mxu0 0.0
    %2938 = vmatprep.subr.mxu0 0.0
    %2939 = vmatpush1.msra.mxu0 0.0
    %2940 = vmatprep.subr.mxu0 0.0
    %2941 = vmatpush1.msra.mxu0 0.0
    %2942 = vmatprep.subr.mxu0 0.0
    %2943 = vmatpush1.msra.mxu0 0.0
    %2944 = vmatprep.subr.mxu0 0.0
    %2945 = vmatpush1.msra.mxu0 0.0
    %2946 = vmatprep.subr.mxu0 0.0
    %2947 = vmatpush1.msra.mxu0 0.0
    %2948 = vmatprep.subr.mxu0 0.0
    %2949 = vmatpush1.msra.mxu0 0.0
    %2950 = vmatprep.subr.mxu0 0.0
    %2951 = vmatpush1.msra.mxu0 0.0
    %2952 = vmatprep.mubr.f32.mxu0 0.0
    %2953 = vmatmul.mubr.f32.gmra.mrb[0].mxu0 %v2886
    %v2954 = vpop.f32.mrb[0].mxu0
    %v2955 = vadd.f32 0.0, %v2954
    %v2956 = vpop.f32.mrb[0].mxu0
    %2957 = vdwg.mxu0
    %v2958 = vmul.f32 %v2955, %v2955
    %v2959 = vsel %vm30, %v2958, 0.0
    %2960 = vadd.xlane.f32.xlu0 %v2959
    %v2961 = vpop.xlane.xlu0 %2960
    %v2962 = vadd.f32 %v2961, 0.001
    %v2963 = vrsqrt.pop %v2962
    %v2964 = vmul.f32 %v2955, %v2963
    %v2965 = vmax.f32 %v2964, 0.0
    %v2966 = vmul.f32 %v2965, 0.1
    %v2967 = vsub.f32 %v2800, %v2966
    %v2969 = vsel %vm30, %v2967, 0
    %2971 = vmatprep.subr.mxu0 0.0
    %2972 = vmatpush1.msra.mxu0 %v2455
    %2973 = vmatprep.subr.mxu0 0.0
    %2974 = vmatpush1.msra.mxu0 %v2456
    %2975 = vmatprep.subr.mxu0 0.0
    %2976 = vmatpush1.msra.mxu0 0.0
    %2977 = vmatprep.subr.mxu0 0.0
    %2978 = vmatpush1.msra.mxu0 0.0
    %2979 = vmatprep.subr.mxu0 0.0
    %2980 = vmatpush1.msra.mxu0 0.0
    %2981 = vmatprep.subr.mxu0 0.0
    %2982 = vmatpush1.msra.mxu0 0.0
    %2983 = vmatprep.subr.mxu0 0.0
    %2984 = vmatpush1.msra.mxu0 0.0
    %2985 = vmatprep.subr.mxu0 0.0
    %2986 = vmatpush1.msra.mxu0 0.0
    %2987 = vmatprep.subr.mxu0 0.0
    %2988 = vmatpush1.msra.mxu0 0.0
    %2989 = vmatprep.subr.mxu0 0.0
    %2990 = vmatpush1.msra.mxu0 0.0
    %2991 = vmatprep.subr.mxu0 0.0
    %2992 = vmatpush1.msra.mxu0 0.0
    %2993 = vmatprep.subr.mxu0 0.0
    %2994 = vmatpush1.msra.mxu0 0.0
    %2995 = vmatprep.subr.mxu0 0.0
    %2996 = vmatpush1.msra.mxu0 0.0
    %2997 = vmatprep.subr.mxu0 0.0
    %2998 = vmatpush1.msra.mxu0 0.0
    %2999 = vmatprep.subr.mxu0 0.0
    %3000 = vmatpush1.msra.mxu0 0.0
    %3001 = vmatprep.subr.mxu0 0.0
    %3002 = vmatpush1.msra.mxu0 0.0
    %3003 = vmatprep.subr.mxu0 0.0
    %3004 = vmatpush1.msra.mxu0 0.0
    %3005 = vmatprep.subr.mxu0 0.0
    %3006 = vmatpush1.msra.mxu0 0.0
    %3007 = vmatprep.subr.mxu0 0.0
    %3008 = vmatpush1.msra.mxu0 0.0
    %3009 = vmatprep.subr.mxu0 0.0
    %3010 = vmatpush1.msra.mxu0 0.0
    %3011 = vmatprep.subr.mxu0 0.0
    %3012 = vmatpush1.msra.mxu0 0.0
    %3013 = vmatprep.subr.mxu0 0.0
    %3014 = vmatpush1.msra.mxu0 0.0
    %3015 = vmatprep.subr.mxu0 0.0
    %3016 = vmatpush1.msra.mxu0 0.0
    %3017 = vmatprep.subr.mxu0 0.0
    %3018 = vmatpush1.msra.mxu0 0.0
    %3019 = vmatprep.subr.mxu0 0.0
    %3020 = vmatpush1.msra.mxu0 0.0
    %3021 = vmatprep.subr.mxu0 0.0
    %3022 = vmatpush1.msra.mxu0 0.0
    %3023 = vmatprep.subr.mxu0 0.0
    %3024 = vmatpush1.msra.mxu0 0.0
    %3025 = vmatprep.subr.mxu0 0.0
    %3026 = vmatpush1.msra.mxu0 0.0
    %3027 = vmatprep.subr.mxu0 0.0
    %3028 = vmatpush1.msra.mxu0 0.0
    %3029 = vmatprep.subr.mxu0 0.0
    %3030 = vmatpush1.msra.mxu0 0.0
    %3031 = vmatprep.subr.mxu0 0.0
    %3032 = vmatpush1.msra.mxu0 0.0
    %3033 = vmatprep.subr.mxu0 0.0
    %3034 = vmatpush1.msra.mxu0 0.0
    %3035 = vmatprep.mubr.f32.mxu0 0.0
    %3036 = vmatmul.mubr.f32.gmra.mrb[0].mxu0 %v2969
    %v3037 = vpop.f32.mrb[0].mxu0
    %v3038 = vadd.f32 0.0, %v3037
    %v3039 = vpop.f32.mrb[0].mxu0
    %3040 = vdwg.mxu0
    %v3041 = vmul.f32 %v3038, %v3038
    %v3042 = vsel %vm105, %v3041, 0.0
    %3043 = vadd.xlane.f32.xlu0 %v3042
    %v3044 = vpop.xlane.xlu0 %3043
    %v3045 = vadd.f32 %v3044, 0.001
    %v3046 = vrsqrt.pop %v3045
    %v3047 = vmul.f32 %v3038, %v3046
    %v3048 = vmax.f32 %v3047, 0.0
    %3050 = vrot.lane.b32.xlu0 %v2103, 96
    %v3051 = vpop.permute.xlu0 %3050
    %v3053 = vadd.f32 %v3048, %v3051
    %v3054 = vmul.f32 %v3053, 0.1
    %v3055 = vadd.f32 %v2884, %v3054
    %v3057 = vsel %vm105, %v3055, 0
    %3059 = vmatprep.subr.mxu0 0.0
    %3060 = vmatpush1.msra.mxu0 %v2544
    %3061 = vmatprep.subr.mxu0 0.0
    %3062 = vmatpush1.msra.mxu0 %v2545
    %3063 = vmatprep.subr.mxu0 0.0
    %3064 = vmatpush1.msra.mxu0 %v2546
    %3065 = vmatprep.subr.mxu0 0.0
    %3066 = vmatpush1.msra.mxu0 %v2547
    %3067 = vmatprep.subr.mxu0 0.0
    %3068 = vmatpush1.msra.mxu0 0.0
    %3069 = vmatprep.subr.mxu0 0.0
    %3070 = vmatpush1.msra.mxu0 0.0
    %3071 = vmatprep.subr.mxu0 0.0
    %3072 = vmatpush1.msra.mxu0 0.0
    %3073 = vmatprep.subr.mxu0 0.0
    %3074 = vmatpush1.msra.mxu0 0.0
    %3075 = vmatprep.subr.mxu0 0.0
    %3076 = vmatpush1.msra.mxu0 0.0
    %3077 = vmatprep.subr.mxu0 0.0
    %3078 = vmatpush1.msra.mxu0 0.0
    %3079 = vmatprep.subr.mxu0 0.0
    %3080 = vmatpush1.msra.mxu0 0.0
    %3081 = vmatprep.subr.mxu0 0.0
    %3082 = vmatpush1.msra.mxu0 0.0
    %3083 = vmatprep.subr.mxu0 0.0
    %3084 = vmatpush1.msra.mxu0 0.0
    %3085 = vmatprep.subr.mxu0 0.0
    %3086 = vmatpush1.msra.mxu0 0.0
    %3087 = vmatprep.subr.mxu0 0.0
    %3088 = vmatpush1.msra.mxu0 0.0
    %3089 = vmatprep.subr.mxu0 0.0
    %3090 = vmatpush1.msra.mxu0 0.0
    %3091 = vmatprep.subr.mxu0 0.0
    %3092 = vmatpush1.msra.mxu0 0.0
    %3093 = vmatprep.subr.mxu0 0.0
    %3094 = vmatpush1.msra.mxu0 0.0
    %3095 = vmatprep.subr.mxu0 0.0
    %3096 = vmatpush1.msra.mxu0 0.0
    %3097 = vmatprep.subr.mxu0 0.0
    %3098 = vmatpush1.msra.mxu0 0.0
    %3099 = vmatprep.subr.mxu0 0.0
    %3100 = vmatpush1.msra.mxu0 0.0
    %3101 = vmatprep.subr.mxu0 0.0
    %3102 = vmatpush1.msra.mxu0 0.0
    %3103 = vmatprep.subr.mxu0 0.0
    %3104 = vmatpush1.msra.mxu0 0.0
    %3105 = vmatprep.subr.mxu0 0.0
    %3106 = vmatpush1.msra.mxu0 0.0
    %3107 = vmatprep.subr.mxu0 0.0
    %3108 = vmatpush1.msra.mxu0 0.0
    %3109 = vmatprep.subr.mxu0 0.0
    %3110 = vmatpush1.msra.mxu0 0.0
    %3111 = vmatprep.subr.mxu0 0.0
    %3112 = vmatpush1.msra.mxu0 0.0
    %3113 = vmatprep.subr.mxu0 0.0
    %3114 = vmatpush1.msra.mxu0 0.0
    %3115 = vmatprep.subr.mxu0 0.0
    %3116 = vmatpush1.msra.mxu0 0.0
    %3117 = vmatprep.subr.mxu0 0.0
    %3118 = vmatpush1.msra.mxu0 0.0
    %3119 = vmatprep.subr.mxu0 0.0
    %3120 = vmatpush1.msra.mxu0 0.0
    %3121 = vmatprep.subr.mxu0 0.0
    %3122 = vmatpush1.msra.mxu0 0.0
    %3123 = vmatprep.mubr.f32.mxu0 0.0
    %3124 = vmatmul.mubr.f32.gmra.mrb[0].mxu0 %v3057
    %v3125 = vpop.f32.mrb[0].mxu0
    %v3126 = vadd.f32 0.0, %v3125
    %v3127 = vpop.f32.mrb[0].mxu0
    %3128 = vdwg.mxu0
    %v3129 = vmul.f32 %v3126, %v3126
    %v3130 = vsel %vm30, %v3129, 0.0
    %3131 = vadd.xlane.f32.xlu0 %v3130
    %v3132 = vpop.xlane.xlu0 %3131
    %v3133 = vadd.f32 %v3132, 0.001
    %v3134 = vrsqrt.pop %v3133
    %v3135 = vmul.f32 %v3126, %v3134
    %v3136 = vmax.f32 %v3135, 0.0
    %v3137 = vmul.f32 %v3136, 0.1
    %v3138 = vsub.f32 %v2967, %v3137
    %v3140 = vsel %vm30, %v3138, 0
    %3142 = vmatprep.subr.mxu0 0.0
    %3143 = vmatpush1.msra.mxu0 %v2105
    %3144 = vmatprep.subr.mxu0 0.0
    %3145 = vmatpush1.msra.mxu0 %v2106
    %3146 = vmatprep.subr.mxu0 0.0
    %3147 = vmatpush1.msra.mxu0 0.0
    %3148 = vmatprep.subr.mxu0 0.0
    %3149 = vmatpush1.msra.mxu0 0.0
    %3150 = vmatprep.subr.mxu0 0.0
    %3151 = vmatpush1.msra.mxu0 0.0
    %3152 = vmatprep.subr.mxu0 0.0
    %3153 = vmatpush1.msra.mxu0 0.0
    %3154 = vmatprep.subr.mxu0 0.0
    %3155 = vmatpush1.msra.mxu0 0.0
    %3156 = vmatprep.subr.mxu0 0.0
    %3157 = vmatpush1.msra.mxu0 0.0
    %3158 = vmatprep.subr.mxu0 0.0
    %3159 = vmatpush1.msra.mxu0 0.0
    %3160 = vmatprep.subr.mxu0 0.0
    %3161 = vmatpush1.msra.mxu0 0.0
    %3162 = vmatprep.subr.mxu0 0.0
    %3163 = vmatpush1.msra.mxu0 0.0
    %3164 = vmatprep.subr.mxu0 0.0
    %3165 = vmatpush1.msra.mxu0 0.0
    %3166 = vmatprep.subr.mxu0 0.0
    %3167 = vmatpush1.msra.mxu0 0.0
    %3168 = vmatprep.subr.mxu0 0.0
    %3169 = vmatpush1.msra.mxu0 0.0
    %3170 = vmatprep.subr.mxu0 0.0
    %3171 = vmatpush1.msra.mxu0 0.0
    %3172 = vmatprep.subr.mxu0 0.0
    %3173 = vmatpush1.msra.mxu0 0.0
    %3174 = vmatprep.subr.mxu0 0.0
    %3175 = vmatpush1.msra.mxu0 0.0
    %3176 = vmatprep.subr.mxu0 0.0
    %3177 = vmatpush1.msra.mxu0 0.0
    %3178 = vmatprep.subr.mxu0 0.0
    %3179 = vmatpush1.msra.mxu0 0.0
    %3180 = vmatprep.subr.mxu0 0.0
    %3181 = vmatpush1.msra.mxu0 0.0
    %3182 = vmatprep.subr.mxu0 0.0
    %3183 = vmatpush1.msra.mxu0 0.0
    %3184 = vmatprep.subr.mxu0 0.0
    %3185 = vmatpush1.msra.mxu0 0.0
    %3186 = vmatprep.subr.mxu0 0.0
    %3187 = vmatpush1.msra.mxu0 0.0
    %3188 = vmatprep.subr.mxu0 0.0
    %3189 = vmatpush1.msra.mxu0 0.0
    %3190 = vmatprep.subr.mxu0 0.0
    %3191 = vmatpush1.msra.mxu0 0.0
    %3192 = vmatprep.subr.mxu0 0.0
    %3193 = vmatpush1.msra.mxu0 0.0
    %3194 = vmatprep.subr.mxu0 0.0
    %3195 = vmatpush1.msra.mxu0 0.0
    %3196 = vmatprep.subr.mxu0 0.0
    %3197 = vmatpush1.msra.mxu0 0.0
    %3198 = vmatprep.subr.mxu0 0.0
    %3199 = vmatpush1.msra.mxu0 0.0
    %3200 = vmatprep.subr.mxu0 0.0
    %3201 = vmatpush1.msra.mxu0 0.0
    %3202 = vmatprep.subr.mxu0 0.0
    %3203 = vmatpush1.msra.mxu0 0.0
    %3204 = vmatprep.subr.mxu0 0.0
    %3205 = vmatpush1.msra.mxu0 0.0
    %3206 = vmatprep.mubr.f32.mxu0 0.0
    %3207 = vmatmul.mubr.f32.gmra.mrb[0].mxu0 %v3140
    %v3208 = vpop.f32.mrb[0].mxu0
    %v3209 = vadd.f32 0.0, %v3208
    %v3210 = vpop.f32.mrb[0].mxu0
    %3211 = vdwg.mxu0
    %v3212 = vmul.f32 %v3209, %v3209
    %v3213 = vsel %vm105, %v3212, 0.0
    %3214 = vadd.xlane.f32.xlu0 %v3213
    %v3215 = vpop.xlane.xlu0 %3214
    %v3216 = vadd.f32 %v3215, 0.001
    %v3217 = vrsqrt.pop %v3216
    %v3218 = vmul.f32 %v3209, %v3217
    %v3219 = vmax.f32 %v3218, 0.0
    %3220 = vrot.lane.b32.xlu0 %v2103, 64
    %v3221 = vpop.permute.xlu0 %3220
    %v3223 = vadd.f32 %v3219, %v3221
    %v3224 = vmul.f32 %v3223, 0.1
    %v3225 = vadd.f32 %v3055, %v3224
    %v3227 = vsel %vm105, %v3225, 0
    %3229 = vmatprep.subr.mxu0 0.0
    %3230 = vmatpush1.msra.mxu0 %v2191
    %3231 = vmatprep.subr.mxu0 0.0
    %3232 = vmatpush1.msra.mxu0 %v2192
    %3233 = vmatprep.subr.mxu0 0.0
    %3234 = vmatpush1.msra.mxu0 %v2193
    %3235 = vmatprep.subr.mxu0 0.0
    %3236 = vmatpush1.msra.mxu0 %v2194
    %3237 = vmatprep.subr.mxu0 0.0
    %3238 = vmatpush1.msra.mxu0 0.0
    %3239 = vmatprep.subr.mxu0 0.0
    %3240 = vmatpush1.msra.mxu0 0.0
    %3241 = vmatprep.subr.mxu0 0.0
    %3242 = vmatpush1.msra.mxu0 0.0
    %3243 = vmatprep.subr.mxu0 0.0
    %3244 = vmatpush1.msra.mxu0 0.0
    %3245 = vmatprep.subr.mxu0 0.0
    %3246 = vmatpush1.msra.mxu0 0.0
    %3247 = vmatprep.subr.mxu0 0.0
    %3248 = vmatpush1.msra.mxu0 0.0
    %3249 = vmatprep.subr.mxu0 0.0
    %3250 = vmatpush1.msra.mxu0 0.0
    %3251 = vmatprep.subr.mxu0 0.0
    %3252 = vmatpush1.msra.mxu0 0.0
    %3253 = vmatprep.subr.mxu0 0.0
    %3254 = vmatpush1.msra.mxu0 0.0
    %3255 = vmatprep.subr.mxu0 0.0
    %3256 = vmatpush1.msra.mxu0 0.0
    %3257 = vmatprep.subr.mxu0 0.0
    %3258 = vmatpush1.msra.mxu0 0.0
    %3259 = vmatprep.subr.mxu0 0.0
    %3260 = vmatpush1.msra.mxu0 0.0
    %3261 = vmatprep.subr.mxu0 0.0
    %3262 = vmatpush1.msra.mxu0 0.0
    %3263 = vmatprep.subr.mxu0 0.0
    %3264 = vmatpush1.msra.mxu0 0.0
    %3265 = vmatprep.subr.mxu0 0.0
    %3266 = vmatpush1.msra.mxu0 0.0
    %3267 = vmatprep.subr.mxu0 0.0
    %3268 = vmatpush1.msra.mxu0 0.0
    %3269 = vmatprep.subr.mxu0 0.0
    %3270 = vmatpush1.msra.mxu0 0.0
    %3271 = vmatprep.subr.mxu0 0.0
    %3272 = vmatpush1.msra.mxu0 0.0
    %3273 = vmatprep.subr.mxu0 0.0
    %3274 = vmatpush1.msra.mxu0 0.0
    %3275 = vmatprep.subr.mxu0 0.0
    %3276 = vmatpush1.msra.mxu0 0.0
    %3277 = vmatprep.subr.mxu0 0.0
    %3278 = vmatpush1.msra.mxu0 0.0
    %3279 = vmatprep.subr.mxu0 0.0
    %3280 = vmatpush1.msra.mxu0 0.0
    %3281 = vmatprep.subr.mxu0 0.0
    %3282 = vmatpush1.msra.mxu0 0.0
    %3283 = vmatprep.subr.mxu0 0.0
    %3284 = vmatpush1.msra.mxu0 0.0
    %3285 = vmatprep.subr.mxu0 0.0
    %3286 = vmatpush1.msra.mxu0 0.0
    %3287 = vmatprep.subr.mxu0 0.0
    %3288 = vmatpush1.msra.mxu0 0.0
    %3289 = vmatprep.subr.mxu0 0.0
    %3290 = vmatpush1.msra.mxu0 0.0
    %3291 = vmatprep.subr.mxu0 0.0
    %3292 = vmatpush1.msra.mxu0 0.0
    %3293 = vmatprep.mubr.f32.mxu0 0.0
    %3294 = vmatmul.mubr.f32.gmra.mrb[0].mxu0 %v3227
    %v3295 = vpop.f32.mrb[0].mxu0
    %v3296 = vadd.f32 0.0, %v3295
    %v3297 = vpop.f32.mrb[0].mxu0
    %3298 = vdwg.mxu0
    %v3299 = vmul.f32 %v3296, %v3296
    %v3300 = vsel %vm30, %v3299, 0.0
    %3301 = vadd.xlane.f32.xlu0 %v3300
    %v3302 = vpop.xlane.xlu0 %3301
    %v3303 = vadd.f32 %v3302, 0.001
    %v3304 = vrsqrt.pop %v3303
    %v3305 = vmul.f32 %v3296, %v3304
    %v3306 = vmax.f32 %v3305, 0.0
    %v3307 = vmul.f32 %v3306, 0.1
    %v3308 = vsub.f32 %v3138, %v3307
    %v3310 = vsel %vm30, %v3308, 0
    %3312 = vmatprep.subr.mxu0 0.0
    %3313 = vmatpush1.msra.mxu0 %v2278
    %3314 = vmatprep.subr.mxu0 0.0
    %3315 = vmatpush1.msra.mxu0 %v2279
    %3316 = vmatprep.subr.mxu0 0.0
    %3317 = vmatpush1.msra.mxu0 0.0
    %3318 = vmatprep.subr.mxu0 0.0
    %3319 = vmatpush1.msra.mxu0 0.0
    %3320 = vmatprep.subr.mxu0 0.0
    %3321 = vmatpush1.msra.mxu0 0.0
    %3322 = vmatprep.subr.mxu0 0.0
    %3323 = vmatpush1.msra.mxu0 0.0
    %3324 = vmatprep.subr.mxu0 0.0
    %3325 = vmatpush1.msra.mxu0 0.0
    %3326 = vmatprep.subr.mxu0 0.0
    %3327 = vmatpush1.msra.mxu0 0.0
    %3328 = vmatprep.subr.mxu0 0.0
    %3329 = vmatpush1.msra.mxu0 0.0
    %3330 = vmatprep.subr.mxu0 0.0
    %3331 = vmatpush1.msra.mxu0 0.0
    %3332 = vmatprep.subr.mxu0 0.0
    %3333 = vmatpush1.msra.mxu0 0.0
    %3334 = vmatprep.subr.mxu0 0.0
    %3335 = vmatpush1.msra.mxu0 0.0
    %3336 = vmatprep.subr.mxu0 0.0
    %3337 = vmatpush1.msra.mxu0 0.0
    %3338 = vmatprep.subr.mxu0 0.0
    %3339 = vmatpush1.msra.mxu0 0.0
    %3340 = vmatprep.subr.mxu0 0.0
    %3341 = vmatpush1.msra.mxu0 0.0
    %3342 = vmatprep.subr.mxu0 0.0
    %3343 = vmatpush1.msra.mxu0 0.0
    %3344 = vmatprep.subr.mxu0 0.0
    %3345 = vmatpush1.msra.mxu0 0.0
    %3346 = vmatprep.subr.mxu0 0.0
    %3347 = vmatpush1.msra.mxu0 0.0
    %3348 = vmatprep.subr.mxu0 0.0
    %3349 = vmatpush1.msra.mxu0 0.0
    %3350 = vmatprep.subr.mxu0 0.0
    %3351 = vmatpush1.msra.mxu0 0.0
    %3352 = vmatprep.subr.mxu0 0.0
    %3353 = vmatpush1.msra.mxu0 0.0
    %3354 = vmatprep.subr.mxu0 0.0
    %3355 = vmatpush1.msra.mxu0 0.0
    %3356 = vmatprep.subr.mxu0 0.0
    %3357 = vmatpush1.msra.mxu0 0.0
    %3358 = vmatprep.subr.mxu0 0.0
    %3359 = vmatpush1.msra.mxu0 0.0
    %3360 = vmatprep.subr.mxu0 0.0
    %3361 = vmatpush1.msra.mxu0 0.0
    %3362 = vmatprep.subr.mxu0 0.0
    %3363 = vmatpush1.msra.mxu0 0.0
    %3364 = vmatprep.subr.mxu0 0.0
    %3365 = vmatpush1.msra.mxu0 0.0
    %3366 = vmatprep.subr.mxu0 0.0
    %3367 = vmatpush1.msra.mxu0 0.0
    %3368 = vmatprep.subr.mxu0 0.0
    %3369 = vmatpush1.msra.mxu0 0.0
    %3370 = vmatprep.subr.mxu0 0.0
    %3371 = vmatpush1.msra.mxu0 0.0
    %3372 = vmatprep.subr.mxu0 0.0
    %3373 = vmatpush1.msra.mxu0 0.0
    %3374 = vmatprep.subr.mxu0 0.0
    %3375 = vmatpush1.msra.mxu0 0.0
    %3376 = vmatprep.mubr.f32.mxu0 0.0
    %3377 = vmatmul.mubr.f32.gmra.mrb[0].mxu0 %v3310
    %v3378 = vpop.f32.mrb[0].mxu0
    %v3379 = vadd.f32 0.0, %v3378
    %v3380 = vpop.f32.mrb[0].mxu0
    %3381 = vdwg.mxu0
    %v3382 = vmul.f32 %v3379, %v3379
    %v3383 = vsel %vm105, %v3382, 0.0
    %3384 = vadd.xlane.f32.xlu0 %v3383
    %v3385 = vpop.xlane.xlu0 %3384
    %v3386 = vadd.f32 %v3385, 0.001
    %v3387 = vrsqrt.pop %v3386
    %v3388 = vmul.f32 %v3379, %v3387
    %v3389 = vmax.f32 %v3388, 0.0
    %3390 = vrot.lane.b32.xlu0 %v2103, 32
    %v3391 = vpop.permute.xlu0 %3390
    %v3393 = vadd.f32 %v3389, %v3391
    %v3394 = vmul.f32 %v3393, 0.1
    %v3395 = vadd.f32 %v3225, %v3394
    %v3397 = vsel %vm105, %v3395, 0
    %3399 = vmatprep.subr.mxu0 0.0
    %3400 = vmatpush1.msra.mxu0 %v2368
    %3401 = vmatprep.subr.mxu0 0.0
    %3402 = vmatpush1.msra.mxu0 %v2369
    %3403 = vmatprep.subr.mxu0 0.0
    %3404 = vmatpush1.msra.mxu0 %v2370
    %3405 = vmatprep.subr.mxu0 0.0
    %3406 = vmatpush1.msra.mxu0 %v2371
    %3407 = vmatprep.subr.mxu0 0.0
    %3408 = vmatpush1.msra.mxu0 0.0
    %3409 = vmatprep.subr.mxu0 0.0
    %3410 = vmatpush1.msra.mxu0 0.0
    %3411 = vmatprep.subr.mxu0 0.0
    %3412 = vmatpush1.msra.mxu0 0.0
    %3413 = vmatprep.subr.mxu0 0.0
    %3414 = vmatpush1.msra.mxu0 0.0
    %3415 = vmatprep.subr.mxu0 0.0
    %3416 = vmatpush1.msra.mxu0 0.0
    %3417 = vmatprep.subr.mxu0 0.0
    %3418 = vmatpush1.msra.mxu0 0.0
    %3419 = vmatprep.subr.mxu0 0.0
    %3420 = vmatpush1.msra.mxu0 0.0
    %3421 = vmatprep.subr.mxu0 0.0
    %3422 = vmatpush1.msra.mxu0 0.0
    %3423 = vmatprep.subr.mxu0 0.0
    %3424 = vmatpush1.msra.mxu0 0.0
    %3425 = vmatprep.subr.mxu0 0.0
    %3426 = vmatpush1.msra.mxu0 0.0
    %3427 = vmatprep.subr.mxu0 0.0
    %3428 = vmatpush1.msra.mxu0 0.0
    %3429 = vmatprep.subr.mxu0 0.0
    %3430 = vmatpush1.msra.mxu0 0.0
    %3431 = vmatprep.subr.mxu0 0.0
    %3432 = vmatpush1.msra.mxu0 0.0
    %3433 = vmatprep.subr.mxu0 0.0
    %3434 = vmatpush1.msra.mxu0 0.0
    %3435 = vmatprep.subr.mxu0 0.0
    %3436 = vmatpush1.msra.mxu0 0.0
    %3437 = vmatprep.subr.mxu0 0.0
    %3438 = vmatpush1.msra.mxu0 0.0
    %3439 = vmatprep.subr.mxu0 0.0
    %3440 = vmatpush1.msra.mxu0 0.0
    %3441 = vmatprep.subr.mxu0 0.0
    %3442 = vmatpush1.msra.mxu0 0.0
    %3443 = vmatprep.subr.mxu0 0.0
    %3444 = vmatpush1.msra.mxu0 0.0
    %3445 = vmatprep.subr.mxu0 0.0
    %3446 = vmatpush1.msra.mxu0 0.0
    %3447 = vmatprep.subr.mxu0 0.0
    %3448 = vmatpush1.msra.mxu0 0.0
    %3449 = vmatprep.subr.mxu0 0.0
    %3450 = vmatpush1.msra.mxu0 0.0
    %3451 = vmatprep.subr.mxu0 0.0
    %3452 = vmatpush1.msra.mxu0 0.0
    %3453 = vmatprep.subr.mxu0 0.0
    %3454 = vmatpush1.msra.mxu0 0.0
    %3455 = vmatprep.subr.mxu0 0.0
    %3456 = vmatpush1.msra.mxu0 0.0
    %3457 = vmatprep.subr.mxu0 0.0
    %3458 = vmatpush1.msra.mxu0 0.0
    %3459 = vmatprep.subr.mxu0 0.0
    %3460 = vmatpush1.msra.mxu0 0.0
    %3461 = vmatprep.subr.mxu0 0.0
    %3462 = vmatpush1.msra.mxu0 0.0
    %3463 = vmatprep.mubr.f32.mxu0 0.0
    %3464 = vmatmul.mubr.f32.gmra.mrb[0].mxu0 %v3397
    %v3465 = vpop.f32.mrb[0].mxu0
    %v3466 = vadd.f32 0.0, %v3465
    %v3467 = vpop.f32.mrb[0].mxu0
    %3468 = vdwg.mxu0
    %v3469 = vmul.f32 %v3466, %v3466
    %v3470 = vsel %vm30, %v3469, 0.0
    %3471 = vadd.xlane.f32.xlu0 %v3470
    %v3472 = vpop.xlane.xlu0 %3471
    %v3473 = vadd.f32 %v3472, 0.001
    %v3474 = vrsqrt.pop %v3473
    %v3475 = vmul.f32 %v3466, %v3474
    %v3476 = vmax.f32 %v3475, 0.0
    %v3477 = vmul.f32 %v3476, 0.1
    %v3478 = vsub.f32 %v3308, %v3477
    %v3480 = vsel %vm30, %v3478, 0
    %3482 = vmatprep.subr.mxu0 0.0
    %3483 = vmatpush1.msra.mxu0 %v2455
    %3484 = vmatprep.subr.mxu0 0.0
    %3485 = vmatpush1.msra.mxu0 %v2456
    %3486 = vmatprep.subr.mxu0 0.0
    %3487 = vmatpush1.msra.mxu0 0.0
    %3488 = vmatprep.subr.mxu0 0.0
    %3489 = vmatpush1.msra.mxu0 0.0
    %3490 = vmatprep.subr.mxu0 0.0
    %3491 = vmatpush1.msra.mxu0 0.0
    %3492 = vmatprep.subr.mxu0 0.0
    %3493 = vmatpush1.msra.mxu0 0.0
    %3494 = vmatprep.subr.mxu0 0.0
    %3495 = vmatpush1.msra.mxu0 0.0
    %3496 = vmatprep.subr.mxu0 0.0
    %3497 = vmatpush1.msra.mxu0 0.0
    %3498 = vmatprep.subr.mxu0 0.0
    %3499 = vmatpush1.msra.mxu0 0.0
    %3500 = vmatprep.subr.mxu0 0.0
    %3501 = vmatpush1.msra.mxu0 0.0
    %3502 = vmatprep.subr.mxu0 0.0
    %3503 = vmatpush1.msra.mxu0 0.0
    %3504 = vmatprep.subr.mxu0 0.0
    %3505 = vmatpush1.msra.mxu0 0.0
    %3506 = vmatprep.subr.mxu0 0.0
    %3507 = vmatpush1.msra.mxu0 0.0
    %3508 = vmatprep.subr.mxu0 0.0
    %3509 = vmatpush1.msra.mxu0 0.0
    %3510 = vmatprep.subr.mxu0 0.0
    %3511 = vmatpush1.msra.mxu0 0.0
    %3512 = vmatprep.subr.mxu0 0.0
    %3513 = vmatpush1.msra.mxu0 0.0
    %3514 = vmatprep.subr.mxu0 0.0
    %3515 = vmatpush1.msra.mxu0 0.0
    %3516 = vmatprep.subr.mxu0 0.0
    %3517 = vmatpush1.msra.mxu0 0.0
    %3518 = vmatprep.subr.mxu0 0.0
    %3519 = vmatpush1.msra.mxu0 0.0
    %3520 = vmatprep.subr.mxu0 0.0
    %3521 = vmatpush1.msra.mxu0 0.0
    %3522 = vmatprep.subr.mxu0 0.0
    %3523 = vmatpush1.msra.mxu0 0.0
    %3524 = vmatprep.subr.mxu0 0.0
    %3525 = vmatpush1.msra.mxu0 0.0
    %3526 = vmatprep.subr.mxu0 0.0
    %3527 = vmatpush1.msra.mxu0 0.0
    %3528 = vmatprep.subr.mxu0 0.0
    %3529 = vmatpush1.msra.mxu0 0.0
    %3530 = vmatprep.subr.mxu0 0.0
    %3531 = vmatpush1.msra.mxu0 0.0
    %3532 = vmatprep.subr.mxu0 0.0
    %3533 = vmatpush1.msra.mxu0 0.0
    %3534 = vmatprep.subr.mxu0 0.0
    %3535 = vmatpush1.msra.mxu0 0.0
    %3536 = vmatprep.subr.mxu0 0.0
    %3537 = vmatpush1.msra.mxu0 0.0
    %3538 = vmatprep.subr.mxu0 0.0
    %3539 = vmatpush1.msra.mxu0 0.0
    %3540 = vmatprep.subr.mxu0 0.0
    %3541 = vmatpush1.msra.mxu0 0.0
    %3542 = vmatprep.subr.mxu0 0.0
    %3543 = vmatpush1.msra.mxu0 0.0
    %3544 = vmatprep.subr.mxu0 0.0
    %3545 = vmatpush1.msra.mxu0 0.0
    %3546 = vmatprep.mubr.f32.mxu0 0.0
    %3547 = vmatmul.mubr.f32.gmra.mrb[0].mxu0 %v3480
    %v3548 = vpop.f32.mrb[0].mxu0
    %v3549 = vadd.f32 0.0, %v3548
    %v3550 = vpop.f32.mrb[0].mxu0
    %3551 = vdwg.mxu0
    %v3552 = vmul.f32 %v3549, %v3549
    %v3553 = vsel %vm105, %v3552, 0.0
    %3554 = vadd.xlane.f32.xlu0 %v3553
    %v3555 = vpop.xlane.xlu0 %3554
    %v3556 = vadd.f32 %v3555, 0.001
    %v3557 = vrsqrt.pop %v3556
    %v3558 = vmul.f32 %v3549, %v3557
    %v3559 = vmax.f32 %v3558, 0.0
    %v3560 = vadd.f32 %v3559, %v2104
    %v3561 = vmul.f32 %v3560, 0.1
    %v3562 = vadd.f32 %v3395, %v3561
    %v3564 = vsel %vm105, %v3562, 0
    %3566 = vmatprep.subr.mxu0 0.0
    %3567 = vmatpush1.msra.mxu0 %v2544
    %3568 = vmatprep.subr.mxu0 0.0
    %3569 = vmatpush1.msra.mxu0 %v2545
    %3570 = vmatprep.subr.mxu0 0.0
    %3571 = vmatpush1.msra.mxu0 %v2546
    %3572 = vmatprep.subr.mxu0 0.0
    %3573 = vmatpush1.msra.mxu0 %v2547
    %3574 = vmatprep.subr.mxu0 0.0
    %3575 = vmatpush1.msra.mxu0 0.0
    %3576 = vmatprep.subr.mxu0 0.0
    %3577 = vmatpush1.msra.mxu0 0.0
    %3578 = vmatprep.subr.mxu0 0.0
    %3579 = vmatpush1.msra.mxu0 0.0
    %3580 = vmatprep.subr.mxu0 0.0
    %3581 = vmatpush1.msra.mxu0 0.0
    %3582 = vmatprep.subr.mxu0 0.0
    %3583 = vmatpush1.msra.mxu0 0.0
    %3584 = vmatprep.subr.mxu0 0.0
    %3585 = vmatpush1.msra.mxu0 0.0
    %3586 = vmatprep.subr.mxu0 0.0
    %3587 = vmatpush1.msra.mxu0 0.0
    %3588 = vmatprep.subr.mxu0 0.0
    %3589 = vmatpush1.msra.mxu0 0.0
    %3590 = vmatprep.subr.mxu0 0.0
    %3591 = vmatpush1.msra.mxu0 0.0
    %3592 = vmatprep.subr.mxu0 0.0
    %3593 = vmatpush1.msra.mxu0 0.0
    %3594 = vmatprep.subr.mxu0 0.0
    %3595 = vmatpush1.msra.mxu0 0.0
    %3596 = vmatprep.subr.mxu0 0.0
    %3597 = vmatpush1.msra.mxu0 0.0
    %3598 = vmatprep.subr.mxu0 0.0
    %3599 = vmatpush1.msra.mxu0 0.0
    %3600 = vmatprep.subr.mxu0 0.0
    %3601 = vmatpush1.msra.mxu0 0.0
    %3602 = vmatprep.subr.mxu0 0.0
    %3603 = vmatpush1.msra.mxu0 0.0
    %3604 = vmatprep.subr.mxu0 0.0
    %3605 = vmatpush1.msra.mxu0 0.0
    %3606 = vmatprep.subr.mxu0 0.0
    %3607 = vmatpush1.msra.mxu0 0.0
    %3608 = vmatprep.subr.mxu0 0.0
    %3609 = vmatpush1.msra.mxu0 0.0
    %3610 = vmatprep.subr.mxu0 0.0
    %3611 = vmatpush1.msra.mxu0 0.0
    %3612 = vmatprep.subr.mxu0 0.0
    %3613 = vmatpush1.msra.mxu0 0.0
    %3614 = vmatprep.subr.mxu0 0.0
    %3615 = vmatpush1.msra.mxu0 0.0
    %3616 = vmatprep.subr.mxu0 0.0
    %3617 = vmatpush1.msra.mxu0 0.0
    %3618 = vmatprep.subr.mxu0 0.0
    %3619 = vmatpush1.msra.mxu0 0.0
    %3620 = vmatprep.subr.mxu0 0.0
    %3621 = vmatpush1.msra.mxu0 0.0
    %3622 = vmatprep.subr.mxu0 0.0
    %3623 = vmatpush1.msra.mxu0 0.0
    %3624 = vmatprep.subr.mxu0 0.0
    %3625 = vmatpush1.msra.mxu0 0.0
    %3626 = vmatprep.subr.mxu0 0.0
    %3627 = vmatpush1.msra.mxu0 0.0
    %3628 = vmatprep.subr.mxu0 0.0
    %3629 = vmatpush1.msra.mxu0 0.0
    %3630 = vmatprep.mubr.f32.mxu0 0.0
    %3631 = vmatmul.mubr.f32.gmra.mrb[0].mxu0 %v3564
    %v3632 = vpop.f32.mrb[0].mxu0
    %v3633 = vadd.f32 0.0, %v3632
    %v3634 = vpop.f32.mrb[0].mxu0
    %3635 = vdwg.mxu0
    %v3636 = vmul.f32 %v3633, %v3633
    %v3637 = vsel %vm30, %v3636, 0.0
    %3638 = vadd.xlane.f32.xlu0 %v3637
    %v3639 = vpop.xlane.xlu0 %3638
    %v3640 = vadd.f32 %v3639, 0.001
    %v3641 = vrsqrt.pop %v3640
    %v3642 = vmul.f32 %v3633, %v3641
    %v3643 = vmax.f32 %v3642, 0.0
    %v3644 = vmul.f32 %v3643, 0.1
    %v3645 = vsub.f32 %v3478, %v3644
    %v3647 = vsel %vm30, %v3645, 0
    %3649 = vmatprep.subr.mxu0 0.0
    %3650 = vmatpush1.msra.mxu0 %v2105
    %3651 = vmatprep.subr.mxu0 0.0
    %3652 = vmatpush1.msra.mxu0 %v2106
    %3653 = vmatprep.subr.mxu0 0.0
    %3654 = vmatpush1.msra.mxu0 0.0
    %3655 = vmatprep.subr.mxu0 0.0
    %3656 = vmatpush1.msra.mxu0 0.0
    %3657 = vmatprep.subr.mxu0 0.0
    %3658 = vmatpush1.msra.mxu0 0.0
    %3659 = vmatprep.subr.mxu0 0.0
    %3660 = vmatpush1.msra.mxu0 0.0
    %3661 = vmatprep.subr.mxu0 0.0
    %3662 = vmatpush1.msra.mxu0 0.0
    %3663 = vmatprep.subr.mxu0 0.0
    %3664 = vmatpush1.msra.mxu0 0.0
    %3665 = vmatprep.subr.mxu0 0.0
    %3666 = vmatpush1.msra.mxu0 0.0
    %3667 = vmatprep.subr.mxu0 0.0
    %3668 = vmatpush1.msra.mxu0 0.0
    %3669 = vmatprep.subr.mxu0 0.0
    %3670 = vmatpush1.msra.mxu0 0.0
    %3671 = vmatprep.subr.mxu0 0.0
    %3672 = vmatpush1.msra.mxu0 0.0
    %3673 = vmatprep.subr.mxu0 0.0
    %3674 = vmatpush1.msra.mxu0 0.0
    %3675 = vmatprep.subr.mxu0 0.0
    %3676 = vmatpush1.msra.mxu0 0.0
    %3677 = vmatprep.subr.mxu0 0.0
    %3678 = vmatpush1.msra.mxu0 0.0
    %3679 = vmatprep.subr.mxu0 0.0
    %3680 = vmatpush1.msra.mxu0 0.0
    %3681 = vmatprep.subr.mxu0 0.0
    %3682 = vmatpush1.msra.mxu0 0.0
    %3683 = vmatprep.subr.mxu0 0.0
    %3684 = vmatpush1.msra.mxu0 0.0
    %3685 = vmatprep.subr.mxu0 0.0
    %3686 = vmatpush1.msra.mxu0 0.0
    %3687 = vmatprep.subr.mxu0 0.0
    %3688 = vmatpush1.msra.mxu0 0.0
    %3689 = vmatprep.subr.mxu0 0.0
    %3690 = vmatpush1.msra.mxu0 0.0
    %3691 = vmatprep.subr.mxu0 0.0
    %3692 = vmatpush1.msra.mxu0 0.0
    %3693 = vmatprep.subr.mxu0 0.0
    %3694 = vmatpush1.msra.mxu0 0.0
    %3695 = vmatprep.subr.mxu0 0.0
    %3696 = vmatpush1.msra.mxu0 0.0
    %3697 = vmatprep.subr.mxu0 0.0
    %3698 = vmatpush1.msra.mxu0 0.0
    %3699 = vmatprep.subr.mxu0 0.0
    %3700 = vmatpush1.msra.mxu0 0.0
    %3701 = vmatprep.subr.mxu0 0.0
    %3702 = vmatpush1.msra.mxu0 0.0
    %3703 = vmatprep.subr.mxu0 0.0
    %3704 = vmatpush1.msra.mxu0 0.0
    %3705 = vmatprep.subr.mxu0 0.0
    %3706 = vmatpush1.msra.mxu0 0.0
    %3707 = vmatprep.subr.mxu0 0.0
    %3708 = vmatpush1.msra.mxu0 0.0
    %3709 = vmatprep.subr.mxu0 0.0
    %3710 = vmatpush1.msra.mxu0 0.0
    %3711 = vmatprep.subr.mxu0 0.0
    %3712 = vmatpush1.msra.mxu0 0.0
    %3713 = vmatprep.mubr.f32.mxu0 0.0
    %3714 = vmatmul.mubr.f32.gmra.mrb[0].mxu0 %v3647
    %v3715 = vpop.f32.mrb[0].mxu0
    %v3716 = vadd.f32 0.0, %v3715
    %v3717 = vpop.f32.mrb[0].mxu0
    %3718 = vdwg.mxu0
    %v3719 = vmul.f32 %v3716, %v3716
    %v3720 = vsel %vm105, %v3719, 0.0
    %3721 = vadd.xlane.f32.xlu0 %v3720
    %v3722 = vpop.xlane.xlu0 %3721
    %v3723 = vadd.f32 %v3722, 0.001
    %v3724 = vrsqrt.pop %v3723
    %v3725 = vmul.f32 %v3716, %v3724
    %v3726 = vmax.f32 %v3725, 0.0
    %3728 = vrot.lane.b32.xlu0 %v2104, 96
    %v3729 = vpop.permute.xlu0 %3728
    %v3731 = vadd.f32 %v3726, %v3729
    %v3732 = vmul.f32 %v3731, 0.1
    %v3733 = vadd.f32 %v3562, %v3732
    %v3735 = vsel %vm105, %v3733, 0
    %3737 = vmatprep.subr.mxu0 0.0
    %3738 = vmatpush1.msra.mxu0 %v2191
    %3739 = vmatprep.subr.mxu0 0.0
    %3740 = vmatpush1.msra.mxu0 %v2192
    %3741 = vmatprep.subr.mxu0 0.0
    %3742 = vmatpush1.msra.mxu0 %v2193
    %3743 = vmatprep.subr.mxu0 0.0
    %3744 = vmatpush1.msra.mxu0 %v2194
    %3745 = vmatprep.subr.mxu0 0.0
    %3746 = vmatpush1.msra.mxu0 0.0
    %3747 = vmatprep.subr.mxu0 0.0
    %3748 = vmatpush1.msra.mxu0 0.0
    %3749 = vmatprep.subr.mxu0 0.0
    %3750 = vmatpush1.msra.mxu0 0.0
    %3751 = vmatprep.subr.mxu0 0.0
    %3752 = vmatpush1.msra.mxu0 0.0
    %3753 = vmatprep.subr.mxu0 0.0
    %3754 = vmatpush1.msra.mxu0 0.0
    %3755 = vmatprep.subr.mxu0 0.0
    %3756 = vmatpush1.msra.mxu0 0.0
    %3757 = vmatprep.subr.mxu0 0.0
    %3758 = vmatpush1.msra.mxu0 0.0
    %3759 = vmatprep.subr.mxu0 0.0
    %3760 = vmatpush1.msra.mxu0 0.0
    %3761 = vmatprep.subr.mxu0 0.0
    %3762 = vmatpush1.msra.mxu0 0.0
    %3763 = vmatprep.subr.mxu0 0.0
    %3764 = vmatpush1.msra.mxu0 0.0
    %3765 = vmatprep.subr.mxu0 0.0
    %3766 = vmatpush1.msra.mxu0 0.0
    %3767 = vmatprep.subr.mxu0 0.0
    %3768 = vmatpush1.msra.mxu0 0.0
    %3769 = vmatprep.subr.mxu0 0.0
    %3770 = vmatpush1.msra.mxu0 0.0
    %3771 = vmatprep.subr.mxu0 0.0
    %3772 = vmatpush1.msra.mxu0 0.0
    %3773 = vmatprep.subr.mxu0 0.0
    %3774 = vmatpush1.msra.mxu0 0.0
    %3775 = vmatprep.subr.mxu0 0.0
    %3776 = vmatpush1.msra.mxu0 0.0
    %3777 = vmatprep.subr.mxu0 0.0
    %3778 = vmatpush1.msra.mxu0 0.0
    %3779 = vmatprep.subr.mxu0 0.0
    %3780 = vmatpush1.msra.mxu0 0.0
    %3781 = vmatprep.subr.mxu0 0.0
    %3782 = vmatpush1.msra.mxu0 0.0
    %3783 = vmatprep.subr.mxu0 0.0
    %3784 = vmatpush1.msra.mxu0 0.0
    %3785 = vmatprep.subr.mxu0 0.0
    %3786 = vmatpush1.msra.mxu0 0.0
    %3787 = vmatprep.subr.mxu0 0.0
    %3788 = vmatpush1.msra.mxu0 0.0
    %3789 = vmatprep.subr.mxu0 0.0
    %3790 = vmatpush1.msra.mxu0 0.0
    %3791 = vmatprep.subr.mxu0 0.0
    %3792 = vmatpush1.msra.mxu0 0.0
    %3793 = vmatprep.subr.mxu0 0.0
    %3794 = vmatpush1.msra.mxu0 0.0
    %3795 = vmatprep.subr.mxu0 0.0
    %3796 = vmatpush1.msra.mxu0 0.0
    %3797 = vmatprep.subr.mxu0 0.0
    %3798 = vmatpush1.msra.mxu0 0.0
    %3799 = vmatprep.subr.mxu0 0.0
    %3800 = vmatpush1.msra.mxu0 0.0
    %3801 = vmatprep.mubr.f32.mxu0 0.0
    %3802 = vmatmul.mubr.f32.gmra.mrb[0].mxu0 %v3735
    %v3803 = vpop.f32.mrb[0].mxu0
    %v3804 = vadd.f32 0.0, %v3803
    %v3805 = vpop.f32.mrb[0].mxu0
    %3806 = vdwg.mxu0
    %v3807 = vmul.f32 %v3804, %v3804
    %v3808 = vsel %vm30, %v3807, 0.0
    %3809 = vadd.xlane.f32.xlu0 %v3808
    %v3810 = vpop.xlane.xlu0 %3809
    %v3811 = vadd.f32 %v3810, 0.001
    %v3812 = vrsqrt.pop %v3811
    %v3813 = vmul.f32 %v3804, %v3812
    %v3814 = vmax.f32 %v3813, 0.0
    %v3815 = vmul.f32 %v3814, 0.1
    %v3816 = vsub.f32 %v3645, %v3815
    %v3818 = vsel %vm30, %v3816, 0
    %3820 = vmatprep.subr.mxu0 0.0
    %3821 = vmatpush1.msra.mxu0 %v2278
    %3822 = vmatprep.subr.mxu0 0.0
    %3823 = vmatpush1.msra.mxu0 %v2279
    %3824 = vmatprep.subr.mxu0 0.0
    %3825 = vmatpush1.msra.mxu0 0.0
    %3826 = vmatprep.subr.mxu0 0.0
    %3827 = vmatpush1.msra.mxu0 0.0
    %3828 = vmatprep.subr.mxu0 0.0
    %3829 = vmatpush1.msra.mxu0 0.0
    %3830 = vmatprep.subr.mxu0 0.0
    %3831 = vmatpush1.msra.mxu0 0.0
    %3832 = vmatprep.subr.mxu0 0.0
    %3833 = vmatpush1.msra.mxu0 0.0
    %3834 = vmatprep.subr.mxu0 0.0
    %3835 = vmatpush1.msra.mxu0 0.0
    %3836 = vmatprep.subr.mxu0 0.0
    %3837 = vmatpush1.msra.mxu0 0.0
    %3838 = vmatprep.subr.mxu0 0.0
    %3839 = vmatpush1.msra.mxu0 0.0
    %3840 = vmatprep.subr.mxu0 0.0
    %3841 = vmatpush1.msra.mxu0 0.0
    %3842 = vmatprep.subr.mxu0 0.0
    %3843 = vmatpush1.msra.mxu0 0.0
    %3844 = vmatprep.subr.mxu0 0.0
    %3845 = vmatpush1.msra.mxu0 0.0
    %3846 = vmatprep.subr.mxu0 0.0
    %3847 = vmatpush1.msra.mxu0 0.0
    %3848 = vmatprep.subr.mxu0 0.0
    %3849 = vmatpush1.msra.mxu0 0.0
    %3850 = vmatprep.subr.mxu0 0.0
    %3851 = vmatpush1.msra.mxu0 0.0
    %3852 = vmatprep.subr.mxu0 0.0
    %3853 = vmatpush1.msra.mxu0 0.0
    %3854 = vmatprep.subr.mxu0 0.0
    %3855 = vmatpush1.msra.mxu0 0.0
    %3856 = vmatprep.subr.mxu0 0.0
    %3857 = vmatpush1.msra.mxu0 0.0
    %3858 = vmatprep.subr.mxu0 0.0
    %3859 = vmatpush1.msra.mxu0 0.0
    %3860 = vmatprep.subr.mxu0 0.0
    %3861 = vmatpush1.msra.mxu0 0.0
    %3862 = vmatprep.subr.mxu0 0.0
    %3863 = vmatpush1.msra.mxu0 0.0
    %3864 = vmatprep.subr.mxu0 0.0
    %3865 = vmatpush1.msra.mxu0 0.0
    %3866 = vmatprep.subr.mxu0 0.0
    %3867 = vmatpush1.msra.mxu0 0.0
    %3868 = vmatprep.subr.mxu0 0.0
    %3869 = vmatpush1.msra.mxu0 0.0
    %3870 = vmatprep.subr.mxu0 0.0
    %3871 = vmatpush1.msra.mxu0 0.0
    %3872 = vmatprep.subr.mxu0 0.0
    %3873 = vmatpush1.msra.mxu0 0.0
    %3874 = vmatprep.subr.mxu0 0.0
    %3875 = vmatpush1.msra.mxu0 0.0
    %3876 = vmatprep.subr.mxu0 0.0
    %3877 = vmatpush1.msra.mxu0 0.0
    %3878 = vmatprep.subr.mxu0 0.0
    %3879 = vmatpush1.msra.mxu0 0.0
    %3880 = vmatprep.subr.mxu0 0.0
    %3881 = vmatpush1.msra.mxu0 0.0
    %3882 = vmatprep.subr.mxu0 0.0
    %3883 = vmatpush1.msra.mxu0 0.0
    %3884 = vmatprep.mubr.f32.mxu0 0.0
    %3885 = vmatmul.mubr.f32.gmra.mrb[0].mxu0 %v3818
    %v3886 = vpop.f32.mrb[0].mxu0
    %v3887 = vadd.f32 0.0, %v3886
    %v3888 = vpop.f32.mrb[0].mxu0
    %3889 = vdwg.mxu0
    %v3890 = vmul.f32 %v3887, %v3887
    %v3891 = vsel %vm105, %v3890, 0.0
    %3892 = vadd.xlane.f32.xlu0 %v3891
    %v3893 = vpop.xlane.xlu0 %3892
    %v3894 = vadd.f32 %v3893, 0.001
    %v3895 = vrsqrt.pop %v3894
    %v3896 = vmul.f32 %v3887, %v3895
    %v3897 = vmax.f32 %v3896, 0.0
    %3898 = vrot.lane.b32.xlu0 %v2104, 64
    %v3899 = vpop.permute.xlu0 %3898
    %v3901 = vadd.f32 %v3897, %v3899
    %v3902 = vmul.f32 %v3901, 0.1
    %v3903 = vadd.f32 %v3733, %v3902
    %v3905 = vsel %vm105, %v3903, 0
    %3907 = vmatprep.subr.mxu0 0.0
    %3908 = vmatpush1.msra.mxu0 %v2368
    %3909 = vmatprep.subr.mxu0 0.0
    %3910 = vmatpush1.msra.mxu0 %v2369
    %3911 = vmatprep.subr.mxu0 0.0
    %3912 = vmatpush1.msra.mxu0 %v2370
    %3913 = vmatprep.subr.mxu0 0.0
    %3914 = vmatpush1.msra.mxu0 %v2371
    %3915 = vmatprep.subr.mxu0 0.0
    %3916 = vmatpush1.msra.mxu0 0.0
    %3917 = vmatprep.subr.mxu0 0.0
    %3918 = vmatpush1.msra.mxu0 0.0
    %3919 = vmatprep.subr.mxu0 0.0
    %3920 = vmatpush1.msra.mxu0 0.0
    %3921 = vmatprep.subr.mxu0 0.0
    %3922 = vmatpush1.msra.mxu0 0.0
    %3923 = vmatprep.subr.mxu0 0.0
    %3924 = vmatpush1.msra.mxu0 0.0
    %3925 = vmatprep.subr.mxu0 0.0
    %3926 = vmatpush1.msra.mxu0 0.0
    %3927 = vmatprep.subr.mxu0 0.0
    %3928 = vmatpush1.msra.mxu0 0.0
    %3929 = vmatprep.subr.mxu0 0.0
    %3930 = vmatpush1.msra.mxu0 0.0
    %3931 = vmatprep.subr.mxu0 0.0
    %3932 = vmatpush1.msra.mxu0 0.0
    %3933 = vmatprep.subr.mxu0 0.0
    %3934 = vmatpush1.msra.mxu0 0.0
    %3935 = vmatprep.subr.mxu0 0.0
    %3936 = vmatpush1.msra.mxu0 0.0
    %3937 = vmatprep.subr.mxu0 0.0
    %3938 = vmatpush1.msra.mxu0 0.0
    %3939 = vmatprep.subr.mxu0 0.0
    %3940 = vmatpush1.msra.mxu0 0.0
    %3941 = vmatprep.subr.mxu0 0.0
    %3942 = vmatpush1.msra.mxu0 0.0
    %3943 = vmatprep.subr.mxu0 0.0
    %3944 = vmatpush1.msra.mxu0 0.0
    %3945 = vmatprep.subr.mxu0 0.0
    %3946 = vmatpush1.msra.mxu0 0.0
    %3947 = vmatprep.subr.mxu0 0.0
    %3948 = vmatpush1.msra.mxu0 0.0
    %3949 = vmatprep.subr.mxu0 0.0
    %3950 = vmatpush1.msra.mxu0 0.0
    %3951 = vmatprep.subr.mxu0 0.0
    %3952 = vmatpush1.msra.mxu0 0.0
    %3953 = vmatprep.subr.mxu0 0.0
    %3954 = vmatpush1.msra.mxu0 0.0
    %3955 = vmatprep.subr.mxu0 0.0
    %3956 = vmatpush1.msra.mxu0 0.0
    %3957 = vmatprep.subr.mxu0 0.0
    %3958 = vmatpush1.msra.mxu0 0.0
    %3959 = vmatprep.subr.mxu0 0.0
    %3960 = vmatpush1.msra.mxu0 0.0
    %3961 = vmatprep.subr.mxu0 0.0
    %3962 = vmatpush1.msra.mxu0 0.0
    %3963 = vmatprep.subr.mxu0 0.0
    %3964 = vmatpush1.msra.mxu0 0.0
    %3965 = vmatprep.subr.mxu0 0.0
    %3966 = vmatpush1.msra.mxu0 0.0
    %3967 = vmatprep.subr.mxu0 0.0
    %3968 = vmatpush1.msra.mxu0 0.0
    %3969 = vmatprep.subr.mxu0 0.0
    %3970 = vmatpush1.msra.mxu0 0.0
    %3971 = vmatprep.mubr.f32.mxu0 0.0
    %3972 = vmatmul.mubr.f32.gmra.mrb[0].mxu0 %v3905
    %v3973 = vpop.f32.mrb[0].mxu0
    %v3974 = vadd.f32 0.0, %v3973
    %v3975 = vpop.f32.mrb[0].mxu0
    %3976 = vdwg.mxu0
    %v3977 = vmul.f32 %v3974, %v3974
    %v3978 = vsel %vm30, %v3977, 0.0
    %3979 = vadd.xlane.f32.xlu0 %v3978
    %v3980 = vpop.xlane.xlu0 %3979
    %v3981 = vadd.f32 %v3980, 0.001
    %v3982 = vrsqrt.pop %v3981
    %v3983 = vmul.f32 %v3974, %v3982
    %v3984 = vmax.f32 %v3983, 0.0
    %v3985 = vmul.f32 %v3984, 0.1
    %v3986 = vsub.f32 %v3816, %v3985
    %v3988 = vsel %vm30, %v3986, 0
    %3990 = vmatprep.subr.mxu0 0.0
    %3991 = vmatpush1.msra.mxu0 %v2455
    %3992 = vmatprep.subr.mxu0 0.0
    %3993 = vmatpush1.msra.mxu0 %v2456
    %3994 = vmatprep.subr.mxu0 0.0
    %3995 = vmatpush1.msra.mxu0 0.0
    %3996 = vmatprep.subr.mxu0 0.0
    %3997 = vmatpush1.msra.mxu0 0.0
    %3998 = vmatprep.subr.mxu0 0.0
    %3999 = vmatpush1.msra.mxu0 0.0
    %4000 = vmatprep.subr.mxu0 0.0
    %4001 = vmatpush1.msra.mxu0 0.0
    %4002 = vmatprep.subr.mxu0 0.0
    %4003 = vmatpush1.msra.mxu0 0.0
    %4004 = vmatprep.subr.mxu0 0.0
    %4005 = vmatpush1.msra.mxu0 0.0
    %4006 = vmatprep.subr.mxu0 0.0
    %4007 = vmatpush1.msra.mxu0 0.0
    %4008 = vmatprep.subr.mxu0 0.0
    %4009 = vmatpush1.msra.mxu0 0.0
    %4010 = vmatprep.subr.mxu0 0.0
    %4011 = vmatpush1.msra.mxu0 0.0
    %4012 = vmatprep.subr.mxu0 0.0
    %4013 = vmatpush1.msra.mxu0 0.0
    %4014 = vmatprep.subr.mxu0 0.0
    %4015 = vmatpush1.msra.mxu0 0.0
    %4016 = vmatprep.subr.mxu0 0.0
    %4017 = vmatpush1.msra.mxu0 0.0
    %4018 = vmatprep.subr.mxu0 0.0
    %4019 = vmatpush1.msra.mxu0 0.0
    %4020 = vmatprep.subr.mxu0 0.0
    %4021 = vmatpush1.msra.mxu0 0.0
    %4022 = vmatprep.subr.mxu0 0.0
    %4023 = vmatpush1.msra.mxu0 0.0
    %4024 = vmatprep.subr.mxu0 0.0
    %4025 = vmatpush1.msra.mxu0 0.0
    %4026 = vmatprep.subr.mxu0 0.0
    %4027 = vmatpush1.msra.mxu0 0.0
    %4028 = vmatprep.subr.mxu0 0.0
    %4029 = vmatpush1.msra.mxu0 0.0
    %4030 = vmatprep.subr.mxu0 0.0
    %4031 = vmatpush1.msra.mxu0 0.0
    %4032 = vmatprep.subr.mxu0 0.0
    %4033 = vmatpush1.msra.mxu0 0.0
    %4034 = vmatprep.subr.mxu0 0.0
    %4035 = vmatpush1.msra.mxu0 0.0
    %4036 = vmatprep.subr.mxu0 0.0
    %4037 = vmatpush1.msra.mxu0 0.0
    %4038 = vmatprep.subr.mxu0 0.0
    %4039 = vmatpush1.msra.mxu0 0.0
    %4040 = vmatprep.subr.mxu0 0.0
    %4041 = vmatpush1.msra.mxu0 0.0
    %4042 = vmatprep.subr.mxu0 0.0
    %4043 = vmatpush1.msra.mxu0 0.0
    %4044 = vmatprep.subr.mxu0 0.0
    %4045 = vmatpush1.msra.mxu0 0.0
    %4046 = vmatprep.subr.mxu0 0.0
    %4047 = vmatpush1.msra.mxu0 0.0
    %4048 = vmatprep.subr.mxu0 0.0
    %4049 = vmatpush1.msra.mxu0 0.0
    %4050 = vmatprep.subr.mxu0 0.0
    %4051 = vmatpush1.msra.mxu0 0.0
    %4052 = vmatprep.subr.mxu0 0.0
    %4053 = vmatpush1.msra.mxu0 0.0
    %4054 = vmatprep.mubr.f32.mxu0 0.0
    %4055 = vmatmul.mubr.f32.gmra.mrb[0].mxu0 %v3988
    %v4056 = vpop.f32.mrb[0].mxu0
    %v4057 = vadd.f32 0.0, %v4056
    %v4058 = vpop.f32.mrb[0].mxu0
    %4059 = vdwg.mxu0
    %v4060 = vmul.f32 %v4057, %v4057
    %v4061 = vsel %vm105, %v4060, 0.0
    %4062 = vadd.xlane.f32.xlu0 %v4061
    %v4063 = vpop.xlane.xlu0 %4062
    %v4064 = vadd.f32 %v4063, 0.001
    %v4065 = vrsqrt.pop %v4064
    %v4066 = vmul.f32 %v4057, %v4065
    %v4067 = vmax.f32 %v4066, 0.0
    %4068 = vrot.lane.b32.xlu0 %v2104, 32
    %v4069 = vpop.permute.xlu0 %4068
    %v4071 = vadd.f32 %v4067, %v4069
    %v4072 = vmul.f32 %v4071, 0.1
    %v4073 = vadd.f32 %v3903, %v4072
    %v4075 = vsel %vm105, %v4073, 0
    %4077 = vmatprep.subr.mxu0 0.0
    %4078 = vmatpush1.msra.mxu0 %v2544
    %4079 = vmatprep.subr.mxu0 0.0
    %4080 = vmatpush1.msra.mxu0 %v2545
    %4081 = vmatprep.subr.mxu0 0.0
    %4082 = vmatpush1.msra.mxu0 %v2546
    %4083 = vmatprep.subr.mxu0 0.0
    %4084 = vmatpush1.msra.mxu0 %v2547
    %4085 = vmatprep.subr.mxu0 0.0
    %4086 = vmatpush1.msra.mxu0 0.0
    %4087 = vmatprep.subr.mxu0 0.0
    %4088 = vmatpush1.msra.mxu0 0.0
    %4089 = vmatprep.subr.mxu0 0.0
    %4090 = vmatpush1.msra.mxu0 0.0
    %4091 = vmatprep.subr.mxu0 0.0
    %4092 = vmatpush1.msra.mxu0 0.0
    %4093 = vmatprep.subr.mxu0 0.0
    %4094 = vmatpush1.msra.mxu0 0.0
    %4095 = vmatprep.subr.mxu0 0.0
    %4096 = vmatpush1.msra.mxu0 0.0
    %4097 = vmatprep.subr.mxu0 0.0
    %4098 = vmatpush1.msra.mxu0 0.0
    %4099 = vmatprep.subr.mxu0 0.0
    %4100 = vmatpush1.msra.mxu0 0.0
    %4101 = vmatprep.subr.mxu0 0.0
    %4102 = vmatpush1.msra.mxu0 0.0
    %4103 = vmatprep.subr.mxu0 0.0
    %4104 = vmatpush1.msra.mxu0 0.0
    %4105 = vmatprep.subr.mxu0 0.0
    %4106 = vmatpush1.msra.mxu0 0.0
    %4107 = vmatprep.subr.mxu0 0.0
    %4108 = vmatpush1.msra.mxu0 0.0
    %4109 = vmatprep.subr.mxu0 0.0
    %4110 = vmatpush1.msra.mxu0 0.0
    %4111 = vmatprep.subr.mxu0 0.0
    %4112 = vmatpush1.msra.mxu0 0.0
    %4113 = vmatprep.subr.mxu0 0.0
    %4114 = vmatpush1.msra.mxu0 0.0
    %4115 = vmatprep.subr.mxu0 0.0
    %4116 = vmatpush1.msra.mxu0 0.0
    %4117 = vmatprep.subr.mxu0 0.0
    %4118 = vmatpush1.msra.mxu0 0.0
    %4119 = vmatprep.subr.mxu0 0.0
    %4120 = vmatpush1.msra.mxu0 0.0
    %4121 = vmatprep.subr.mxu0 0.0
    %4122 = vmatpush1.msra.mxu0 0.0
    %4123 = vmatprep.subr.mxu0 0.0
    %4124 = vmatpush1.msra.mxu0 0.0
    %4125 = vmatprep.subr.mxu0 0.0
    %4126 = vmatpush1.msra.mxu0 0.0
    %4127 = vmatprep.subr.mxu0 0.0
    %4128 = vmatpush1.msra.mxu0 0.0
    %4129 = vmatprep.subr.mxu0 0.0
    %4130 = vmatpush1.msra.mxu0 0.0
    %4131 = vmatprep.subr.mxu0 0.0
    %4132 = vmatpush1.msra.mxu0 0.0
    %4133 = vmatprep.subr.mxu0 0.0
    %4134 = vmatpush1.msra.mxu0 0.0
    %4135 = vmatprep.subr.mxu0 0.0
    %4136 = vmatpush1.msra.mxu0 0.0
    %4137 = vmatprep.subr.mxu0 0.0
    %4138 = vmatpush1.msra.mxu0 0.0
    %4139 = vmatprep.subr.mxu0 0.0
    %4140 = vmatpush1.msra.mxu0 0.0
    %4141 = vmatprep.mubr.f32.mxu0 0.0
    %4142 = vmatmul.mubr.f32.gmra.mrb[0].mxu0 %v4075
    %v4143 = vpop.f32.mrb[0].mxu0
    %v4144 = vadd.f32 0.0, %v4143
    %v4145 = vpop.f32.mrb[0].mxu0
    %4146 = vdwg.mxu0
    %v4147 = vmul.f32 %v4144, %v4144
    %v4148 = vsel %vm30, %v4147, 0.0
    %4149 = vadd.xlane.f32.xlu0 %v4148
    %v4150 = vpop.xlane.xlu0 %4149
    %v4151 = vadd.f32 %v4150, 0.001
    %v4152 = vrsqrt.pop %v4151
    %v4153 = vmul.f32 %v4144, %v4152
    %v4154 = vmax.f32 %v4153, 0.0
    %v4155 = vmul.f32 %v4154, 0.1
    %v4156 = vsub.f32 %v3986, %v4155
    %4157 = vrot.lane.b32.xlu0 %v3055, 32
    %v4158 = vpop.permute.xlu0 %4157
    %4160 = vrot.lane.b32.xlu0 %v3562, 64
    %v4161 = vpop.permute.xlu0 %4160
    %4163 = vrot.lane.b32.xlu0 %v4073, 96
    %v4164 = vpop.permute.xlu0 %4163
    %v4166 = vsel %vm105, %v2543, %v4158
    %v4167 = vsel %vm2096, %v4166, %v4161
    %v4168 = vsel %vm2098, %v4167, %v4164
    %s4169 = scalar_lea.vmem [#allocation4], 8
    %4170 = vst [vmem:[%s4169] sm:$0xff] %v4168
    %4171 = vst.msk [vmem:[#allocation2] sm:$0xff] %vm30, %v4156
    %4172 = vst.msk [vmem:[#allocation3] sm:$0xff] %vm105, %v4073
    // Predicated region
    $region18: #{tpu_custom_call.1} parent=1 // pred_check
      _
    $region19: #{tpu_custom_call.1} parent=1 // pred_check_branch
      %4174 = sbr.rel (0) target = $region21
    $region20: #{tpu_custom_call.1} parent=1 // pred_region
      %s4176 = ssub.s32 256, 256
      %4177 = vsyncadd [#allocation5], %s4176
      %s4178 = sshll.u32 [#allocation4], 4
      %s4179 = int_to_ptr.vmem [resolvable:$true] %s4178
      %4184 = dma.vmem_to_hbm [thread:$0]  %s4179, 256, %s3, [#allocation5], 128, 128, 8
    $region21: #{tpu_custom_call.1} parent=1 // pred_fallthru
      _
    // Predicated region
    $region22: #{tpu_custom_call.1} parent=1 // pred_check
      _
    $region23: #{tpu_custom_call.1} parent=1 // pred_check_branch
      %4186 = sbr.rel (0) target = $region25
    $region24: #{tpu_custom_call.1} parent=1 // pred_region
      %4187 = dma.done [#allocation5], 256
    $region25: #{tpu_custom_call.1} parent=1 // pred_fallthru
      _
    %4188 = vsyncpa [#allocation5], 1

</llo_original>
